<compile_context>
chip_gen: v6e
topology: v6e:2x2x1
jax: 0.10.0
libtpu: 0.0.40
codegen_flags: <defaults>
</compile_context>

<pallas_src>
import functools

import jax
import jax.numpy as jnp
from jax import lax
from jax.experimental import pallas as pl
from jax.experimental.pallas import tpu as pltpu

LANE = 128                       # every feature dim is padded to 128 lanes
_ROW_TILE = 1024                 # rows per grid step (review: 512 -> 1024)
_VMEM_LIMIT = 48 * 1024 * 1024   # explicit scoped-VMEM budget (v5e/v6e/v7x safe)


# ------------------------------ small helpers -------------------------------

def _round_up(n, m):
    return ((n + m - 1) // m) * m


def _row_tiling(n):
    """(padded_rows, row_tile) satisfying the (8,128) block rules."""
    if n <= _ROW_TILE:
        pad = _round_up(max(n, 1), 8)
        return pad, pad
    pad = _round_up(n, _ROW_TILE)
    return pad, _ROW_TILE


def _pad2d(a, rows, cols):
    return jnp.pad(a, ((0, rows - a.shape[0]), (0, cols - a.shape[1])))


def _to_bf16_weights(p):
    """Cast matrices to bf16 for the kernels; keep biases in f32."""
    return {k: (v.astype(jnp.bfloat16) if k.startswith("w_") else v)
            for k, v in p.items()}


# ------------------------------ Pallas kernels ------------------------------

def _edge_path_kernel(xr_ref, xc_ref, ea_ref, brow_ref, bcol_ref,
                      uwe_ref, uwn1_ref,
                      we_xr, we_xc, we_ea, be,
                      wn_xc, wn_xr, wn_e, bn1,
                      edge_out_ref, mlp1_out_ref, egp_ref, *, relu):
    """Fused EdgeModel linear + NodeModel mlp1 + global edge-partial, one tile."""
    xr = xr_ref[...]
    xc = xc_ref[...]
    tile_e = xr.shape[0]
    n_graphs = uwe_ref.shape[0]

    # in-kernel u[batch[...]] gathers as one-hot matmuls (ids are -1 on padded
    # edge rows -> those rows contribute nothing anywhere downstream).
    gid = lax.broadcasted_iota(jnp.int32, (tile_e, n_graphs), 1)
    oh_r = (brow_ref[...] == gid).astype(jnp.bfloat16)       # [tile_e, B_pad]
    oh_c = (bcol_ref[...] == gid).astype(jnp.bfloat16)

    # EdgeModel: concat([src, dest, edge_attr, u[batch[row]]]) @ W  as split-K.
    e = jnp.dot(xr, we_xr[...], preferred_element_type=jnp.float32)
    e = e + jnp.dot(xc, we_xc[...], preferred_element_type=jnp.float32)
    e = e + jnp.dot(ea_ref[...], we_ea[...], preferred_element_type=jnp.float32)
    e = e + jnp.dot(oh_r, uwe_ref[...], preferred_element_type=jnp.float32)
    e = e + be[...]
    if relu:
        e = jnp.maximum(e, 0.0)
    e_bf = e.astype(jnp.bfloat16)
    edge_out_ref[...] = e_bf

    # fused GlobalModel edge partial sum: onehot_batch_col^T @ edge_new
    egp_ref[0] = lax.dot_general(oh_c, e_bf, (((0,), (0,)), ((), ())),
                                 preferred_element_type=jnp.float32)

    # NodeModel mlp1: concat([x[col], x[row], new_edge, u[batch[col]]]) @ W.
    m = jnp.dot(xc, wn_xc[...], preferred_element_type=jnp.float32)
    m = m + jnp.dot(xr, wn_xr[...], preferred_element_type=jnp.float32)
    m = m + jnp.dot(e_bf, wn_e[...], preferred_element_type=jnp.float32)
    m = m + jnp.dot(oh_c, uwn1_ref[...], preferred_element_type=jnp.float32)
    m = m + bn1[...]
    if relu:
        m = jnp.maximum(m, 0.0)
    mlp1_out_ref[...] = m.astype(mlp1_out_ref.dtype)


def _node_path_kernel(sb_ref, nb_ref,
                      col_ref, mlp1_ref, x_ref, nbatch_ref, uwn2_ref,
                      w_x, w_g, b_ref,
                      out_ref, ngp_ref, acc_ref, *, relu):
    """Segmented scatter-sum(mlp1, col) + NodeModel mlp2 + global node-partial.

    Grid = (node_tiles [parallel], edge_blocks [arbitrary]).  Edges are sorted
    by col; sb/nb (scalar prefetch) give the edge-block segment of node tile i,
    the index_map clamps inside it and pl.when skips steps past the segment.
    """
    i = pl.program_id(0)
    j = pl.program_id(1)

    @pl.when(j == 0)
    def _():
        acc_ref[...] = jnp.zeros_like(acc_ref)

    tile_n = acc_ref.shape[0]
    tile_e = col_ref.shape[1]

    @pl.when(j < nb_ref[i])
    def _():
        node_ids = (i * tile_n
                    + lax.broadcasted_iota(jnp.int32, (tile_n, tile_e), 0))
        onehot = (node_ids == col_ref[...]).astype(jnp.bfloat16)  # -1 pad never hits
        acc_ref[...] += jnp.dot(onehot, mlp1_ref[...],
                                preferred_element_type=jnp.float32)

    @pl.when(j == pl.num_programs(1) - 1)
    def _():
        n_graphs = uwn2_ref.shape[0]
        gid = lax.broadcasted_iota(jnp.int32, (tile_n, n_graphs), 1)
        oh_n = (nbatch_ref[...] == gid).astype(jnp.bfloat16)      # -1 pad rows -> 0
        y = jnp.dot(x_ref[...], w_x[...], preferred_element_type=jnp.float32)
        y = y + jnp.dot(acc_ref[...].astype(jnp.bfloat16), w_g[...],
                        preferred_element_type=jnp.float32)
        y = y + jnp.dot(oh_n, uwn2_ref[...], preferred_element_type=jnp.float32)
        y = y + b_ref[...]
        if relu:
            y = jnp.maximum(y, 0.0)
        y_bf = y.astype(jnp.bfloat16)
        out_ref[...] = y_bf
        # fused GlobalModel node partial sum: onehot_batch^T @ x_new
        ngp_ref[0] = lax.dot_general(oh_n, y_bf, (((0,), (0,)), ((), ())),
                                     preferred_element_type=jnp.float32)


# ------------------------------ kernel wrappers ------------------------------

def _edge_path(xr, xc, ea, brow, bcol, uwe, uwn1, pe, pn1, *, relu, tile):
    e_pad = xr.shape[0]
    h_e = uwe.shape[1]
    h_n = uwn1.shape[1]
    b_pad = uwe.shape[0]
    n_blocks = e_pad // tile

    def row_spec(a):
        return pl.BlockSpec((tile, a.shape[1]), lambda i: (i, 0))

    def full_spec(a):
        return pl.BlockSpec(a.shape, lambda i: (0, 0))

    weights = (pe["w_xr"], pe["w_xc"], pe["w_ea"], pe["b"],
               pn1["w_xc"], pn1["w_xr"], pn1["w_e"], pn1["b"])
    in_specs = ([row_spec(xr), row_spec(xc), row_spec(ea),
                 pl.BlockSpec((tile, 1), lambda i: (i, 0)),
                 pl.BlockSpec((tile, 1), lambda i: (i, 0)),
                 full_spec(uwe), full_spec(uwn1)]
                + [full_spec(w) for w in weights])
    out_specs = (pl.BlockSpec((tile, h_e), lambda i: (i, 0)),
                 pl.BlockSpec((tile, h_n), lambda i: (i, 0)),
                 pl.BlockSpec((1, b_pad, h_e), lambda i: (i, 0, 0)))
    out_shape = (jax.ShapeDtypeStruct((e_pad, h_e), jnp.bfloat16),
                 jax.ShapeDtypeStruct((e_pad, h_n), jnp.bfloat16),
                 jax.ShapeDtypeStruct((n_blocks, b_pad, h_e), jnp.float32))

    return pl.pallas_call(
        functools.partial(_edge_path_kernel, relu=relu),
        grid=(n_blocks,),
        in_specs=in_specs,
        out_specs=out_specs,
        out_shape=out_shape,
        compiler_params=pltpu.CompilerParams(
            dimension_semantics=("parallel",),
            vmem_limit_bytes=_VMEM_LIMIT),
    )(xr, xc, ea, brow, bcol, uwe, uwn1, *weights)


def _node_path(sb, nb, col2d, mlp1, x, nbatch, uwn2, pn2, *,
               relu, tile_n, tile_e):
    n_pad = x.shape[0]
    e_pad = mlp1.shape[0]
    h = mlp1.shape[1]
    d_out = uwn2.shape[1]
    b_pad = uwn2.shape[0]
    n_nblocks = n_pad // tile_n
    n_eblocks = e_pad // tile_e

    def seg_block(i, j, sb_ref, nb_ref):
        # clamp inside this node tile's edge-block segment: past-the-end steps
        # re-request the same block (no re-DMA) and compute is pl.when-skipped.
        return sb_ref[i] + jnp.minimum(j, jnp.maximum(nb_ref[i], 1) - 1)

    def full_spec(a):
        return pl.BlockSpec(a.shape, lambda i, j, sb_, nb_: (0, 0))

    in_specs = [
        pl.BlockSpec((1, tile_e),
                     lambda i, j, sb_, nb_: (0, seg_block(i, j, sb_, nb_))),
        pl.BlockSpec((tile_e, h),
                     lambda i, j, sb_, nb_: (seg_block(i, j, sb_, nb_), 0)),
        pl.BlockSpec((tile_n, x.shape[1]), lambda i, j, sb_, nb_: (i, 0)),
        pl.BlockSpec((tile_n, 1), lambda i, j, sb_, nb_: (i, 0)),
        full_spec(uwn2),
        full_spec(pn2["w_x"]), full_spec(pn2["w_g"]), full_spec(pn2["b"]),
    ]
    out_specs = (pl.BlockSpec((tile_n, d_out), lambda i, j, sb_, nb_: (i, 0)),
                 pl.BlockSpec((1, b_pad, d_out),
                              lambda i, j, sb_, nb_: (i, 0, 0)))
    out_shape = (jax.ShapeDtypeStruct((n_pad, d_out), jnp.bfloat16),
                 jax.ShapeDtypeStruct((n_nblocks, b_pad, d_out), jnp.float32))

    grid_spec = pltpu.PrefetchScalarGridSpec(
        num_scalar_prefetch=2,
        grid=(n_nblocks, n_eblocks),
        in_specs=in_specs,
        out_specs=out_specs,
        scratch_shapes=[pltpu.VMEM((tile_n, h), jnp.float32)])

    return pl.pallas_call(
        functools.partial(_node_path_kernel, relu=relu),
        grid_spec=grid_spec,
        out_shape=out_shape,
        compiler_params=pltpu.CompilerParams(
            dimension_semantics=("parallel", "arbitrary"),
            vmem_limit_bytes=_VMEM_LIMIT),
    )(sb, nb, col2d, mlp1, x, nbatch, uwn2, pn2["w_x"], pn2["w_g"], pn2["b"])


# ------------------------ deterministic parameter init ----------------------

def _init_split_linear(key, pieces, true_out):
    """Per-piece (split-K) weights of a Linear over a concatenated input.
    Zero-padded to 128-lane multiples; padded rows/cols are exactly zero."""
    total_in = sum(d for _, d in pieces)
    bound = 1.0 / (total_in ** 0.5)
    out_pad = _round_up(true_out, LANE)
    keys = jax.random.split(key, len(pieces) + 1)
    params = {}
    for k, (name, din) in zip(keys[:-1], pieces):
        in_pad = _round_up(din, LANE)
        w = jnp.zeros((in_pad, out_pad), jnp.float32)
        w = w.at[:din, :true_out].set(
            jax.random.uniform(k, (din, true_out), jnp.float32, -bound, bound))
        params["w_" + name] = w
    b = jnp.zeros((1, out_pad), jnp.float32)
    b = b.at[:, :true_out].set(
        jax.random.uniform(keys[-1], (1, true_out), jnp.float32, -bound, bound))
    params["b"] = b
    return params
    # TODO(synk): when all concat segments fit in <=128 lanes (small hidden),
    # pack them into one 128-lane slab + single weight to cut padded traffic.


def init_bn(dim):
    return {"gamma": jnp.ones((dim,), jnp.float32),
            "beta": jnp.zeros((dim,), jnp.float32),
            "mean": jnp.zeros((dim,), jnp.float32),
            "var": jnp.ones((dim,), jnp.float32)}


def init_mpnn(key, node_in, edge_in, global_in, hidden,
              node_out, edge_out, global_out, num_layers):
    assert num_layers >= 2
    # The reference last-layer NodeModel's in_dim_mlp2 (hidden*2 + edge_out)
    # implies the grouped mlp1 output width equals edge_out, i.e.:
    assert node_out == edge_out, "reference MPNN requires node_out == edge_out"

    def conv(k, dn, de, dg, out_e, out_n, out_g):
        ks = jax.random.split(k, 4)
        return {
            "edge": _init_split_linear(
                ks[0], [("xr", dn), ("xc", dn), ("ea", de), ("u", dg)], out_e),
            "node1": _init_split_linear(
                ks[1], [("xc", dn), ("xr", dn), ("e", out_e), ("u", dg)], out_n),
            "node2": _init_split_linear(
                ks[2], [("x", dn), ("g", out_n), ("u", dg)], out_n),
            "global": _init_split_linear(
                ks[3], [("ns", out_n), ("es", out_e), ("u", dg)], out_g),
        }

    keys = jax.random.split(key, num_layers)
    convs = [conv(keys[0], node_in, edge_in, global_in, hidden, hidden, hidden)]
    node_norms = [init_bn(hidden)]
    edge_norms = [init_bn(hidden)]
    global_norms = [init_bn(hidden)]
    for i in range(num_layers - 2):
        convs.append(conv(keys[1 + i], hidden, hidden, hidden,
                          hidden, hidden, hidden))
        node_norms.append(init_bn(hidden))
        edge_norms.append(init_bn(hidden))
        global_norms.append(init_bn(hidden))
    convs.append(conv(keys[-1], hidden, hidden, hidden,
                      edge_out, node_out, global_out))
    return {"convs": convs, "node_norms": node_norms,
            "edge_norms": edge_norms, "global_norms": global_norms}


# --------------------------- eval-mode BN folding ----------------------------

def _bn_affine(bn, in_pad, eps=1e-5):
    scale = bn["gamma"] / jnp.sqrt(bn["var"] + eps)
    shift = bn["beta"] - bn["mean"] * scale
    d = scale.shape[0]
    scale = jnp.pad(scale, (0, in_pad - d), constant_values=1.0)
    shift = jnp.pad(shift, (0, in_pad - d))
    return scale, shift


def _fold_prev_bn(conv, node_bn, edge_bn, global_bn):
    """Fold previous layer's eval-mode BatchNorms into this layer's consuming
    linears: BN(a) @ W == a @ (scale*W) + shift @ W.  Exact, zero runtime cost."""
    sn, tn = _bn_affine(node_bn, conv["edge"]["w_xr"].shape[0])
    se, te = _bn_affine(edge_bn, conv["edge"]["w_ea"].shape[0])
    sg, tg = _bn_affine(global_bn, conv["edge"]["w_u"].shape[0])

    def scale_w(w, s):
        return w * s[:, None]

    e, n1, n2, g = conv["edge"], conv["node1"], conv["node2"], conv["global"]
    return {
        "edge": {
            "w_xr": scale_w(e["w_xr"], sn), "w_xc": scale_w(e["w_xc"], sn),
            "w_ea": scale_w(e["w_ea"], se), "w_u": scale_w(e["w_u"], sg),
            "b": (e["b"] + tn @ e["w_xr"] + tn @ e["w_xc"]
                  + te @ e["w_ea"] + tg @ e["w_u"]),
        },
        "node1": {
            "w_xc": scale_w(n1["w_xc"], sn), "w_xr": scale_w(n1["w_xr"], sn),
            "w_e": n1["w_e"], "w_u": scale_w(n1["w_u"], sg),
            "b": n1["b"] + tn @ n1["w_xc"] + tn @ n1["w_xr"] + tg @ n1["w_u"],
        },
        "node2": {
            "w_x": scale_w(n2["w_x"], sn), "w_g": n2["w_g"],
            "w_u": scale_w(n2["w_u"], sg),
            "b": n2["b"] + tn @ n2["w_x"] + tg @ n2["w_u"],
        },
        "global": {
            "w_ns": g["w_ns"], "w_es": g["w_es"], "w_u": scale_w(g["w_u"], sg),
            "b": g["b"] + tg @ g["w_u"],
        },
    }


# ------------------------------- forward pass --------------------------------

def mpnn_forward(params, x, edge_index, edge_attr, u, batch, *,
                 out_dims, use_bn=True):
    """Inference-mode forward of the MPNN MetaLayer stack (Pallas kernels)."""
    n_nodes = x.shape[0]
    n_edges = edge_attr.shape[0]
    n_graphs = u.shape[0]
    node_out, edge_out, global_out = out_dims

    row = edge_index[0].astype(jnp.int32)
    col = edge_index[1].astype(jnp.int32)
    batch = batch.astype(jnp.int32)

    # Sort edges by destination node (col): the scatter-add becomes contiguous
    # per-node-tile segments, so the node kernel touches O(E) edge blocks.
    perm = jnp.argsort(col)
    inv_perm = jnp.argsort(perm)
    row = jnp.take(row, perm)
    col = jnp.take(col, perm)
    edge_attr = jnp.take(edge_attr, perm, axis=0)

    n_pad, tile_n = _row_tiling(n_nodes)
    e_pad, tile_e = _row_tiling(n_edges)
    b_pad = _round_up(n_graphs, 8)
    n_nblocks = n_pad // tile_n
    n_eblocks = e_pad // tile_e

    x = _pad2d(x, n_pad, _round_up(x.shape[1], LANE)).astype(jnp.bfloat16)
    edge_attr = _pad2d(edge_attr, e_pad,
                       _round_up(edge_attr.shape[1], LANE)).astype(jnp.bfloat16)
    u = _pad2d(u, b_pad, _round_up(u.shape[1], LANE))   # stays f32 (tiny)

    # gather indices (padding -> node/graph 0: harmless, rows never consumed)
    row_g = jnp.pad(row, (0, e_pad - n_edges))
    col_g = jnp.pad(col, (0, e_pad - n_edges))
    batch_g = jnp.pad(batch, (0, n_pad - n_nodes))

    # sentinel (-1) id columns: padded rows never one-hot-match anything, so
    # garbage padded rows are excluded from scatters and global partial sums.
    valid_e = jnp.arange(e_pad) < n_edges
    valid_n = jnp.arange(n_pad) < n_nodes
    brow_ids = jnp.where(valid_e, jnp.take(batch_g, row_g),
                         -1).astype(jnp.int32).reshape(e_pad, 1)
    bcol_ids = jnp.where(valid_e, jnp.take(batch_g, col_g),
                         -1).astype(jnp.int32).reshape(e_pad, 1)
    nbatch_ids = jnp.where(valid_n, batch_g,
                           -1).astype(jnp.int32).reshape(n_pad, 1)
    col_scatter = jnp.where(valid_e, col_g, -1).astype(jnp.int32).reshape(1, e_pad)

    # per-node-tile edge segment -> edge-block offsets (scalar prefetch)
    bounds = jnp.arange(n_nblocks + 1, dtype=jnp.int32) * tile_n
    pos = jnp.searchsorted(col, bounds).astype(jnp.int32)
    lo, hi = pos[:-1], pos[1:]
    sb = jnp.minimum(lo // tile_e, n_eblocks - 1).astype(jnp.int32)
    eb = (hi + tile_e - 1) // tile_e
    nb = jnp.where(hi > lo, eb - sb, 0).astype(jnp.int32)

    n_layers = len(params["convs"])
    for l in range(n_layers):
        conv = params["convs"][l]
        if l > 0 and use_bn:
            conv = _fold_prev_bn(conv, params["node_norms"][l - 1],
                                 params["edge_norms"][l - 1],
                                 params["global_norms"][l - 1])
        relu = l != n_layers - 1

        # Pre-fold the tiny u @ W_u products ([B_pad, 128]); inside the kernels
        # the u gathers become one-hot matmuls -> no ur/uc/ug HBM streams.
        uwe = (u @ conv["edge"]["w_u"]).astype(jnp.bfloat16)
        uwn1 = (u @ conv["node1"]["w_u"]).astype(jnp.bfloat16)
        uwn2 = (u @ conv["node2"]["w_u"]).astype(jnp.bfloat16)

        pe = _to_bf16_weights(conv["edge"])
        pn1 = _to_bf16_weights(conv["node1"])
        pn2 = _to_bf16_weights(conv["node2"])

        # XLA row gathers feeding the fused edge kernel (bf16 halves the bytes).
        # TODO(synk): move these in-kernel (memory_space=pl.ANY + manual DMA
        # gather) to also drop the xr/xc HBM materializations.
        xr = jnp.take(x, row_g, axis=0)
        xc = jnp.take(x, col_g, axis=0)

        edge_new, mlp1, egp = _edge_path(xr, xc, edge_attr, brow_ids, bcol_ids,
                                         uwe, uwn1, pe, pn1,
                                         relu=relu, tile=tile_e)
        x_new, ngp = _node_path(sb, nb, col_scatter, mlp1, x, nbatch_ids, uwn2,
                                pn2, relu=relu, tile_n=tile_n, tile_e=tile_e)

        # GlobalModel: tiny [num_graphs, D] math in plain XLA, using the fused
        # per-tile partial sums (no extra HBM read of edge_new / x_new).
        g = conv["global"]
        edge_sum = jnp.sum(egp, axis=0)
        node_sum = jnp.sum(ngp, axis=0)
        u_new = node_sum @ g["w_ns"] + edge_sum @ g["w_es"] + u @ g["w_u"] + g["b"]
        if relu:
            u_new = jnp.maximum(u_new, 0.0)

        x, edge_attr, u = x_new, edge_new, u_new
        # F.dropout with p=0.0 in eval mode is the identity; skipped.

    x_out = x[:n_nodes, :node_out].astype(jnp.float32)
    e_out = jnp.take(edge_attr, inv_perm, axis=0)[:, :edge_out].astype(jnp.float32)
    u_out = u[:n_graphs, :global_out].astype(jnp.float32)
    return x_out, e_out, u_out


# ------------------------- pure-JAX f32 reference ----------------------------

def mpnn_reference(params, x, edge_index, edge_attr, u, batch, *,
                   out_dims, use_bn=True):
    node_out, edge_out, global_out = out_dims
    row = edge_index[0].astype(jnp.int32)
    col = edge_index[1].astype(jnp.int32)
    batch = batch.astype(jnp.int32)
    n_nodes = x.shape[0]
    n_graphs = u.shape[0]
    n_layers = len(params["convs"])

    def padc(a, w):
        return jnp.pad(a, ((0, 0), (0, w - a.shape[1])))

    x = padc(x, params["convs"][0]["edge"]["w_xr"].shape[0])
    edge_attr = padc(edge_attr, params["convs"][0]["edge"]["w_ea"].shape[0])
    u = padc(u, params["convs"][0]["edge"]["w_u"].shape[0])

    for l in range(n_layers):
        conv = params["convs"][l]
        relu = l != n_layers - 1
        pe, pn1, pn2, pg = conv["edge"], conv["node1"], conv["node2"], conv["global"]

        xr, xc = x[row], x[col]
        ur, uc, ug = u[batch[row]], u[batch[col]], u[batch]

        e = xr @ pe["w_xr"] + xc @ pe["w_xc"] + edge_attr @ pe["w_ea"] \
            + ur @ pe["w_u"] + pe["b"]
        if relu:
            e = jnp.maximum(e, 0.0)

        m = xc @ pn1["w_xc"] + xr @ pn1["w_xr"] + e @ pn1["w_e"] \
            + uc @ pn1["w_u"] + pn1["b"]
        if relu:
            m = jnp.maximum(m, 0.0)
        grouped = jax.ops.segment_sum(m, col, num_segments=n_nodes)

        y = x @ pn2["w_x"] + grouped @ pn2["w_g"] + ug @ pn2["w_u"] + pn2["b"]
        if relu:
            y = jnp.maximum(y, 0.0)

        node_sum = jax.ops.segment_sum(y, batch, num_segments=n_graphs)
        edge_sum = jax.ops.segment_sum(e, batch[col], num_segments=n_graphs)
        u_new = node_sum @ pg["w_ns"] + edge_sum @ pg["w_es"] + u @ pg["w_u"] + pg["b"]
        if relu:
            u_new = jnp.maximum(u_new, 0.0)

        x, edge_attr, u = y, e, u_new

        if l != n_layers - 1 and use_bn:
            sn, tn = _bn_affine(params["node_norms"][l], x.shape[1])
            se, te = _bn_affine(params["edge_norms"][l], edge_attr.shape[1])
            sg, tg = _bn_affine(params["global_norms"][l], u.shape[1])
            x = x * sn + tn
            edge_attr = edge_attr * se + te
            u = u * sg + tg

    return x[:, :node_out], edge_attr[:, :edge_out], u[:, :global_out]


# ----------------------------------- main ------------------------------------

if __name__ == "__main__":
    key = jax.random.PRNGKey(0)
    (k_x, k_e, k_u, k_r0, k_c0, k_r1, k_c1, k_p, k_bn) = jax.random.split(key, 9)

    # small synthetic graph batch: 2 graphs, 12 nodes, 24 edges
    N, E, B = 12, 24, 2
    node_in, edge_in, global_in = 6, 4, 5
    hidden = 32
    node_out, edge_out, global_out = 8, 8, 3
    num_layers = 3

    x = jax.random.normal(k_x, (N, node_in), jnp.float32)
    edge_attr = jax.random.normal(k_e, (E, edge_in), jnp.float32)
    u = jax.random.normal(k_u, (B, global_in), jnp.float32)
    batch = jnp.concatenate([jnp.zeros(N // 2, jnp.int32),
                             jnp.ones(N - N // 2, jnp.int32)])

    # edges stay within their own graph
    row = jnp.concatenate(
        [jax.random.randint(k_r0, (E // 2,), 0, N // 2),
         jax.random.randint(k_r1, (E // 2,), N // 2, N)]).astype(jnp.int32)
    col = jnp.concatenate(
        [jax.random.randint(k_c0, (E // 2,), 0, N // 2),
         jax.random.randint(k_c1, (E // 2,), N // 2, N)]).astype(jnp.int32)
    edge_index = jnp.stack([row, col])

    params = init_mpnn(k_p, node_in, edge_in, global_in, hidden,
                       node_out, edge_out, global_out, num_layers)

    # perturb the eval-mode BN running stats/affines so the fold is exercised
    kb = k_bn
    for norms in (params["node_norms"], params["edge_norms"],
                  params["global_norms"]):
        for bn_d in norms:
            kb, k1, k2, k3, k4 = jax.random.split(kb, 5)
            bn_d["gamma"] = 1.0 + 0.1 * jax.random.normal(k1, bn_d["gamma"].shape)
            bn_d["beta"] = 0.1 * jax.random.normal(k2, bn_d["beta"].shape)
            bn_d["mean"] = 0.1 * jax.random.normal(k3, bn_d["mean"].shape)
            bn_d["var"] = 1.0 + 0.2 * jax.random.uniform(k4, bn_d["var"].shape)

    fwd = jax.jit(mpnn_forward, static_argnames=("out_dims", "use_bn"))
    x_out, e_out, u_out = fwd(params, x, edge_index, edge_attr, u, batch,
                              out_dims=(node_out, edge_out, global_out),
                              use_bn=True)
    jax.block_until_ready((x_out, e_out, u_out))

    assert x_out.shape == (N, node_out)
    assert e_out.shape == (E, edge_out)
    assert u_out.shape == (B, global_out)
    assert bool(jnp.isfinite(x_out).all())
    assert bool(jnp.isfinite(e_out).all())
    assert bool(jnp.isfinite(u_out).all())

    # pure-JAX f32 reference check (loose tolerances: kernels use bf16 storage)
    x_ref, e_ref, u_ref = mpnn_reference(
        params, x, edge_index, edge_attr, u, batch,
        out_dims=(node_out, edge_out, global_out), use_bn=True)

    def _close(a, b):
        return bool(jnp.all(jnp.abs(a - b) <= 0.15 + 0.05 * jnp.abs(b)))

    assert _close(x_out, x_ref), "node output mismatch vs reference"
    assert _close(e_out, e_ref), "edge output mismatch vs reference"
    assert _close(u_out, u_ref), "global output mismatch vs reference"

    print("KERNEL_OK")
</pallas_src>

<mosaic_0001>
module attributes {stable_mosaic.version = 11 : i64} {
  func.func @_edge_path_kernel(%arg0: i32, %arg1: memref<24x128xbf16, #tpu.memory_space<vmem>>, %arg2: memref<24x128xbf16, #tpu.memory_space<vmem>>, %arg3: memref<24x128xbf16, #tpu.memory_space<vmem>>, %arg4: memref<24x1xi32, #tpu.memory_space<vmem>>, %arg5: memref<24x1xi32, #tpu.memory_space<vmem>>, %arg6: memref<8x128xbf16, #tpu.memory_space<vmem>>, %arg7: memref<8x128xbf16, #tpu.memory_space<vmem>>, %arg8: memref<128x128xbf16, #tpu.memory_space<vmem>>, %arg9: memref<128x128xbf16, #tpu.memory_space<vmem>>, %arg10: memref<128x128xbf16, #tpu.memory_space<vmem>>, %arg11: memref<1x128xf32, #tpu.memory_space<vmem>>, %arg12: memref<128x128xbf16, #tpu.memory_space<vmem>>, %arg13: memref<128x128xbf16, #tpu.memory_space<vmem>>, %arg14: memref<128x128xbf16, #tpu.memory_space<vmem>>, %arg15: memref<1x128xf32, #tpu.memory_space<vmem>>, %arg16: memref<24x128xbf16, #tpu.memory_space<vmem>>, %arg17: memref<24x128xbf16, #tpu.memory_space<vmem>>, %arg18: memref<1x8x128xf32, #tpu.memory_space<vmem>>) attributes {dimension_semantics = [#tpu.dimension_semantics<parallel>], iteration_bounds = array<i64: 1>, scalar_prefetch = 0 : i64, scratch_operands = 0 : i64, tpu.core_type = #tpu.core_type<tc>, window_params = [{transform_indices = @transform_0, window_bounds = array<i64: 24, 128>}, {transform_indices = @transform_1, window_bounds = array<i64: 24, 128>}, {transform_indices = @transform_2, window_bounds = array<i64: 24, 128>}, {transform_indices = @transform_3, window_bounds = array<i64: 24, 1>}, {transform_indices = @transform_4, window_bounds = array<i64: 24, 1>}, {pipeline_mode = #tpu.pipeline_mode<synchronous>, transform_indices = @transform_5, window_bounds = array<i64: 8, 128>}, {pipeline_mode = #tpu.pipeline_mode<synchronous>, transform_indices = @transform_6, window_bounds = array<i64: 8, 128>}, {pipeline_mode = #tpu.pipeline_mode<synchronous>, transform_indices = @transform_7, window_bounds = array<i64: 128, 128>}, {pipeline_mode = #tpu.pipeline_mode<synchronous>, transform_indices = @transform_8, window_bounds = array<i64: 128, 128>}, {pipeline_mode = #tpu.pipeline_mode<synchronous>, transform_indices = @transform_9, window_bounds = array<i64: 128, 128>}, {pipeline_mode = #tpu.pipeline_mode<synchronous>, transform_indices = @transform_10, window_bounds = array<i64: 1, 128>}, {pipeline_mode = #tpu.pipeline_mode<synchronous>, transform_indices = @transform_11, window_bounds = array<i64: 128, 128>}, {pipeline_mode = #tpu.pipeline_mode<synchronous>, transform_indices = @transform_12, window_bounds = array<i64: 128, 128>}, {pipeline_mode = #tpu.pipeline_mode<synchronous>, transform_indices = @transform_13, window_bounds = array<i64: 128, 128>}, {pipeline_mode = #tpu.pipeline_mode<synchronous>, transform_indices = @transform_14, window_bounds = array<i64: 1, 128>}, {transform_indices = @transform_15, window_bounds = array<i64: 24, 128>}, {transform_indices = @transform_16, window_bounds = array<i64: 24, 128>}, {transform_indices = @transform_17, window_bounds = array<i64: 1, 8, 128>}]} {
    %c0 = arith.constant 0 : index
    %c0_0 = arith.constant 0 : index
    %0 = vector.load %arg1[%c0, %c0_0] : memref<24x128xbf16, #tpu.memory_space<vmem>>, vector<24x128xbf16>
    %c0_1 = arith.constant 0 : index
    %c0_2 = arith.constant 0 : index
    %1 = vector.load %arg2[%c0_1, %c0_2] : memref<24x128xbf16, #tpu.memory_space<vmem>>, vector<24x128xbf16>
    %2 = tpu.iota {dimensions = array<i32: 1>} : vector<24x8xi32>
    %c0_3 = arith.constant 0 : index
    %c0_4 = arith.constant 0 : index
    %3 = vector.load %arg4[%c0_3, %c0_4] : memref<24x1xi32, #tpu.memory_space<vmem>>, vector<24x1xi32>
    %4 = vector.broadcast %3 : vector<24x1xi32> to vector<24x8xi32>
    %5 = arith.cmpi eq, %4, %2 : vector<24x8xi32>
    %6 = arith.extui %5 : vector<24x8xi1> to vector<24x8xi32>
    %7 = arith.sitofp %6 : vector<24x8xi32> to vector<24x8xf32>
    %8 = arith.truncf %7 : vector<24x8xf32> to vector<24x8xbf16>
    %c0_5 = arith.constant 0 : index
    %c0_6 = arith.constant 0 : index
    %9 = vector.load %arg5[%c0_5, %c0_6] : memref<24x1xi32, #tpu.memory_space<vmem>>, vector<24x1xi32>
    %10 = vector.broadcast %9 : vector<24x1xi32> to vector<24x8xi32>
    %11 = arith.cmpi eq, %10, %2 : vector<24x8xi32>
    %12 = arith.extui %11 : vector<24x8xi1> to vector<24x8xi32>
    %13 = arith.sitofp %12 : vector<24x8xi32> to vector<24x8xf32>
    %14 = arith.truncf %13 : vector<24x8xf32> to vector<24x8xbf16>
    %c0_7 = arith.constant 0 : index
    %c0_8 = arith.constant 0 : index
    %15 = vector.load %arg8[%c0_7, %c0_8] : memref<128x128xbf16, #tpu.memory_space<vmem>>, vector<128x128xbf16>
    %cst = arith.constant dense<0.000000e+00> : vector<24x128xf32>
    %16 = tpu.matmul %0, %15, %cst {dimension_numbers = #tpu.dot_dimension_numbers<[1], [0], [0], [1], [0, 0, 1, 1], [], []>} : vector<24x128xbf16>, vector<128x128xbf16>, vector<24x128xf32> -> vector<24x128xf32>
    %c0_9 = arith.constant 0 : index
    %c0_10 = arith.constant 0 : index
    %17 = vector.load %arg9[%c0_9, %c0_10] : memref<128x128xbf16, #tpu.memory_space<vmem>>, vector<128x128xbf16>
    %cst_11 = arith.constant dense<0.000000e+00> : vector<24x128xf32>
    %18 = tpu.matmul %1, %17, %cst_11 {dimension_numbers = #tpu.dot_dimension_numbers<[1], [0], [0], [1], [0, 0, 1, 1], [], []>} : vector<24x128xbf16>, vector<128x128xbf16>, vector<24x128xf32> -> vector<24x128xf32>
    %19 = arith.addf %16, %18 : vector<24x128xf32>
    %c0_12 = arith.constant 0 : index
    %c0_13 = arith.constant 0 : index
    %20 = vector.load %arg3[%c0_12, %c0_13] : memref<24x128xbf16, #tpu.memory_space<vmem>>, vector<24x128xbf16>
    %c0_14 = arith.constant 0 : index
    %c0_15 = arith.constant 0 : index
    %21 = vector.load %arg10[%c0_14, %c0_15] : memref<128x128xbf16, #tpu.memory_space<vmem>>, vector<128x128xbf16>
    %cst_16 = arith.constant dense<0.000000e+00> : vector<24x128xf32>
    %22 = tpu.matmul %20, %21, %cst_16 {dimension_numbers = #tpu.dot_dimension_numbers<[1], [0], [0], [1], [0, 0, 1, 1], [], []>} : vector<24x128xbf16>, vector<128x128xbf16>, vector<24x128xf32> -> vector<24x128xf32>
    %23 = arith.addf %19, %22 : vector<24x128xf32>
    %c0_17 = arith.constant 0 : index
    %c0_18 = arith.constant 0 : index
    %24 = vector.load %arg6[%c0_17, %c0_18] : memref<8x128xbf16, #tpu.memory_space<vmem>>, vector<8x128xbf16>
    %cst_19 = arith.constant dense<0.000000e+00> : vector<24x128xf32>
    %25 = tpu.matmul %8, %24, %cst_19 {dimension_numbers = #tpu.dot_dimension_numbers<[1], [0], [0], [1], [0, 0, 1, 1], [], []>} : vector<24x8xbf16>, vector<8x128xbf16>, vector<24x128xf32> -> vector<24x128xf32>
    %26 = arith.addf %23, %25 : vector<24x128xf32>
    %c0_20 = arith.constant 0 : index
    %c0_21 = arith.constant 0 : index
    %27 = vector.load %arg11[%c0_20, %c0_21] : memref<1x128xf32, #tpu.memory_space<vmem>>, vector<1x128xf32>
    %28 = vector.broadcast %27 : vector<1x128xf32> to vector<24x128xf32>
    %29 = arith.addf %26, %28 : vector<24x128xf32>
    %cst_22 = arith.constant 0.000000e+00 : f32
    %30 = vector.broadcast %cst_22 : f32 to vector<24x128xf32>
    %31 = arith.maximumf %29, %30 : vector<24x128xf32>
    %32 = arith.truncf %31 : vector<24x128xf32> to vector<24x128xbf16>
    %c0_23 = arith.constant 0 : index
    %c0_24 = arith.constant 0 : index
    %33 = vector.load %arg16[%c0_23, %c0_24] : memref<24x128xbf16, #tpu.memory_space<vmem>>, vector<24x128xbf16>
    tpu.vector_store %arg16[%c0_23, %c0_24], %32 {strides = array<i32>} : memref<24x128xbf16, #tpu.memory_space<vmem>>, vector<24x128xbf16>,
    %cst_25 = arith.constant dense<0.000000e+00> : vector<8x128xf32>
    %34 = tpu.matmul %14, %32, %cst_25 {dimension_numbers = #tpu.dot_dimension_numbers<[0], [0], [1], [1], [0, 1, 1, 1], [], []>} : vector<24x8xbf16>, vector<24x128xbf16>, vector<8x128xf32> -> vector<8x128xf32>
    %c0_26 = arith.constant 0 : index
    %c0_27 = arith.constant 0 : index
    %c0_28 = arith.constant 0 : index
    %35 = vector.load %arg18[%c0_26, %c0_27, %c0_28] : memref<1x8x128xf32, #tpu.memory_space<vmem>>, vector<1x8x128xf32>
    %36 = vector.shape_cast %35 : vector<1x8x128xf32> to vector<8x128xf32>
    %37 = vector.shape_cast %34 : vector<8x128xf32> to vector<1x8x128xf32>
    tpu.vector_store %arg18[%c0_26, %c0_27, %c0_28], %37 {strides = array<i32>} : memref<1x8x128xf32, #tpu.memory_space<vmem>>, vector<1x8x128xf32>,
    %c0_29 = arith.constant 0 : index
    %c0_30 = arith.constant 0 : index
    %38 = vector.load %arg12[%c0_29, %c0_30] : memref<128x128xbf16, #tpu.memory_space<vmem>>, vector<128x128xbf16>
    %cst_31 = arith.constant dense<0.000000e+00> : vector<24x128xf32>
    %39 = tpu.matmul %1, %38, %cst_31 {dimension_numbers = #tpu.dot_dimension_numbers<[1], [0], [0], [1], [0, 0, 1, 1], [], []>} : vector<24x128xbf16>, vector<128x128xbf16>, vector<24x128xf32> -> vector<24x128xf32>
    %c0_32 = arith.constant 0 : index
    %c0_33 = arith.constant 0 : index
    %40 = vector.load %arg13[%c0_32, %c0_33] : memref<128x128xbf16, #tpu.memory_space<vmem>>, vector<128x128xbf16>
    %cst_34 = arith.constant dense<0.000000e+00> : vector<24x128xf32>
    %41 = tpu.matmul %0, %40, %cst_34 {dimension_numbers = #tpu.dot_dimension_numbers<[1], [0], [0], [1], [0, 0, 1, 1], [], []>} : vector<24x128xbf16>, vector<128x128xbf16>, vector<24x128xf32> -> vector<24x128xf32>
    %42 = arith.addf %39, %41 : vector<24x128xf32>
    %c0_35 = arith.constant 0 : index
    %c0_36 = arith.constant 0 : index
    %43 = vector.load %arg14[%c0_35, %c0_36] : memref<128x128xbf16, #tpu.memory_space<vmem>>, vector<128x128xbf16>
    %cst_37 = arith.constant dense<0.000000e+00> : vector<24x128xf32>
    %44 = tpu.matmul %32, %43, %cst_37 {dimension_numbers = #tpu.dot_dimension_numbers<[1], [0], [0], [1], [0, 0, 1, 1], [], []>} : vector<24x128xbf16>, vector<128x128xbf16>, vector<24x128xf32> -> vector<24x128xf32>
    %45 = arith.addf %42, %44 : vector<24x128xf32>
    %c0_38 = arith.constant 0 : index
    %c0_39 = arith.constant 0 : index
    %46 = vector.load %arg7[%c0_38, %c0_39] : memref<8x128xbf16, #tpu.memory_space<vmem>>, vector<8x128xbf16>
    %cst_40 = arith.constant dense<0.000000e+00> : vector<24x128xf32>
    %47 = tpu.matmul %14, %46, %cst_40 {dimension_numbers = #tpu.dot_dimension_numbers<[1], [0], [0], [1], [0, 0, 1, 1], [], []>} : vector<24x8xbf16>, vector<8x128xbf16>, vector<24x128xf32> -> vector<24x128xf32>
    %48 = arith.addf %45, %47 : vector<24x128xf32>
    %c0_41 = arith.constant 0 : index
    %c0_42 = arith.constant 0 : index
    %49 = vector.load %arg15[%c0_41, %c0_42] : memref<1x128xf32, #tpu.memory_space<vmem>>, vector<1x128xf32>
    %50 = vector.broadcast %49 : vector<1x128xf32> to vector<24x128xf32>
    %51 = arith.addf %48, %50 : vector<24x128xf32>
    %cst_43 = arith.constant 0.000000e+00 : f32
    %52 = vector.broadcast %cst_43 : f32 to vector<24x128xf32>
    %53 = arith.maximumf %51, %52 : vector<24x128xf32>
    %54 = arith.truncf %53 : vector<24x128xf32> to vector<24x128xbf16>
    %c0_44 = arith.constant 0 : index
    %c0_45 = arith.constant 0 : index
    %55 = vector.load %arg17[%c0_44, %c0_45] : memref<24x128xbf16, #tpu.memory_space<vmem>>, vector<24x128xbf16>
    tpu.vector_store %arg17[%c0_44, %c0_45], %54 {strides = array<i32>} : memref<24x128xbf16, #tpu.memory_space<vmem>>, vector<24x128xbf16>,
    return
  }
  func.func @transform_0(%arg0: i32) -> (i32, i32) {
    %c0_i32 = arith.constant 0 : i32
    %c0_i32_0 = arith.constant 0 : i32
    return %arg0, %c0_i32 : i32, i32
  }
  func.func @transform_1(%arg0: i32) -> (i32, i32) {
    %c0_i32 = arith.constant 0 : i32
    %c0_i32_0 = arith.constant 0 : i32
    return %arg0, %c0_i32 : i32, i32
  }
  func.func @transform_2(%arg0: i32) -> (i32, i32) {
    %c0_i32 = arith.constant 0 : i32
    %c0_i32_0 = arith.constant 0 : i32
    return %arg0, %c0_i32 : i32, i32
  }
  func.func @transform_3(%arg0: i32) -> (i32, i32) {
    %c0_i32 = arith.constant 0 : i32
    %c0_i32_0 = arith.constant 0 : i32
    return %arg0, %c0_i32 : i32, i32
  }
  func.func @transform_4(%arg0: i32) -> (i32, i32) {
    %c0_i32 = arith.constant 0 : i32
    %c0_i32_0 = arith.constant 0 : i32
    return %arg0, %c0_i32 : i32, i32
  }
  func.func @transform_5(%arg0: i32) -> (i32, i32) {
    %c0_i32 = arith.constant 0 : i32
    %c0_i32_0 = arith.constant 0 : i32
    %c0_i32_1 = arith.constant 0 : i32
    return %c0_i32, %c0_i32_0 : i32, i32
  }
  func.func @transform_6(%arg0: i32) -> (i32, i32) {
    %c0_i32 = arith.constant 0 : i32
    %c0_i32_0 = arith.constant 0 : i32
    %c0_i32_1 = arith.constant 0 : i32
    return %c0_i32, %c0_i32_0 : i32, i32
  }
  func.func @transform_7(%arg0: i32) -> (i32, i32) {
    %c0_i32 = arith.constant 0 : i32
    %c0_i32_0 = arith.constant 0 : i32
    %c0_i32_1 = arith.constant 0 : i32
    return %c0_i32, %c0_i32_0 : i32, i32
  }
  func.func @transform_8(%arg0: i32) -> (i32, i32) {
    %c0_i32 = arith.constant 0 : i32
    %c0_i32_0 = arith.constant 0 : i32
    %c0_i32_1 = arith.constant 0 : i32
    return %c0_i32, %c0_i32_0 : i32, i32
  }
  func.func @transform_9(%arg0: i32) -> (i32, i32) {
    %c0_i32 = arith.constant 0 : i32
    %c0_i32_0 = arith.constant 0 : i32
    %c0_i32_1 = arith.constant 0 : i32
    return %c0_i32, %c0_i32_0 : i32, i32
  }
  func.func @transform_10(%arg0: i32) -> (i32, i32) {
    %c0_i32 = arith.constant 0 : i32
    %c0_i32_0 = arith.constant 0 : i32
    %c0_i32_1 = arith.constant 0 : i32
    return %c0_i32, %c0_i32_0 : i32, i32
  }
  func.func @transform_11(%arg0: i32) -> (i32, i32) {
    %c0_i32 = arith.constant 0 : i32
    %c0_i32_0 = arith.constant 0 : i32
    %c0_i32_1 = arith.constant 0 : i32
    return %c0_i32, %c0_i32_0 : i32, i32
  }
  func.func @transform_12(%arg0: i32) -> (i32, i32) {
    %c0_i32 = arith.constant 0 : i32
    %c0_i32_0 = arith.constant 0 : i32
    %c0_i32_1 = arith.constant 0 : i32
    return %c0_i32, %c0_i32_0 : i32, i32
  }
  func.func @transform_13(%arg0: i32) -> (i32, i32) {
    %c0_i32 = arith.constant 0 : i32
    %c0_i32_0 = arith.constant 0 : i32
    %c0_i32_1 = arith.constant 0 : i32
    return %c0_i32, %c0_i32_0 : i32, i32
  }
  func.func @transform_14(%arg0: i32) -> (i32, i32) {
    %c0_i32 = arith.constant 0 : i32
    %c0_i32_0 = arith.constant 0 : i32
    %c0_i32_1 = arith.constant 0 : i32
    return %c0_i32, %c0_i32_0 : i32, i32
  }
  func.func @transform_15(%arg0: i32) -> (i32, i32) {
    %c0_i32 = arith.constant 0 : i32
    %c0_i32_0 = arith.constant 0 : i32
    return %arg0, %c0_i32 : i32, i32
  }
  func.func @transform_16(%arg0: i32) -> (i32, i32) {
    %c0_i32 = arith.constant 0 : i32
    %c0_i32_0 = arith.constant 0 : i32
    return %arg0, %c0_i32 : i32, i32
  }
  func.func @transform_17(%arg0: i32) -> (i32, i32, i32) {
    %c0_i32 = arith.constant 0 : i32
    %c0_i32_0 = arith.constant 0 : i32
    %c0_i32_1 = arith.constant 0 : i32
    return %arg0, %c0_i32, %c0_i32_0 : i32, i32, i32
  }
}

module attributes {stable_mosaic.version = 11 : i64} {
  func.func @_node_path_kernel(%arg0: i32, %arg1: i32, %arg2: memref<1xi32, #tpu.memory_space<smem>>, %arg3: memref<1xi32, #tpu.memory_space<smem>>, %arg4: memref<1x24xi32, #tpu.memory_space<vmem>>, %arg5: memref<24x128xbf16, #tpu.memory_space<vmem>>, %arg6: memref<16x128xbf16, #tpu.memory_space<vmem>>, %arg7: memref<16x1xi32, #tpu.memory_space<vmem>>, %arg8: memref<8x128xbf16, #tpu.memory_space<vmem>>, %arg9: memref<128x128xbf16, #tpu.memory_space<vmem>>, %arg10: memref<128x128xbf16, #tpu.memory_space<vmem>>, %arg11: memref<1x128xf32, #tpu.memory_space<vmem>>, %arg12: memref<16x128xbf16, #tpu.memory_space<vmem>>, %arg13: memref<1x8x128xf32, #tpu.memory_space<vmem>>, %arg14: memref<16x128xf32, #tpu.memory_space<vmem>>) attributes {dimension_semantics = [#tpu.dimension_semantics<parallel>, #tpu.dimension_semantics<arbitrary>], iteration_bounds = array<i64: 1, 1>, scalar_prefetch = 2 : i64, scratch_operands = 1 : i64, tpu.core_type = #tpu.core_type<tc>, window_params = [{transform_indices = @transform_0, window_bounds = array<i64: 1, 24>}, {transform_indices = @transform_1, window_bounds = array<i64: 24, 128>}, {transform_indices = @transform_2, window_bounds = array<i64: 16, 128>}, {transform_indices = @transform_3, window_bounds = array<i64: 16, 1>}, {pipeline_mode = #tpu.pipeline_mode<synchronous>, transform_indices = @transform_4, window_bounds = array<i64: 8, 128>}, {pipeline_mode = #tpu.pipeline_mode<synchronous>, transform_indices = @transform_5, window_bounds = array<i64: 128, 128>}, {pipeline_mode = #tpu.pipeline_mode<synchronous>, transform_indices = @transform_6, window_bounds = array<i64: 128, 128>}, {pipeline_mode = #tpu.pipeline_mode<synchronous>, transform_indices = @transform_7, window_bounds = array<i64: 1, 128>}, {transform_indices = @transform_8, window_bounds = array<i64: 16, 128>}, {transform_indices = @transform_9, window_bounds = array<i64: 1, 8, 128>}]} {
    %c0_i32 = arith.constant 0 : i32
    %0 = arith.cmpi eq, %arg1, %c0_i32 : i32
    %1 = arith.extui %0 : i1 to i32
    %c0_i32_0 = arith.constant 0 : i32
    %2 = arith.cmpi ne, %1, %c0_i32_0 : i32
    scf.if %2 {
      %cst = arith.constant 0.000000e+00 : f32
      %11 = vector.broadcast %cst : f32 to vector<16x128xf32>
      %c0 = arith.constant 0 : index
      %c0_4 = arith.constant 0 : index
      %12 = vector.load %arg14[%c0, %c0_4] : memref<16x128xf32, #tpu.memory_space<vmem>>, vector<16x128xf32>
      tpu.vector_store %arg14[%c0, %c0_4], %11 {strides = array<i32>} : memref<16x128xf32, #tpu.memory_space<vmem>>, vector<16x128xf32>,
    } else {
    }
    %3 = arith.index_cast %arg0 : i32 to index
    %4 = memref.load %arg3[%3] : memref<1xi32, #tpu.memory_space<smem>>
    %5 = arith.cmpi slt, %arg1, %4 : i32
    %6 = arith.extui %5 : i1 to i32
    %c0_i32_1 = arith.constant 0 : i32
    %7 = arith.cmpi ne, %6, %c0_i32_1 : i32
    scf.if %7 {
      %c16_i32 = arith.constant 16 : i32
      %11 = arith.muli %arg0, %c16_i32 : i32
      %12 = tpu.iota {dimensions = array<i32: 0>} : vector<16x24xi32>
      %13 = vector.broadcast %11 : i32 to vector<16x24xi32>
      %14 = arith.addi %13, %12 : vector<16x24xi32>
      %c0 = arith.constant 0 : index
      %c0_4 = arith.constant 0 : index
      %15 = vector.load %arg4[%c0, %c0_4] : memref<1x24xi32, #tpu.memory_space<vmem>>, vector<1x24xi32>
      %16 = vector.broadcast %15 : vector<1x24xi32> to vector<16x24xi32>
      %17 = arith.cmpi eq, %14, %16 : vector<16x24xi32>
      %18 = arith.extui %17 : vector<16x24xi1> to vector<16x24xi32>
      %19 = arith.sitofp %18 : vector<16x24xi32> to vector<16x24xf32>
      %20 = arith.truncf %19 : vector<16x24xf32> to vector<16x24xbf16>
      %c0_5 = arith.constant 0 : index
      %c0_6 = arith.constant 0 : index
      %21 = vector.load %arg14[%c0_5, %c0_6] : memref<16x128xf32, #tpu.memory_space<vmem>>, vector<16x128xf32>
      %c0_7 = arith.constant 0 : index
      %c0_8 = arith.constant 0 : index
      %22 = vector.load %arg5[%c0_7, %c0_8] : memref<24x128xbf16, #tpu.memory_space<vmem>>, vector<24x128xbf16>
      %cst = arith.constant dense<0.000000e+00> : vector<16x128xf32>
      %23 = tpu.matmul %20, %22, %cst {dimension_numbers = #tpu.dot_dimension_numbers<[1], [0], [0], [1], [0, 0, 1, 1], [], []>} : vector<16x24xbf16>, vector<24x128xbf16>, vector<16x128xf32> -> vector<16x128xf32>
      %24 = arith.addf %21, %23 : vector<16x128xf32>
      %c0_9 = arith.constant 0 : index
      %c0_10 = arith.constant 0 : index
      %25 = vector.load %arg14[%c0_9, %c0_10] : memref<16x128xf32, #tpu.memory_space<vmem>>, vector<16x128xf32>
      tpu.vector_store %arg14[%c0_9, %c0_10], %24 {strides = array<i32>} : memref<16x128xf32, #tpu.memory_space<vmem>>, vector<16x128xf32>,
    } else {
    }
    %c0_i32_2 = arith.constant 0 : i32
    %8 = arith.cmpi eq, %arg1, %c0_i32_2 : i32
    %9 = arith.extui %8 : i1 to i32
    %c0_i32_3 = arith.constant 0 : i32
    %10 = arith.cmpi ne, %9, %c0_i32_3 : i32
    scf.if %10 {
      %11 = tpu.iota {dimensions = array<i32: 1>} : vector<16x8xi32>
      %c0 = arith.constant 0 : index
      %c0_4 = arith.constant 0 : index
      %12 = vector.load %arg7[%c0, %c0_4] : memref<16x1xi32, #tpu.memory_space<vmem>>, vector<16x1xi32>
      %13 = vector.broadcast %12 : vector<16x1xi32> to vector<16x8xi32>
      %14 = arith.cmpi eq, %13, %11 : vector<16x8xi32>
      %15 = arith.extui %14 : vector<16x8xi1> to vector<16x8xi32>
      %16 = arith.sitofp %15 : vector<16x8xi32> to vector<16x8xf32>
      %17 = arith.truncf %16 : vector<16x8xf32> to vector<16x8xbf16>
      %c0_5 = arith.constant 0 : index
      %c0_6 = arith.constant 0 : index
      %18 = vector.load %arg6[%c0_5, %c0_6] : memref<16x128xbf16, #tpu.memory_space<vmem>>, vector<16x128xbf16>
      %c0_7 = arith.constant 0 : index
      %c0_8 = arith.constant 0 : index
      %19 = vector.load %arg9[%c0_7, %c0_8] : memref<128x128xbf16, #tpu.memory_space<vmem>>, vector<128x128xbf16>
      %cst = arith.constant dense<0.000000e+00> : vector<16x128xf32>
      %20 = tpu.matmul %18, %19, %cst {dimension_numbers = #tpu.dot_dimension_numbers<[1], [0], [0], [1], [0, 0, 1, 1], [], []>} : vector<16x128xbf16>, vector<128x128xbf16>, vector<16x128xf32> -> vector<16x128xf32>
      %c0_9 = arith.constant 0 : index
      %c0_10 = arith.constant 0 : index
      %21 = vector.load %arg14[%c0_9, %c0_10] : memref<16x128xf32, #tpu.memory_space<vmem>>, vector<16x128xf32>
      %22 = arith.truncf %21 : vector<16x128xf32> to vector<16x128xbf16>
      %c0_11 = arith.constant 0 : index
      %c0_12 = arith.constant 0 : index
      %23 = vector.load %arg10[%c0_11, %c0_12] : memref<128x128xbf16, #tpu.memory_space<vmem>>, vector<128x128xbf16>
      %cst_13 = arith.constant dense<0.000000e+00> : vector<16x128xf32>
      %24 = tpu.matmul %22, %23, %cst_13 {dimension_numbers = #tpu.dot_dimension_numbers<[1], [0], [0], [1], [0, 0, 1, 1], [], []>} : vector<16x128xbf16>, vector<128x128xbf16>, vector<16x128xf32> -> vector<16x128xf32>
      %25 = arith.addf %20, %24 : vector<16x128xf32>
      %c0_14 = arith.constant 0 : index
      %c0_15 = arith.constant 0 : index
      %26 = vector.load %arg8[%c0_14, %c0_15] : memref<8x128xbf16, #tpu.memory_space<vmem>>, vector<8x128xbf16>
      %cst_16 = arith.constant dense<0.000000e+00> : vector<16x128xf32>
      %27 = tpu.matmul %17, %26, %cst_16 {dimension_numbers = #tpu.dot_dimension_numbers<[1], [0], [0], [1], [0, 0, 1, 1], [], []>} : vector<16x8xbf16>, vector<8x128xbf16>, vector<16x128xf32> -> vector<16x128xf32>
      %28 = arith.addf %25, %27 : vector<16x128xf32>
      %c0_17 = arith.constant 0 : index
      %c0_18 = arith.constant 0 : index
      %29 = vector.load %arg11[%c0_17, %c0_18] : memref<1x128xf32, #tpu.memory_space<vmem>>, vector<1x128xf32>
      %30 = vector.broadcast %29 : vector<1x128xf32> to vector<16x128xf32>
      %31 = arith.addf %28, %30 : vector<16x128xf32>
      %cst_19 = arith.constant 0.000000e+00 : f32
      %32 = vector.broadcast %cst_19 : f32 to vector<16x128xf32>
      %33 = arith.maximumf %31, %32 : vector<16x128xf32>
      %34 = arith.truncf %33 : vector<16x128xf32> to vector<16x128xbf16>
      %c0_20 = arith.constant 0 : index
      %c0_21 = arith.constant 0 : index
      %35 = vector.load %arg12[%c0_20, %c0_21] : memref<16x128xbf16, #tpu.memory_space<vmem>>, vector<16x128xbf16>
      tpu.vector_store %arg12[%c0_20, %c0_21], %34 {strides = array<i32>} : memref<16x128xbf16, #tpu.memory_space<vmem>>, vector<16x128xbf16>,
      %cst_22 = arith.constant dense<0.000000e+00> : vector<8x128xf32>
      %36 = tpu.matmul %17, %34, %cst_22 {dimension_numbers = #tpu.dot_dimension_numbers<[0], [0], [1], [1], [0, 1, 1, 1], [], []>} : vector<16x8xbf16>, vector<16x128xbf16>, vector<8x128xf32> -> vector<8x128xf32>
      %c0_23 = arith.constant 0 : index
      %c0_24 = arith.constant 0 : index
      %c0_25 = arith.constant 0 : index
      %37 = vector.load %arg13[%c0_23, %c0_24, %c0_25] : memref<1x8x128xf32, #tpu.memory_space<vmem>>, vector<1x8x128xf32>
      %38 = vector.shape_cast %37 : vector<1x8x128xf32> to vector<8x128xf32>
      %39 = vector.shape_cast %36 : vector<8x128xf32> to vector<1x8x128xf32>
      tpu.vector_store %arg13[%c0_23, %c0_24, %c0_25], %39 {strides = array<i32>} : memref<1x8x128xf32, #tpu.memory_space<vmem>>, vector<1x8x128xf32>,
    } else {
    }
    return
  }
  func.func @transform_0(%arg0: i32, %arg1: i32, %arg2: memref<1xi32, #tpu.memory_space<smem>>, %arg3: memref<1xi32, #tpu.memory_space<smem>>) -> (i32, i32) {
    %0 = arith.index_cast %arg0 : i32 to index
    %1 = memref.load %arg2[%0] : memref<1xi32, #tpu.memory_space<smem>>
    %2 = arith.index_cast %arg0 : i32 to index
    %3 = memref.load %arg3[%2] : memref<1xi32, #tpu.memory_space<smem>>
    %c1_i32 = arith.constant 1 : i32
    %4 = arith.maxsi %3, %c1_i32 : i32
    %c1_i32_0 = arith.constant 1 : i32
    %5 = arith.subi %4, %c1_i32_0 : i32
    %6 = arith.minsi %arg1, %5 : i32
    %7 = arith.addi %1, %6 : i32
    %c0_i32 = arith.constant 0 : i32
    %c0_i32_1 = arith.constant 0 : i32
    return %c0_i32, %7 : i32, i32
  }
  func.func @transform_1(%arg0: i32, %arg1: i32, %arg2: memref<1xi32, #tpu.memory_space<smem>>, %arg3: memref<1xi32, #tpu.memory_space<smem>>) -> (i32, i32) {
    %0 = arith.index_cast %arg0 : i32 to index
    %1 = memref.load %arg2[%0] : memref<1xi32, #tpu.memory_space<smem>>
    %2 = arith.index_cast %arg0 : i32 to index
    %3 = memref.load %arg3[%2] : memref<1xi32, #tpu.memory_space<smem>>
    %c1_i32 = arith.constant 1 : i32
    %4 = arith.maxsi %3, %c1_i32 : i32
    %c1_i32_0 = arith.constant 1 : i32
    %5 = arith.subi %4, %c1_i32_0 : i32
    %6 = arith.minsi %arg1, %5 : i32
    %7 = arith.addi %1, %6 : i32
    %c0_i32 = arith.constant 0 : i32
    %c0_i32_1 = arith.constant 0 : i32
    return %7, %c0_i32 : i32, i32
  }
  func.func @transform_2(%arg0: i32, %arg1: i32, %arg2: memref<1xi32, #tpu.memory_space<smem>>, %arg3: memref<1xi32, #tpu.memory_space<smem>>) -> (i32, i32) {
    %c0_i32 = arith.constant 0 : i32
    %c0_i32_0 = arith.constant 0 : i32
    return %arg0, %c0_i32 : i32, i32
  }
  func.func @transform_3(%arg0: i32, %arg1: i32, %arg2: memref<1xi32, #tpu.memory_space<smem>>, %arg3: memref<1xi32, #tpu.memory_space<smem>>) -> (i32, i32) {
    %c0_i32 = arith.constant 0 : i32
    %c0_i32_0 = arith.constant 0 : i32
    return %arg0, %c0_i32 : i32, i32
  }
  func.func @transform_4(%arg0: i32, %arg1: i32, %arg2: memref<1xi32, #tpu.memory_space<smem>>, %arg3: memref<1xi32, #tpu.memory_space<smem>>) -> (i32, i32) {
    %c0_i32 = arith.constant 0 : i32
    %c0_i32_0 = arith.constant 0 : i32
    %c0_i32_1 = arith.constant 0 : i32
    return %c0_i32, %c0_i32_0 : i32, i32
  }
  func.func @transform_5(%arg0: i32, %arg1: i32, %arg2: memref<1xi32, #tpu.memory_space<smem>>, %arg3: memref<1xi32, #tpu.memory_space<smem>>) -> (i32, i32) {
    %c0_i32 = arith.constant 0 : i32
    %c0_i32_0 = arith.constant 0 : i32
    %c0_i32_1 = arith.constant 0 : i32
    return %c0_i32, %c0_i32_0 : i32, i32
  }
  func.func @transform_6(%arg0: i32, %arg1: i32, %arg2: memref<1xi32, #tpu.memory_space<smem>>, %arg3: memref<1xi32, #tpu.memory_space<smem>>) -> (i32, i32) {
    %c0_i32 = arith.constant 0 : i32
    %c0_i32_0 = arith.constant 0 : i32
    %c0_i32_1 = arith.constant 0 : i32
    return %c0_i32, %c0_i32_0 : i32, i32
  }
  func.func @transform_7(%arg0: i32, %arg1: i32, %arg2: memref<1xi32, #tpu.memory_space<smem>>, %arg3: memref<1xi32, #tpu.memory_space<smem>>) -> (i32, i32) {
    %c0_i32 = arith.constant 0 : i32
    %c0_i32_0 = arith.constant 0 : i32
    %c0_i32_1 = arith.constant 0 : i32
    return %c0_i32, %c0_i32_0 : i32, i32
  }
  func.func @transform_8(%arg0: i32, %arg1: i32, %arg2: memref<1xi32, #tpu.memory_space<smem>>, %arg3: memref<1xi32, #tpu.memory_space<smem>>) -> (i32, i32) {
    %c0_i32 = arith.constant 0 : i32
    %c0_i32_0 = arith.constant 0 : i32
    return %arg0, %c0_i32 : i32, i32
  }
  func.func @transform_9(%arg0: i32, %arg1: i32, %arg2: memref<1xi32, #tpu.memory_space<smem>>, %arg3: memref<1xi32, #tpu.memory_space<smem>>) -> (i32, i32, i32) {
    %c0_i32 = arith.constant 0 : i32
    %c0_i32_0 = arith.constant 0 : i32
    %c0_i32_1 = arith.constant 0 : i32
    return %arg0, %c0_i32, %c0_i32_0 : i32, i32, i32
  }
}

module attributes {stable_mosaic.version = 11 : i64} {
  func.func @_edge_path_kernel(%arg0: i32, %arg1: memref<24x128xbf16, #tpu.memory_space<vmem>>, %arg2: memref<24x128xbf16, #tpu.memory_space<vmem>>, %arg3: memref<24x128xbf16, #tpu.memory_space<vmem>>, %arg4: memref<24x1xi32, #tpu.memory_space<vmem>>, %arg5: memref<24x1xi32, #tpu.memory_space<vmem>>, %arg6: memref<8x128xbf16, #tpu.memory_space<vmem>>, %arg7: memref<8x128xbf16, #tpu.memory_space<vmem>>, %arg8: memref<128x128xbf16, #tpu.memory_space<vmem>>, %arg9: memref<128x128xbf16, #tpu.memory_space<vmem>>, %arg10: memref<128x128xbf16, #tpu.memory_space<vmem>>, %arg11: memref<1x128xf32, #tpu.memory_space<vmem>>, %arg12: memref<128x128xbf16, #tpu.memory_space<vmem>>, %arg13: memref<128x128xbf16, #tpu.memory_space<vmem>>, %arg14: memref<128x128xbf16, #tpu.memory_space<vmem>>, %arg15: memref<1x128xf32, #tpu.memory_space<vmem>>, %arg16: memref<24x128xbf16, #tpu.memory_space<vmem>>, %arg17: memref<24x128xbf16, #tpu.memory_space<vmem>>, %arg18: memref<1x8x128xf32, #tpu.memory_space<vmem>>) attributes {dimension_semantics = [#tpu.dimension_semantics<parallel>], iteration_bounds = array<i64: 1>, scalar_prefetch = 0 : i64, scratch_operands = 0 : i64, tpu.core_type = #tpu.core_type<tc>, window_params = [{transform_indices = @transform_0, window_bounds = array<i64: 24, 128>}, {transform_indices = @transform_1, window_bounds = array<i64: 24, 128>}, {transform_indices = @transform_2, window_bounds = array<i64: 24, 128>}, {transform_indices = @transform_3, window_bounds = array<i64: 24, 1>}, {transform_indices = @transform_4, window_bounds = array<i64: 24, 1>}, {pipeline_mode = #tpu.pipeline_mode<synchronous>, transform_indices = @transform_5, window_bounds = array<i64: 8, 128>}, {pipeline_mode = #tpu.pipeline_mode<synchronous>, transform_indices = @transform_6, window_bounds = array<i64: 8, 128>}, {pipeline_mode = #tpu.pipeline_mode<synchronous>, transform_indices = @transform_7, window_bounds = array<i64: 128, 128>}, {pipeline_mode = #tpu.pipeline_mode<synchronous>, transform_indices = @transform_8, window_bounds = array<i64: 128, 128>}, {pipeline_mode = #tpu.pipeline_mode<synchronous>, transform_indices = @transform_9, window_bounds = array<i64: 128, 128>}, {pipeline_mode = #tpu.pipeline_mode<synchronous>, transform_indices = @transform_10, window_bounds = array<i64: 1, 128>}, {pipeline_mode = #tpu.pipeline_mode<synchronous>, transform_indices = @transform_11, window_bounds = array<i64: 128, 128>}, {pipeline_mode = #tpu.pipeline_mode<synchronous>, transform_indices = @transform_12, window_bounds = array<i64: 128, 128>}, {pipeline_mode = #tpu.pipeline_mode<synchronous>, transform_indices = @transform_13, window_bounds = array<i64: 128, 128>}, {pipeline_mode = #tpu.pipeline_mode<synchronous>, transform_indices = @transform_14, window_bounds = array<i64: 1, 128>}, {transform_indices = @transform_15, window_bounds = array<i64: 24, 128>}, {transform_indices = @transform_16, window_bounds = array<i64: 24, 128>}, {transform_indices = @transform_17, window_bounds = array<i64: 1, 8, 128>}]} {
    %c0 = arith.constant 0 : index
    %c0_0 = arith.constant 0 : index
    %0 = vector.load %arg1[%c0, %c0_0] : memref<24x128xbf16, #tpu.memory_space<vmem>>, vector<24x128xbf16>
    %c0_1 = arith.constant 0 : index
    %c0_2 = arith.constant 0 : index
    %1 = vector.load %arg2[%c0_1, %c0_2] : memref<24x128xbf16, #tpu.memory_space<vmem>>, vector<24x128xbf16>
    %2 = tpu.iota {dimensions = array<i32: 1>} : vector<24x8xi32>
    %c0_3 = arith.constant 0 : index
    %c0_4 = arith.constant 0 : index
    %3 = vector.load %arg4[%c0_3, %c0_4] : memref<24x1xi32, #tpu.memory_space<vmem>>, vector<24x1xi32>
    %4 = vector.broadcast %3 : vector<24x1xi32> to vector<24x8xi32>
    %5 = arith.cmpi eq, %4, %2 : vector<24x8xi32>
    %6 = arith.extui %5 : vector<24x8xi1> to vector<24x8xi32>
    %7 = arith.sitofp %6 : vector<24x8xi32> to vector<24x8xf32>
    %8 = arith.truncf %7 : vector<24x8xf32> to vector<24x8xbf16>
    %c0_5 = arith.constant 0 : index
    %c0_6 = arith.constant 0 : index
    %9 = vector.load %arg5[%c0_5, %c0_6] : memref<24x1xi32, #tpu.memory_space<vmem>>, vector<24x1xi32>
    %10 = vector.broadcast %9 : vector<24x1xi32> to vector<24x8xi32>
    %11 = arith.cmpi eq, %10, %2 : vector<24x8xi32>
    %12 = arith.extui %11 : vector<24x8xi1> to vector<24x8xi32>
    %13 = arith.sitofp %12 : vector<24x8xi32> to vector<24x8xf32>
    %14 = arith.truncf %13 : vector<24x8xf32> to vector<24x8xbf16>
    %c0_7 = arith.constant 0 : index
    %c0_8 = arith.constant 0 : index
    %15 = vector.load %arg8[%c0_7, %c0_8] : memref<128x128xbf16, #tpu.memory_space<vmem>>, vector<128x128xbf16>
    %cst = arith.constant dense<0.000000e+00> : vector<24x128xf32>
    %16 = tpu.matmul %0, %15, %cst {dimension_numbers = #tpu.dot_dimension_numbers<[1], [0], [0], [1], [0, 0, 1, 1], [], []>} : vector<24x128xbf16>, vector<128x128xbf16>, vector<24x128xf32> -> vector<24x128xf32>
    %c0_9 = arith.constant 0 : index
    %c0_10 = arith.constant 0 : index
    %17 = vector.load %arg9[%c0_9, %c0_10] : memref<128x128xbf16, #tpu.memory_space<vmem>>, vector<128x128xbf16>
    %cst_11 = arith.constant dense<0.000000e+00> : vector<24x128xf32>
    %18 = tpu.matmul %1, %17, %cst_11 {dimension_numbers = #tpu.dot_dimension_numbers<[1], [0], [0], [1], [0, 0, 1, 1], [], []>} : vector<24x128xbf16>, vector<128x128xbf16>, vector<24x128xf32> -> vector<24x128xf32>
    %19 = arith.addf %16, %18 : vector<24x128xf32>
    %c0_12 = arith.constant 0 : index
    %c0_13 = arith.constant 0 : index
    %20 = vector.load %arg3[%c0_12, %c0_13] : memref<24x128xbf16, #tpu.memory_space<vmem>>, vector<24x128xbf16>
    %c0_14 = arith.constant 0 : index
    %c0_15 = arith.constant 0 : index
    %21 = vector.load %arg10[%c0_14, %c0_15] : memref<128x128xbf16, #tpu.memory_space<vmem>>, vector<128x128xbf16>
    %cst_16 = arith.constant dense<0.000000e+00> : vector<24x128xf32>
    %22 = tpu.matmul %20, %21, %cst_16 {dimension_numbers = #tpu.dot_dimension_numbers<[1], [0], [0], [1], [0, 0, 1, 1], [], []>} : vector<24x128xbf16>, vector<128x128xbf16>, vector<24x128xf32> -> vector<24x128xf32>
    %23 = arith.addf %19, %22 : vector<24x128xf32>
    %c0_17 = arith.constant 0 : index
    %c0_18 = arith.constant 0 : index
    %24 = vector.load %arg6[%c0_17, %c0_18] : memref<8x128xbf16, #tpu.memory_space<vmem>>, vector<8x128xbf16>
    %cst_19 = arith.constant dense<0.000000e+00> : vector<24x128xf32>
    %25 = tpu.matmul %8, %24, %cst_19 {dimension_numbers = #tpu.dot_dimension_numbers<[1], [0], [0], [1], [0, 0, 1, 1], [], []>} : vector<24x8xbf16>, vector<8x128xbf16>, vector<24x128xf32> -> vector<24x128xf32>
    %26 = arith.addf %23, %25 : vector<24x128xf32>
    %c0_20 = arith.constant 0 : index
    %c0_21 = arith.constant 0 : index
    %27 = vector.load %arg11[%c0_20, %c0_21] : memref<1x128xf32, #tpu.memory_space<vmem>>, vector<1x128xf32>
    %28 = vector.broadcast %27 : vector<1x128xf32> to vector<24x128xf32>
    %29 = arith.addf %26, %28 : vector<24x128xf32>
    %30 = arith.truncf %29 : vector<24x128xf32> to vector<24x128xbf16>
    %c0_22 = arith.constant 0 : index
    %c0_23 = arith.constant 0 : index
    %31 = vector.load %arg16[%c0_22, %c0_23] : memref<24x128xbf16, #tpu.memory_space<vmem>>, vector<24x128xbf16>
    tpu.vector_store %arg16[%c0_22, %c0_23], %30 {strides = array<i32>} : memref<24x128xbf16, #tpu.memory_space<vmem>>, vector<24x128xbf16>,
    %cst_24 = arith.constant dense<0.000000e+00> : vector<8x128xf32>
    %32 = tpu.matmul %14, %30, %cst_24 {dimension_numbers = #tpu.dot_dimension_numbers<[0], [0], [1], [1], [0, 1, 1, 1], [], []>} : vector<24x8xbf16>, vector<24x128xbf16>, vector<8x128xf32> -> vector<8x128xf32>
    %c0_25 = arith.constant 0 : index
    %c0_26 = arith.constant 0 : index
    %c0_27 = arith.constant 0 : index
    %33 = vector.load %arg18[%c0_25, %c0_26, %c0_27] : memref<1x8x128xf32, #tpu.memory_space<vmem>>, vector<1x8x128xf32>
    %34 = vector.shape_cast %33 : vector<1x8x128xf32> to vector<8x128xf32>
    %35 = vector.shape_cast %32 : vector<8x128xf32> to vector<1x8x128xf32>
    tpu.vector_store %arg18[%c0_25, %c0_26, %c0_27], %35 {strides = array<i32>} : memref<1x8x128xf32, #tpu.memory_space<vmem>>, vector<1x8x128xf32>,
    %c0_28 = arith.constant 0 : index
    %c0_29 = arith.constant 0 : index
    %36 = vector.load %arg12[%c0_28, %c0_29] : memref<128x128xbf16, #tpu.memory_space<vmem>>, vector<128x128xbf16>
    %cst_30 = arith.constant dense<0.000000e+00> : vector<24x128xf32>
    %37 = tpu.matmul %1, %36, %cst_30 {dimension_numbers = #tpu.dot_dimension_numbers<[1], [0], [0], [1], [0, 0, 1, 1], [], []>} : vector<24x128xbf16>, vector<128x128xbf16>, vector<24x128xf32> -> vector<24x128xf32>
    %c0_31 = arith.constant 0 : index
    %c0_32 = arith.constant 0 : index
    %38 = vector.load %arg13[%c0_31, %c0_32] : memref<128x128xbf16, #tpu.memory_space<vmem>>, vector<128x128xbf16>
    %cst_33 = arith.constant dense<0.000000e+00> : vector<24x128xf32>
    %39 = tpu.matmul %0, %38, %cst_33 {dimension_numbers = #tpu.dot_dimension_numbers<[1], [0], [0], [1], [0, 0, 1, 1], [], []>} : vector<24x128xbf16>, vector<128x128xbf16>, vector<24x128xf32> -> vector<24x128xf32>
    %40 = arith.addf %37, %39 : vector<24x128xf32>
    %c0_34 = arith.constant 0 : index
    %c0_35 = arith.constant 0 : index
    %41 = vector.load %arg14[%c0_34, %c0_35] : memref<128x128xbf16, #tpu.memory_space<vmem>>, vector<128x128xbf16>
    %cst_36 = arith.constant dense<0.000000e+00> : vector<24x128xf32>
    %42 = tpu.matmul %30, %41, %cst_36 {dimension_numbers = #tpu.dot_dimension_numbers<[1], [0], [0], [1], [0, 0, 1, 1], [], []>} : vector<24x128xbf16>, vector<128x128xbf16>, vector<24x128xf32> -> vector<24x128xf32>
    %43 = arith.addf %40, %42 : vector<24x128xf32>
    %c0_37 = arith.constant 0 : index
    %c0_38 = arith.constant 0 : index
    %44 = vector.load %arg7[%c0_37, %c0_38] : memref<8x128xbf16, #tpu.memory_space<vmem>>, vector<8x128xbf16>
    %cst_39 = arith.constant dense<0.000000e+00> : vector<24x128xf32>
    %45 = tpu.matmul %14, %44, %cst_39 {dimension_numbers = #tpu.dot_dimension_numbers<[1], [0], [0], [1], [0, 0, 1, 1], [], []>} : vector<24x8xbf16>, vector<8x128xbf16>, vector<24x128xf32> -> vector<24x128xf32>
    %46 = arith.addf %43, %45 : vector<24x128xf32>
    %c0_40 = arith.constant 0 : index
    %c0_41 = arith.constant 0 : index
    %47 = vector.load %arg15[%c0_40, %c0_41] : memref<1x128xf32, #tpu.memory_space<vmem>>, vector<1x128xf32>
    %48 = vector.broadcast %47 : vector<1x128xf32> to vector<24x128xf32>
    %49 = arith.addf %46, %48 : vector<24x128xf32>
    %50 = arith.truncf %49 : vector<24x128xf32> to vector<24x128xbf16>
    %c0_42 = arith.constant 0 : index
    %c0_43 = arith.constant 0 : index
    %51 = vector.load %arg17[%c0_42, %c0_43] : memref<24x128xbf16, #tpu.memory_space<vmem>>, vector<24x128xbf16>
    tpu.vector_store %arg17[%c0_42, %c0_43], %50 {strides = array<i32>} : memref<24x128xbf16, #tpu.memory_space<vmem>>, vector<24x128xbf16>,
    return
  }
  func.func @transform_0(%arg0: i32) -> (i32, i32) {
    %c0_i32 = arith.constant 0 : i32
    %c0_i32_0 = arith.constant 0 : i32
    return %arg0, %c0_i32 : i32, i32
  }
  func.func @transform_1(%arg0: i32) -> (i32, i32) {
    %c0_i32 = arith.constant 0 : i32
    %c0_i32_0 = arith.constant 0 : i32
    return %arg0, %c0_i32 : i32, i32
  }
  func.func @transform_2(%arg0: i32) -> (i32, i32) {
    %c0_i32 = arith.constant 0 : i32
    %c0_i32_0 = arith.constant 0 : i32
    return %arg0, %c0_i32 : i32, i32
  }
  func.func @transform_3(%arg0: i32) -> (i32, i32) {
    %c0_i32 = arith.constant 0 : i32
    %c0_i32_0 = arith.constant 0 : i32
    return %arg0, %c0_i32 : i32, i32
  }
  func.func @transform_4(%arg0: i32) -> (i32, i32) {
    %c0_i32 = arith.constant 0 : i32
    %c0_i32_0 = arith.constant 0 : i32
    return %arg0, %c0_i32 : i32, i32
  }
  func.func @transform_5(%arg0: i32) -> (i32, i32) {
    %c0_i32 = arith.constant 0 : i32
    %c0_i32_0 = arith.constant 0 : i32
    %c0_i32_1 = arith.constant 0 : i32
    return %c0_i32, %c0_i32_0 : i32, i32
  }
  func.func @transform_6(%arg0: i32) -> (i32, i32) {
    %c0_i32 = arith.constant 0 : i32
    %c0_i32_0 = arith.constant 0 : i32
    %c0_i32_1 = arith.constant 0 : i32
    return %c0_i32, %c0_i32_0 : i32, i32
  }
  func.func @transform_7(%arg0: i32) -> (i32, i32) {
    %c0_i32 = arith.constant 0 : i32
    %c0_i32_0 = arith.constant 0 : i32
    %c0_i32_1 = arith.constant 0 : i32
    return %c0_i32, %c0_i32_0 : i32, i32
  }
  func.func @transform_8(%arg0: i32) -> (i32, i32) {
    %c0_i32 = arith.constant 0 : i32
    %c0_i32_0 = arith.constant 0 : i32
    %c0_i32_1 = arith.constant 0 : i32
    return %c0_i32, %c0_i32_0 : i32, i32
  }
  func.func @transform_9(%arg0: i32) -> (i32, i32) {
    %c0_i32 = arith.constant 0 : i32
    %c0_i32_0 = arith.constant 0 : i32
    %c0_i32_1 = arith.constant 0 : i32
    return %c0_i32, %c0_i32_0 : i32, i32
  }
  func.func @transform_10(%arg0: i32) -> (i32, i32) {
    %c0_i32 = arith.constant 0 : i32
    %c0_i32_0 = arith.constant 0 : i32
    %c0_i32_1 = arith.constant 0 : i32
    return %c0_i32, %c0_i32_0 : i32, i32
  }
  func.func @transform_11(%arg0: i32) -> (i32, i32) {
    %c0_i32 = arith.constant 0 : i32
    %c0_i32_0 = arith.constant 0 : i32
    %c0_i32_1 = arith.constant 0 : i32
    return %c0_i32, %c0_i32_0 : i32, i32
  }
  func.func @transform_12(%arg0: i32) -> (i32, i32) {
    %c0_i32 = arith.constant 0 : i32
    %c0_i32_0 = arith.constant 0 : i32
    %c0_i32_1 = arith.constant 0 : i32
    return %c0_i32, %c0_i32_0 : i32, i32
  }
  func.func @transform_13(%arg0: i32) -> (i32, i32) {
    %c0_i32 = arith.constant 0 : i32
    %c0_i32_0 = arith.constant 0 : i32
    %c0_i32_1 = arith.constant 0 : i32
    return %c0_i32, %c0_i32_0 : i32, i32
  }
  func.func @transform_14(%arg0: i32) -> (i32, i32) {
    %c0_i32 = arith.constant 0 : i32
    %c0_i32_0 = arith.constant 0 : i32
    %c0_i32_1 = arith.constant 0 : i32
    return %c0_i32, %c0_i32_0 : i32, i32
  }
  func.func @transform_15(%arg0: i32) -> (i32, i32) {
    %c0_i32 = arith.constant 0 : i32
    %c0_i32_0 = arith.constant 0 : i32
    return %arg0, %c0_i32 : i32, i32
  }
  func.func @transform_16(%arg0: i32) -> (i32, i32) {
    %c0_i32 = arith.constant 0 : i32
    %c0_i32_0 = arith.constant 0 : i32
    return %arg0, %c0_i32 : i32, i32
  }
  func.func @transform_17(%arg0: i32) -> (i32, i32, i32) {
    %c0_i32 = arith.constant 0 : i32
    %c0_i32_0 = arith.constant 0 : i32
    %c0_i32_1 = arith.constant 0 : i32
    return %arg0, %c0_i32, %c0_i32_0 : i32, i32, i32
  }
}

module attributes {stable_mosaic.version = 11 : i64} {
  func.func @_node_path_kernel(%arg0: i32, %arg1: i32, %arg2: memref<1xi32, #tpu.memory_space<smem>>, %arg3: memref<1xi32, #tpu.memory_space<smem>>, %arg4: memref<1x24xi32, #tpu.memory_space<vmem>>, %arg5: memref<24x128xbf16, #tpu.memory_space<vmem>>, %arg6: memref<16x128xbf16, #tpu.memory_space<vmem>>, %arg7: memref<16x1xi32, #tpu.memory_space<vmem>>, %arg8: memref<8x128xbf16, #tpu.memory_space<vmem>>, %arg9: memref<128x128xbf16, #tpu.memory_space<vmem>>, %arg10: memref<128x128xbf16, #tpu.memory_space<vmem>>, %arg11: memref<1x128xf32, #tpu.memory_space<vmem>>, %arg12: memref<16x128xbf16, #tpu.memory_space<vmem>>, %arg13: memref<1x8x128xf32, #tpu.memory_space<vmem>>, %arg14: memref<16x128xf32, #tpu.memory_space<vmem>>) attributes {dimension_semantics = [#tpu.dimension_semantics<parallel>, #tpu.dimension_semantics<arbitrary>], iteration_bounds = array<i64: 1, 1>, scalar_prefetch = 2 : i64, scratch_operands = 1 : i64, tpu.core_type = #tpu.core_type<tc>, window_params = [{transform_indices = @transform_0, window_bounds = array<i64: 1, 24>}, {transform_indices = @transform_1, window_bounds = array<i64: 24, 128>}, {transform_indices = @transform_2, window_bounds = array<i64: 16, 128>}, {transform_indices = @transform_3, window_bounds = array<i64: 16, 1>}, {pipeline_mode = #tpu.pipeline_mode<synchronous>, transform_indices = @transform_4, window_bounds = array<i64: 8, 128>}, {pipeline_mode = #tpu.pipeline_mode<synchronous>, transform_indices = @transform_5, window_bounds = array<i64: 128, 128>}, {pipeline_mode = #tpu.pipeline_mode<synchronous>, transform_indices = @transform_6, window_bounds = array<i64: 128, 128>}, {pipeline_mode = #tpu.pipeline_mode<synchronous>, transform_indices = @transform_7, window_bounds = array<i64: 1, 128>}, {transform_indices = @transform_8, window_bounds = array<i64: 16, 128>}, {transform_indices = @transform_9, window_bounds = array<i64: 1, 8, 128>}]} {
    %c0_i32 = arith.constant 0 : i32
    %0 = arith.cmpi eq, %arg1, %c0_i32 : i32
    %1 = arith.extui %0 : i1 to i32
    %c0_i32_0 = arith.constant 0 : i32
    %2 = arith.cmpi ne, %1, %c0_i32_0 : i32
    scf.if %2 {
      %cst = arith.constant 0.000000e+00 : f32
      %11 = vector.broadcast %cst : f32 to vector<16x128xf32>
      %c0 = arith.constant 0 : index
      %c0_4 = arith.constant 0 : index
      %12 = vector.load %arg14[%c0, %c0_4] : memref<16x128xf32, #tpu.memory_space<vmem>>, vector<16x128xf32>
      tpu.vector_store %arg14[%c0, %c0_4], %11 {strides = array<i32>} : memref<16x128xf32, #tpu.memory_space<vmem>>, vector<16x128xf32>,
    } else {
    }
    %3 = arith.index_cast %arg0 : i32 to index
    %4 = memref.load %arg3[%3] : memref<1xi32, #tpu.memory_space<smem>>
    %5 = arith.cmpi slt, %arg1, %4 : i32
    %6 = arith.extui %5 : i1 to i32
    %c0_i32_1 = arith.constant 0 : i32
    %7 = arith.cmpi ne, %6, %c0_i32_1 : i32
    scf.if %7 {
      %c16_i32 = arith.constant 16 : i32
      %11 = arith.muli %arg0, %c16_i32 : i32
      %12 = tpu.iota {dimensions = array<i32: 0>} : vector<16x24xi32>
      %13 = vector.broadcast %11 : i32 to vector<16x24xi32>
      %14 = arith.addi %13, %12 : vector<16x24xi32>
      %c0 = arith.constant 0 : index
      %c0_4 = arith.constant 0 : index
      %15 = vector.load %arg4[%c0, %c0_4] : memref<1x24xi32, #tpu.memory_space<vmem>>, vector<1x24xi32>
      %16 = vector.broadcast %15 : vector<1x24xi32> to vector<16x24xi32>
      %17 = arith.cmpi eq, %14, %16 : vector<16x24xi32>
      %18 = arith.extui %17 : vector<16x24xi1> to vector<16x24xi32>
      %19 = arith.sitofp %18 : vector<16x24xi32> to vector<16x24xf32>
      %20 = arith.truncf %19 : vector<16x24xf32> to vector<16x24xbf16>
      %c0_5 = arith.constant 0 : index
      %c0_6 = arith.constant 0 : index
      %21 = vector.load %arg14[%c0_5, %c0_6] : memref<16x128xf32, #tpu.memory_space<vmem>>, vector<16x128xf32>
      %c0_7 = arith.constant 0 : index
      %c0_8 = arith.constant 0 : index
      %22 = vector.load %arg5[%c0_7, %c0_8] : memref<24x128xbf16, #tpu.memory_space<vmem>>, vector<24x128xbf16>
      %cst = arith.constant dense<0.000000e+00> : vector<16x128xf32>
      %23 = tpu.matmul %20, %22, %cst {dimension_numbers = #tpu.dot_dimension_numbers<[1], [0], [0], [1], [0, 0, 1, 1], [], []>} : vector<16x24xbf16>, vector<24x128xbf16>, vector<16x128xf32> -> vector<16x128xf32>
      %24 = arith.addf %21, %23 : vector<16x128xf32>
      %c0_9 = arith.constant 0 : index
      %c0_10 = arith.constant 0 : index
      %25 = vector.load %arg14[%c0_9, %c0_10] : memref<16x128xf32, #tpu.memory_space<vmem>>, vector<16x128xf32>
      tpu.vector_store %arg14[%c0_9, %c0_10], %24 {strides = array<i32>} : memref<16x128xf32, #tpu.memory_space<vmem>>, vector<16x128xf32>,
    } else {
    }
    %c0_i32_2 = arith.constant 0 : i32
    %8 = arith.cmpi eq, %arg1, %c0_i32_2 : i32
    %9 = arith.extui %8 : i1 to i32
    %c0_i32_3 = arith.constant 0 : i32
    %10 = arith.cmpi ne, %9, %c0_i32_3 : i32
    scf.if %10 {
      %11 = tpu.iota {dimensions = array<i32: 1>} : vector<16x8xi32>
      %c0 = arith.constant 0 : index
      %c0_4 = arith.constant 0 : index
      %12 = vector.load %arg7[%c0, %c0_4] : memref<16x1xi32, #tpu.memory_space<vmem>>, vector<16x1xi32>
      %13 = vector.broadcast %12 : vector<16x1xi32> to vector<16x8xi32>
      %14 = arith.cmpi eq, %13, %11 : vector<16x8xi32>
      %15 = arith.extui %14 : vector<16x8xi1> to vector<16x8xi32>
      %16 = arith.sitofp %15 : vector<16x8xi32> to vector<16x8xf32>
      %17 = arith.truncf %16 : vector<16x8xf32> to vector<16x8xbf16>
      %c0_5 = arith.constant 0 : index
      %c0_6 = arith.constant 0 : index
      %18 = vector.load %arg6[%c0_5, %c0_6] : memref<16x128xbf16, #tpu.memory_space<vmem>>, vector<16x128xbf16>
      %c0_7 = arith.constant 0 : index
      %c0_8 = arith.constant 0 : index
      %19 = vector.load %arg9[%c0_7, %c0_8] : memref<128x128xbf16, #tpu.memory_space<vmem>>, vector<128x128xbf16>
      %cst = arith.constant dense<0.000000e+00> : vector<16x128xf32>
      %20 = tpu.matmul %18, %19, %cst {dimension_numbers = #tpu.dot_dimension_numbers<[1], [0], [0], [1], [0, 0, 1, 1], [], []>} : vector<16x128xbf16>, vector<128x128xbf16>, vector<16x128xf32> -> vector<16x128xf32>
      %c0_9 = arith.constant 0 : index
      %c0_10 = arith.constant 0 : index
      %21 = vector.load %arg14[%c0_9, %c0_10] : memref<16x128xf32, #tpu.memory_space<vmem>>, vector<16x128xf32>
      %22 = arith.truncf %21 : vector<16x128xf32> to vector<16x128xbf16>
      %c0_11 = arith.constant 0 : index
      %c0_12 = arith.constant 0 : index
      %23 = vector.load %arg10[%c0_11, %c0_12] : memref<128x128xbf16, #tpu.memory_space<vmem>>, vector<128x128xbf16>
      %cst_13 = arith.constant dense<0.000000e+00> : vector<16x128xf32>
      %24 = tpu.matmul %22, %23, %cst_13 {dimension_numbers = #tpu.dot_dimension_numbers<[1], [0], [0], [1], [0, 0, 1, 1], [], []>} : vector<16x128xbf16>, vector<128x128xbf16>, vector<16x128xf32> -> vector<16x128xf32>
      %25 = arith.addf %20, %24 : vector<16x128xf32>
      %c0_14 = arith.constant 0 : index
      %c0_15 = arith.constant 0 : index
      %26 = vector.load %arg8[%c0_14, %c0_15] : memref<8x128xbf16, #tpu.memory_space<vmem>>, vector<8x128xbf16>
      %cst_16 = arith.constant dense<0.000000e+00> : vector<16x128xf32>
      %27 = tpu.matmul %17, %26, %cst_16 {dimension_numbers = #tpu.dot_dimension_numbers<[1], [0], [0], [1], [0, 0, 1, 1], [], []>} : vector<16x8xbf16>, vector<8x128xbf16>, vector<16x128xf32> -> vector<16x128xf32>
      %28 = arith.addf %25, %27 : vector<16x128xf32>
      %c0_17 = arith.constant 0 : index
      %c0_18 = arith.constant 0 : index
      %29 = vector.load %arg11[%c0_17, %c0_18] : memref<1x128xf32, #tpu.memory_space<vmem>>, vector<1x128xf32>
      %30 = vector.broadcast %29 : vector<1x128xf32> to vector<16x128xf32>
      %31 = arith.addf %28, %30 : vector<16x128xf32>
      %32 = arith.truncf %31 : vector<16x128xf32> to vector<16x128xbf16>
      %c0_19 = arith.constant 0 : index
      %c0_20 = arith.constant 0 : index
      %33 = vector.load %arg12[%c0_19, %c0_20] : memref<16x128xbf16, #tpu.memory_space<vmem>>, vector<16x128xbf16>
      tpu.vector_store %arg12[%c0_19, %c0_20], %32 {strides = array<i32>} : memref<16x128xbf16, #tpu.memory_space<vmem>>, vector<16x128xbf16>,
      %cst_21 = arith.constant dense<0.000000e+00> : vector<8x128xf32>
      %34 = tpu.matmul %17, %32, %cst_21 {dimension_numbers = #tpu.dot_dimension_numbers<[0], [0], [1], [1], [0, 1, 1, 1], [], []>} : vector<16x8xbf16>, vector<16x128xbf16>, vector<8x128xf32> -> vector<8x128xf32>
      %c0_22 = arith.constant 0 : index
      %c0_23 = arith.constant 0 : index
      %c0_24 = arith.constant 0 : index
      %35 = vector.load %arg13[%c0_22, %c0_23, %c0_24] : memref<1x8x128xf32, #tpu.memory_space<vmem>>, vector<1x8x128xf32>
      %36 = vector.shape_cast %35 : vector<1x8x128xf32> to vector<8x128xf32>
      %37 = vector.shape_cast %34 : vector<8x128xf32> to vector<1x8x128xf32>
      tpu.vector_store %arg13[%c0_22, %c0_23, %c0_24], %37 {strides = array<i32>} : memref<1x8x128xf32, #tpu.memory_space<vmem>>, vector<1x8x128xf32>,
    } else {
    }
    return
  }
  func.func @transform_0(%arg0: i32, %arg1: i32, %arg2: memref<1xi32, #tpu.memory_space<smem>>, %arg3: memref<1xi32, #tpu.memory_space<smem>>) -> (i32, i32) {
    %0 = arith.index_cast %arg0 : i32 to index
    %1 = memref.load %arg2[%0] : memref<1xi32, #tpu.memory_space<smem>>
    %2 = arith.index_cast %arg0 : i32 to index
    %3 = memref.load %arg3[%2] : memref<1xi32, #tpu.memory_space<smem>>
    %c1_i32 = arith.constant 1 : i32
    %4 = arith.maxsi %3, %c1_i32 : i32
    %c1_i32_0 = arith.constant 1 : i32
    %5 = arith.subi %4, %c1_i32_0 : i32
    %6 = arith.minsi %arg1, %5 : i32
    %7 = arith.addi %1, %6 : i32
    %c0_i32 = arith.constant 0 : i32
    %c0_i32_1 = arith.constant 0 : i32
    return %c0_i32, %7 : i32, i32
  }
  func.func @transform_1(%arg0: i32, %arg1: i32, %arg2: memref<1xi32, #tpu.memory_space<smem>>, %arg3: memref<1xi32, #tpu.memory_space<smem>>) -> (i32, i32) {
    %0 = arith.index_cast %arg0 : i32 to index
    %1 = memref.load %arg2[%0] : memref<1xi32, #tpu.memory_space<smem>>
    %2 = arith.index_cast %arg0 : i32 to index
    %3 = memref.load %arg3[%2] : memref<1xi32, #tpu.memory_space<smem>>
    %c1_i32 = arith.constant 1 : i32
    %4 = arith.maxsi %3, %c1_i32 : i32
    %c1_i32_0 = arith.constant 1 : i32
    %5 = arith.subi %4, %c1_i32_0 : i32
    %6 = arith.minsi %arg1, %5 : i32
    %7 = arith.addi %1, %6 : i32
    %c0_i32 = arith.constant 0 : i32
    %c0_i32_1 = arith.constant 0 : i32
    return %7, %c0_i32 : i32, i32
  }
  func.func @transform_2(%arg0: i32, %arg1: i32, %arg2: memref<1xi32, #tpu.memory_space<smem>>, %arg3: memref<1xi32, #tpu.memory_space<smem>>) -> (i32, i32) {
    %c0_i32 = arith.constant 0 : i32
    %c0_i32_0 = arith.constant 0 : i32
    return %arg0, %c0_i32 : i32, i32
  }
  func.func @transform_3(%arg0: i32, %arg1: i32, %arg2: memref<1xi32, #tpu.memory_space<smem>>, %arg3: memref<1xi32, #tpu.memory_space<smem>>) -> (i32, i32) {
    %c0_i32 = arith.constant 0 : i32
    %c0_i32_0 = arith.constant 0 : i32
    return %arg0, %c0_i32 : i32, i32
  }
  func.func @transform_4(%arg0: i32, %arg1: i32, %arg2: memref<1xi32, #tpu.memory_space<smem>>, %arg3: memref<1xi32, #tpu.memory_space<smem>>) -> (i32, i32) {
    %c0_i32 = arith.constant 0 : i32
    %c0_i32_0 = arith.constant 0 : i32
    %c0_i32_1 = arith.constant 0 : i32
    return %c0_i32, %c0_i32_0 : i32, i32
  }
  func.func @transform_5(%arg0: i32, %arg1: i32, %arg2: memref<1xi32, #tpu.memory_space<smem>>, %arg3: memref<1xi32, #tpu.memory_space<smem>>) -> (i32, i32) {
    %c0_i32 = arith.constant 0 : i32
    %c0_i32_0 = arith.constant 0 : i32
    %c0_i32_1 = arith.constant 0 : i32
    return %c0_i32, %c0_i32_0 : i32, i32
  }
  func.func @transform_6(%arg0: i32, %arg1: i32, %arg2: memref<1xi32, #tpu.memory_space<smem>>, %arg3: memref<1xi32, #tpu.memory_space<smem>>) -> (i32, i32) {
    %c0_i32 = arith.constant 0 : i32
    %c0_i32_0 = arith.constant 0 : i32
    %c0_i32_1 = arith.constant 0 : i32
    return %c0_i32, %c0_i32_0 : i32, i32
  }
  func.func @transform_7(%arg0: i32, %arg1: i32, %arg2: memref<1xi32, #tpu.memory_space<smem>>, %arg3: memref<1xi32, #tpu.memory_space<smem>>) -> (i32, i32) {
    %c0_i32 = arith.constant 0 : i32
    %c0_i32_0 = arith.constant 0 : i32
    %c0_i32_1 = arith.constant 0 : i32
    return %c0_i32, %c0_i32_0 : i32, i32
  }
  func.func @transform_8(%arg0: i32, %arg1: i32, %arg2: memref<1xi32, #tpu.memory_space<smem>>, %arg3: memref<1xi32, #tpu.memory_space<smem>>) -> (i32, i32) {
    %c0_i32 = arith.constant 0 : i32
    %c0_i32_0 = arith.constant 0 : i32
    return %arg0, %c0_i32 : i32, i32
  }
  func.func @transform_9(%arg0: i32, %arg1: i32, %arg2: memref<1xi32, #tpu.memory_space<smem>>, %arg3: memref<1xi32, #tpu.memory_space<smem>>) -> (i32, i32, i32) {
    %c0_i32 = arith.constant 0 : i32
    %c0_i32_0 = arith.constant 0 : i32
    %c0_i32_1 = arith.constant 0 : i32
    return %arg0, %c0_i32, %c0_i32_0 : i32, i32, i32
  }
}

</mosaic_0001>

<llo_original>
// kernel: custom-call
$region0: #{custom-call}
  %s0 = inlined_call_operand.vmem [shape: u32[2], index: 0, kind: output, shape index: {}]

// kernel: mpnn_forward.7
$region0: #{mpnn_forward.7}
  #allocation0 [shape = 'u32[]', space=smem, size = 0x4, offset = 0x4, fixed_abs, tag = 'smem constant byte address 0x4 - core index']
  #allocation1 [shape = 'u32[144,128]{1,0:T(1,128)}', space=vmem, size = 0x12000, scoped, tag = 'internal scratch']
  #allocation2 [shape = 'f32[16,128]{1,0:T(8,128)}', space=vmem, size = 0x2000, scoped, tag = 'scratch operand']
  #allocation3 [shape = 's32[1]{0}', space=sflag, size = 0x4, scoped, tag = 'scoped memory for mpnn_forward.7']
  #allocation4 [shape = 's32[1]{0:T(128)S(6)}', space=smem, size = 0x200, scoped, tag = 'prefetched SMEM operand 0']
  #allocation5 [shape = 's32[1]{0:T(128)S(6)}', space=smem, size = 0x200, scoped, tag = 'prefetched SMEM operand 1']
  %s0 = inlined_call_operand.<no memory space> [shape: s32[1], index: 0, kind: input, shape index: {}]
  %s1 = inlined_call_operand.<no memory space> [shape: s32[1], index: 1, kind: input, shape index: {}]
  %s2 = inlined_call_operand.vmem [shape: s32[1,24], index: 2, kind: input, shape index: {}]
  %s3 = inlined_call_operand.vmem [shape: bf16[24,128], index: 3, kind: input, shape index: {}]
  %s4 = inlined_call_operand.vmem [shape: bf16[16,128], index: 4, kind: input, shape index: {}]
  %s5 = inlined_call_operand.vmem [shape: s32[16,1], index: 5, kind: input, shape index: {}]
  %s6 = inlined_call_operand.vmem [shape: bf16[8,128], index: 6, kind: input, shape index: {}]
  %s7 = inlined_call_operand.vmem [shape: bf16[128,128], index: 7, kind: input, shape index: {}]
  %s8 = inlined_call_operand.vmem [shape: bf16[128,128], index: 8, kind: input, shape index: {}]
  %s9 = inlined_call_operand.vmem [shape: f32[1,128], index: 9, kind: input, shape index: {}]
  %s10 = inlined_call_operand.vmem [shape: bf16[16,128], index: 10, kind: output, shape index: {0}]
  %s11 = inlined_call_operand.vmem [shape: f32[1,8,128], index: 11, kind: output, shape index: {1}]
  %12 = xla_tuple %s10, %s11
  %s13 = sld [smem:[#allocation0]]
  $region62: #{mpnn_forward.7} parent=0
    _
  %s15 = ssub.s32 1, %s13
  %s16 = scalar_select 0, %s15, %s13
  %17 = sst [smem:[#allocation4]] %s0
  %18 = sst [smem:[#allocation5]] %s1
  // Predicated region
  $region2: #{mpnn_forward.7} parent=0 // pred_check
    _
  $region3: #{mpnn_forward.7} parent=0 // pred_check_branch
    %20 = sbr.rel (0) target = $region5
  $region4: #{mpnn_forward.7} parent=0 // pred_region
    %s21 = sld [smem:[#allocation4]]
    %s22 = sld [smem:[#allocation5]]
    %p23 = scmp.gt.s32.totalorder %s22, 1
    %s24 = scalar_select %p23, %s22, 1
    %s25 = ssub.s32 %s24, 1
    %p26 = scmp.lt.s32.totalorder 0, %s25
    %s27 = scalar_select %p26, 0, %s25
    %s28 = sadd.s32 %s21, %s27
    %p29 = scmp.lt.s32.totalorder %s28, 0
    %s30 = scalar_select %p29, %s28, 0
    %s31 = scalar_lea.vmem %s2, %s30
    %s32 = sld [smem:[#allocation4]]
    %s33 = sld [smem:[#allocation5]]
    %p34 = scmp.gt.s32.totalorder %s33, 1
    %s35 = scalar_select %p34, %s33, 1
    %s36 = ssub.s32 %s35, 1
    %p37 = scmp.lt.s32.totalorder 0, %s36
    %s38 = scalar_select %p37, 0, %s36
    %s39 = sadd.s32 %s32, %s38
  $region5: #{mpnn_forward.7} parent=0 // pred_fallthru
    _
  // Predicated region
  $region6: #{mpnn_forward.7} parent=0 // pred_check
    _
  $region7: #{mpnn_forward.7} parent=0 // pred_check_branch
    %41 = sbr.rel (0) target = $region9
  $region8: #{mpnn_forward.7} parent=0 // pred_region
    %s42 = sld [smem:[#allocation4]]
    %s43 = sld [smem:[#allocation5]]
    %p44 = scmp.gt.s32.totalorder %s43, 1
    %s45 = scalar_select %p44, %s43, 1
    %s46 = ssub.s32 %s45, 1
    %p47 = scmp.lt.s32.totalorder 0, %s46
    %s48 = scalar_select %p47, 0, %s46
    %s49 = sadd.s32 %s42, %s48
    %s50 = smul.u32 3, %s49
    %p51 = scmp.lt.s32.totalorder %s50, 2
    %s52 = scalar_select %p51, %s50, 2
    %s53 = smul.addr %s52, 4
    %s54 = scalar_lea.vmem %s3, %s53
    %s55 = sld [smem:[#allocation4]]
    %s56 = sld [smem:[#allocation5]]
    %p57 = scmp.gt.s32.totalorder %s56, 1
    %s58 = scalar_select %p57, %s56, 1
    %s59 = ssub.s32 %s58, 1
    %p60 = scmp.lt.s32.totalorder 0, %s59
    %s61 = scalar_select %p60, 0, %s59
    %s62 = sadd.s32 %s55, %s61
    %s63 = smul.u32 3, %s62
  $region9: #{mpnn_forward.7} parent=0 // pred_fallthru
    _
  // Predicated region
  $region10: #{mpnn_forward.7} parent=0 // pred_check
    _
  $region11: #{mpnn_forward.7} parent=0 // pred_check_branch
    %65 = sbr.rel (0) target = $region13
  $region12: #{mpnn_forward.7} parent=0 // pred_region
    _
  $region13: #{mpnn_forward.7} parent=0 // pred_fallthru
    _
  // Predicated region
  $region14: #{mpnn_forward.7} parent=0 // pred_check
    _
  $region15: #{mpnn_forward.7} parent=0 // pred_check_branch
    %67 = sbr.rel (0) target = $region17
  $region16: #{mpnn_forward.7} parent=0 // pred_region
    _
  $region17: #{mpnn_forward.7} parent=0 // pred_fallthru
    _
  // Predicated region
  $region18: #{mpnn_forward.7} parent=0 // pred_check
    _
  $region19: #{mpnn_forward.7} parent=0 // pred_check_branch
    %69 = sbr.rel (0) target = $region21
  $region20: #{mpnn_forward.7} parent=0 // pred_region
    _
  $region21: #{mpnn_forward.7} parent=0 // pred_fallthru
    _
  // Predicated region
  $region22: #{mpnn_forward.7} parent=0 // pred_check
    _
  $region23: #{mpnn_forward.7} parent=0 // pred_check_branch
    %71 = sbr.rel (0) target = $region25
  $region24: #{mpnn_forward.7} parent=0 // pred_region
    _
  $region25: #{mpnn_forward.7} parent=0 // pred_fallthru
    _
  // Predicated region
  $region26: #{mpnn_forward.7} parent=0 // pred_check
    _
  $region27: #{mpnn_forward.7} parent=0 // pred_check_branch
    %73 = sbr.rel (0) target = $region29
  $region28: #{mpnn_forward.7} parent=0 // pred_region
    _
  $region29: #{mpnn_forward.7} parent=0 // pred_fallthru
    _
  // Predicated region
  $region30: #{mpnn_forward.7} parent=0 // pred_check
    _
  $region31: #{mpnn_forward.7} parent=0 // pred_check_branch
    %75 = sbr.rel (0) target = $region33
  $region32: #{mpnn_forward.7} parent=0 // pred_region
    _
  $region33: #{mpnn_forward.7} parent=0 // pred_fallthru
    _
  %s76 = sld [smem:[#allocation4]]
  %s77 = sld [smem:[#allocation5]]
  %p78 = scmp.gt.s32.totalorder %s77, 1
  %s79 = scalar_select %p78, %s77, 1
  %s80 = ssub.s32 %s79, 1
  %p81 = scmp.lt.s32.totalorder 0, %s80
  %s82 = scalar_select %p81, 0, %s80
  %s83 = sadd.s32 %s76, %s82
  %p84 = scmp.lt.s32.totalorder %s83, 0
  %s85 = scalar_select %p84, %s83, 0
  %s86 = scalar_lea.vmem %s2, %s85
  %s87 = sld [smem:[#allocation4]]
  %s88 = sld [smem:[#allocation5]]
  %p89 = scmp.gt.s32.totalorder %s88, 1
  %s90 = scalar_select %p89, %s88, 1
  %s91 = ssub.s32 %s90, 1
  %p92 = scmp.lt.s32.totalorder 0, %s91
  %s93 = scalar_select %p92, 0, %s91
  %s94 = sadd.s32 %s87, %s93
  %s95 = smul.u32 3, %s94
  %p96 = scmp.lt.s32.totalorder %s95, 2
  %s97 = scalar_select %p96, %s95, 2
  %s98 = smul.addr %s97, 4
  %s99 = scalar_lea.vmem %s3, %s98
  %s100 = sld [smem:[#allocation4]]
  %s101 = sld [smem:[#allocation5]]
  %p102 = scmp.gt.s32.totalorder %s101, 1
  %s103 = scalar_select %p102, %s101, 1
  %s104 = ssub.s32 %s103, 1
  %p105 = scmp.lt.s32.totalorder 0, %s104
  %s106 = scalar_select %p105, 0, %s104
  %s107 = sadd.s32 %s100, %s106
  %p108 = scmp.lt.s32.totalorder %s107, 0
  %s109 = scalar_select %p108, %s107, 0
  %s110 = scalar_lea.vmem %s2, %s109
  %s111 = sld [smem:[#allocation4]]
  %s112 = sld [smem:[#allocation5]]
  %p113 = scmp.gt.s32.totalorder %s112, 1
  %s114 = scalar_select %p113, %s112, 1
  %s115 = ssub.s32 %s114, 1
  %p116 = scmp.lt.s32.totalorder 0, %s115
  %s117 = scalar_select %p116, 0, %s115
  %s118 = sadd.s32 %s111, %s117
  %s119 = sld [smem:[#allocation4]]
  %s120 = sld [smem:[#allocation5]]
  %p121 = scmp.gt.s32.totalorder %s120, 1
  %s122 = scalar_select %p121, %s120, 1
  %s123 = ssub.s32 %s122, 1
  %p124 = scmp.lt.s32.totalorder 0, %s123
  %s125 = scalar_select %p124, 0, %s123
  %s126 = sadd.s32 %s119, %s125
  %s127 = smul.u32 3, %s126
  %p128 = scmp.lt.s32.totalorder %s127, 2
  %s129 = scalar_select %p128, %s127, 2
  %s130 = smul.addr %s129, 4
  %s131 = scalar_lea.vmem %s3, %s130
  %s132 = sld [smem:[#allocation4]]
  %s133 = sld [smem:[#allocation5]]
  %p134 = scmp.gt.s32.totalorder %s133, 1
  %s135 = scalar_select %p134, %s133, 1
  %s136 = ssub.s32 %s135, 1
  %p137 = scmp.lt.s32.totalorder 0, %s136
  %s138 = scalar_select %p137, 0, %s136
  %s139 = sadd.s32 %s132, %s138
  %s140 = smul.u32 3, %s139
  %p142 = scmp.eq.s32.totalorder 0, 0
  // Predicated region
  $region34: #{mpnn_forward.7} parent=0 // pred_check
    %p143 = pneg %p142
  $region35: #{mpnn_forward.7} parent=0 // pred_check_branch
    %145 = sbr.rel (%p143) target = $region37
  $region36: #{mpnn_forward.7} parent=0 // pred_region
    %146 = vst [vmem:[#allocation2] sm:$0xff] 0.0
    %147 = vst [vmem:[#allocation2 + $0x8] sm:$0xff] 0.0
  $region37: #{mpnn_forward.7} parent=0 // pred_fallthru
    _
  %s148 = sld [smem:[#allocation5]]
  %p149 = scmp.lt.s32.totalorder 0, %s148
  // Predicated region
  $region38: #{mpnn_forward.7} parent=0 // pred_check
    %p150 = pneg %p149
  $region39: #{mpnn_forward.7} parent=0 // pred_check_branch
    %152 = sbr.rel (%p150) target = $region41
  $region40: #{mpnn_forward.7} parent=0 // pred_region
    %s153 = smul.u32 0, 16
    %v154 = vlaneseq
    %v155 = vshrl.u32 %v154, 7
    %v156 = vadd.s32 %v155, 8
    %v157 = vstv %s153
    %v158 = vadd.s32 %v157, %v155
    %v159 = vadd.s32 %v157, %v156
    %v160 = vld [vmem:[%s110] sm:$0x1]
    %v161 = vlaneseq
    %v162 = vshrl.u32 %v161, 7
    %v163 = vsub.s32 0, %v162
    %v164 = vrot.slane %v160, %v163
    %vm165 = vcmp.eq.s32.totalorder %v158, %v164
    %vm166 = vcmp.eq.s32.totalorder %v159, %v164
    %v167 = vsel %vm165, 1, 0
    %v168 = vsel %vm166, 1, 0
    %v169 = vcvt.s32.f32 %v167
    %v170 = vcvt.s32.f32 %v168
    %v171 = vpack.c.bf16 %v170, %v169
    %v172 = vld [vmem:[#allocation2] sm:$0xff]
    %v173 = vld [vmem:[#allocation2 + $0x8] sm:$0xff]
    %v174 = vld [vmem:[%s131] sm:$0xf]
    %v175 = vld [vmem:[%s131 + $0x4] sm:$0xf]
    %v176 = vld [vmem:[%s131 + $0x8] sm:$0xf]
    %v180 = vunpack.c.l.b16 %v174
    %v181 = vunpack.c.l.b16 %v175
    %v182 = vunpack.c.l.b16 %v176
    %v183 = vpack.c.b16 %v181, %v180
    %v184 = vpack.c.b16 %v182, %v182
    %vm186 = vcmask 195584
    %v188 = vsel %vm186, %v171, 0
    %vm190 = vcmask 1043456
    %v192 = vsel %vm190, %v184, 0
    %194 = vmatprep.subr.bf16.mxu0 0
    %195 = vmatpush1.bf16.msra.mxu0 0
    %196 = vmatprep.subr.bf16.mxu0 0
    %197 = vmatpush1.bf16.msra.mxu0 0
    %198 = vmatprep.subr.bf16.mxu0 0
    %199 = vmatpush1.bf16.msra.mxu0 0
    %200 = vmatprep.subr.bf16.mxu0 0
    %201 = vmatpush1.bf16.msra.mxu0 0
    %202 = vmatprep.subr.bf16.mxu0 0
    %203 = vmatpush1.bf16.msra.mxu0 0
    %204 = vmatprep.subr.bf16.mxu0 0
    %205 = vmatpush1.bf16.msra.mxu0 0
    %206 = vmatprep.subr.bf16.mxu0 0
    %207 = vmatpush1.bf16.msra.mxu0 %v192
    %208 = vmatprep.subr.bf16.mxu0 0
    %209 = vmatpush1.bf16.msra.mxu0 %v183
    %210 = vmatprep.subr.bf16.mxu0 0
    %211 = vmatpush2.bf16.msra.mxu0 0
    %212 = vmatprep.subr.bf16.mxu0 0
    %213 = vmatpush2.bf16.msra.mxu0 0
    %214 = vmatprep.subr.bf16.mxu0 0
    %215 = vmatpush2.bf16.msra.mxu0 0
    %216 = vmatprep.subr.bf16.mxu0 0
    %217 = vmatpush2.bf16.msra.mxu0 0
    %218 = vmatprep.subr.bf16.mxu0 0
    %219 = vmatpush2.bf16.msra.mxu0 0
    %220 = vmatprep.subr.bf16.mxu0 0
    %221 = vmatpush2.bf16.msra.mxu0 0
    %222 = vmatprep.subr.bf16.mxu0 0
    %223 = vmatpush2.bf16.msra.mxu0 0
    %224 = vmatprep.subr.bf16.mxu0 0
    %225 = vmatpush2.bf16.msra.mxu0 0
    %226 = vmatprep.mubr.bf16.mxu0 0
    %227 = vmatmul.mubr.bf16.gmra.mxu0 %v188
    %v228 = vpop.f32.mrf.mxu0
    %v229 = vadd.f32 0.0, %v228
    %v230 = vpop.f32.mrf.mxu0
    %v231 = vpop.f32.mrf.mxu0
    %v232 = vadd.f32 0.0, %v231
    %v233 = vpop.f32.mrf.mxu0
    %234 = vdwg.mxu0
    %v235 = vadd.f32 %v172, %v229
    %v236 = vadd.f32 %v173, %v232
    %237 = vst [vmem:[#allocation2] sm:$0xff] %v235
    %238 = vst [vmem:[#allocation2 + $0x8] sm:$0xff] %v236
  $region41: #{mpnn_forward.7} parent=0 // pred_fallthru
    _
  // Predicated region
  $region42: #{mpnn_forward.7} parent=0 // pred_check
    %p239 = pneg %p142
  $region43: #{mpnn_forward.7} parent=0 // pred_check_branch
    %241 = sbr.rel (%p239) target = $region45
  $region44: #{mpnn_forward.7} parent=0 // pred_region
    %v242 = vlaneseq
    %v243 = vand.u32 %v242, 127
    %v244 = vld [vmem:[%s5] sm:$0xff]
    %v245 = vld [vmem:[%s5 + $0x8] sm:$0xff]
    %246 = vset.pattern.permute.xlu0 0
    %247 = vperm.xlu0 %246, %v244
    %v248 = vpop.permute.xlu0 %247
    %249 = vset.pattern.permute.xlu0 0
    %250 = vperm.xlu0 %249, %v245
    %v251 = vpop.permute.xlu0 %250
    %vm252 = vcmp.eq.s32.totalorder %v248, %v243
    %vm253 = vcmp.eq.s32.totalorder %v251, %v243
    %v254 = vsel %vm252, 1, 0
    %v255 = vsel %vm253, 1, 0
    %v256 = vcvt.s32.f32 %v254
    %v257 = vcvt.s32.f32 %v255
    %v258 = vpack.c.bf16 %v257, %v256
    %v259 = vld [vmem:[%s4] sm:$0xf]
    %v260 = vld [vmem:[%s4 + $0x4] sm:$0xf]
    %v261 = vld [vmem:[%s7] sm:$0xf]
    %v262 = vld [vmem:[%s7 + $0x4] sm:$0xf]
    %v263 = vld [vmem:[%s7 + $0x8] sm:$0xf]
    %v264 = vld [vmem:[%s7 + $0xc] sm:$0xf]
    %v265 = vld [vmem:[%s7 + $0x10] sm:$0xf]
    %v266 = vld [vmem:[%s7 + $0x14] sm:$0xf]
    %v267 = vld [vmem:[%s7 + $0x18] sm:$0xf]
    %v268 = vld [vmem:[%s7 + $0x1c] sm:$0xf]
    %v269 = vld [vmem:[%s7 + $0x20] sm:$0xf]
    %v270 = vld [vmem:[%s7 + $0x24] sm:$0xf]
    %v271 = vld [vmem:[%s7 + $0x28] sm:$0xf]
    %v272 = vld [vmem:[%s7 + $0x2c] sm:$0xf]
    %v273 = vld [vmem:[%s7 + $0x30] sm:$0xf]
    %v274 = vld [vmem:[%s7 + $0x34] sm:$0xf]
    %v275 = vld [vmem:[%s7 + $0x38] sm:$0xf]
    %v276 = vld [vmem:[%s7 + $0x3c] sm:$0xf]
    %v277 = vld [vmem:[#allocation2] sm:$0xff]
    %v278 = vld [vmem:[#allocation2 + $0x8] sm:$0xff]
    %v279 = vpack.c.bf16 %v278, %v277
    %v280 = vld [vmem:[%s8] sm:$0xf]
    %v281 = vld [vmem:[%s8 + $0x4] sm:$0xf]
    %v282 = vld [vmem:[%s8 + $0x8] sm:$0xf]
    %v283 = vld [vmem:[%s8 + $0xc] sm:$0xf]
    %v284 = vld [vmem:[%s8 + $0x10] sm:$0xf]
    %v285 = vld [vmem:[%s8 + $0x14] sm:$0xf]
    %v286 = vld [vmem:[%s8 + $0x18] sm:$0xf]
    %v287 = vld [vmem:[%s8 + $0x1c] sm:$0xf]
    %v288 = vld [vmem:[%s8 + $0x20] sm:$0xf]
    %v289 = vld [vmem:[%s8 + $0x24] sm:$0xf]
    %v290 = vld [vmem:[%s8 + $0x28] sm:$0xf]
    %v291 = vld [vmem:[%s8 + $0x2c] sm:$0xf]
    %v292 = vld [vmem:[%s8 + $0x30] sm:$0xf]
    %v293 = vld [vmem:[%s8 + $0x34] sm:$0xf]
    %v294 = vld [vmem:[%s8 + $0x38] sm:$0xf]
    %v295 = vld [vmem:[%s8 + $0x3c] sm:$0xf]
    %v312 = vunpack.c.l.b16 %v280
    %v313 = vunpack.c.l.b16 %v281
    %v314 = vunpack.c.l.b16 %v282
    %v315 = vunpack.c.l.b16 %v283
    %v316 = vunpack.c.l.b16 %v284
    %v317 = vunpack.c.l.b16 %v285
    %v318 = vunpack.c.l.b16 %v286
    %v319 = vunpack.c.l.b16 %v287
    %v320 = vunpack.c.l.b16 %v288
    %v321 = vunpack.c.l.b16 %v289
    %v322 = vunpack.c.l.b16 %v290
    %v323 = vunpack.c.l.b16 %v291
    %v324 = vunpack.c.l.b16 %v292
    %v325 = vunpack.c.l.b16 %v293
    %v326 = vunpack.c.l.b16 %v294
    %v327 = vunpack.c.l.b16 %v295
    %v328 = vpack.c.b16 %v313, %v312
    %v329 = vpack.c.b16 %v315, %v314
    %v330 = vpack.c.b16 %v317, %v316
    %v331 = vpack.c.b16 %v319, %v318
    %v332 = vpack.c.b16 %v321, %v320
    %v333 = vpack.c.b16 %v323, %v322
    %v334 = vpack.c.b16 %v325, %v324
    %v335 = vpack.c.b16 %v327, %v326
    %344 = vmatprep.subr.bf16.mxu0 0
    %345 = vmatpush1.bf16.msra.mxu0 %v335
    %346 = vmatprep.subr.bf16.mxu0 0
    %347 = vmatpush1.bf16.msra.mxu0 %v334
    %348 = vmatprep.subr.bf16.mxu0 0
    %349 = vmatpush1.bf16.msra.mxu0 %v333
    %350 = vmatprep.subr.bf16.mxu0 0
    %351 = vmatpush1.bf16.msra.mxu0 %v332
    %352 = vmatprep.subr.bf16.mxu0 0
    %353 = vmatpush1.bf16.msra.mxu0 %v331
    %354 = vmatprep.subr.bf16.mxu0 0
    %355 = vmatpush1.bf16.msra.mxu0 %v330
    %356 = vmatprep.subr.bf16.mxu0 0
    %357 = vmatpush1.bf16.msra.mxu0 %v329
    %358 = vmatprep.subr.bf16.mxu0 0
    %359 = vmatpush1.bf16.msra.mxu0 %v328
    %360 = vmatprep.subr.bf16.mxu0 0
    %361 = vmatpush2.bf16.msra.mxu0 0
    %362 = vmatprep.subr.bf16.mxu0 0
    %363 = vmatpush2.bf16.msra.mxu0 0
    %364 = vmatprep.subr.bf16.mxu0 0
    %365 = vmatpush2.bf16.msra.mxu0 0
    %366 = vmatprep.subr.bf16.mxu0 0
    %367 = vmatpush2.bf16.msra.mxu0 0
    %368 = vmatprep.subr.bf16.mxu0 0
    %369 = vmatpush2.bf16.msra.mxu0 0
    %370 = vmatprep.subr.bf16.mxu0 0
    %371 = vmatpush2.bf16.msra.mxu0 0
    %372 = vmatprep.subr.bf16.mxu0 0
    %373 = vmatpush2.bf16.msra.mxu0 0
    %374 = vmatprep.subr.bf16.mxu0 0
    %375 = vmatpush2.bf16.msra.mxu0 0
    %376 = vmatprep.mubr.bf16.mxu0 0
    %377 = vmatmul.mubr.bf16.gmra.mxu0 %v279
    %v378 = vpop.f32.mrf.mxu0
    %v379 = vadd.f32 0.0, %v378
    %v380 = vpop.f32.mrf.mxu0
    %v381 = vpop.f32.mrf.mxu0
    %v382 = vadd.f32 0.0, %v381
    %v383 = vpop.f32.mrf.mxu0
    %384 = vdwg.mxu0
    %v387 = vunpack.c.l.b16 %v259
    %v388 = vunpack.c.l.b16 %v260
    %v389 = vpack.c.b16 %v388, %v387
    %v407 = vunpack.c.l.b16 %v261
    %v408 = vunpack.c.l.b16 %v262
    %v409 = vunpack.c.l.b16 %v263
    %v410 = vunpack.c.l.b16 %v264
    %v411 = vunpack.c.l.b16 %v265
    %v412 = vunpack.c.l.b16 %v266
    %v413 = vunpack.c.l.b16 %v267
    %v414 = vunpack.c.l.b16 %v268
    %v415 = vunpack.c.l.b16 %v269
    %v416 = vunpack.c.l.b16 %v270
    %v417 = vunpack.c.l.b16 %v271
    %v418 = vunpack.c.l.b16 %v272
    %v419 = vunpack.c.l.b16 %v273
    %v420 = vunpack.c.l.b16 %v274
    %v421 = vunpack.c.l.b16 %v275
    %v422 = vunpack.c.l.b16 %v276
    %v423 = vpack.c.b16 %v408, %v407
    %v424 = vpack.c.b16 %v410, %v409
    %v425 = vpack.c.b16 %v412, %v411
    %v426 = vpack.c.b16 %v414, %v413
    %v427 = vpack.c.b16 %v416, %v415
    %v428 = vpack.c.b16 %v418, %v417
    %v429 = vpack.c.b16 %v420, %v419
    %v430 = vpack.c.b16 %v422, %v421
    %439 = vmatprep.subr.bf16.mxu0 0
    %440 = vmatpush1.bf16.msra.mxu0 %v430
    %441 = vmatprep.subr.bf16.mxu0 0
    %442 = vmatpush1.bf16.msra.mxu0 %v429
    %443 = vmatprep.subr.bf16.mxu0 0
    %444 = vmatpush1.bf16.msra.mxu0 %v428
    %445 = vmatprep.subr.bf16.mxu0 0
    %446 = vmatpush1.bf16.msra.mxu0 %v427
    %447 = vmatprep.subr.bf16.mxu0 0
    %448 = vmatpush1.bf16.msra.mxu0 %v426
    %449 = vmatprep.subr.bf16.mxu0 0
    %450 = vmatpush1.bf16.msra.mxu0 %v425
    %451 = vmatprep.subr.bf16.mxu0 0
    %452 = vmatpush1.bf16.msra.mxu0 %v424
    %453 = vmatprep.subr.bf16.mxu0 0
    %454 = vmatpush1.bf16.msra.mxu0 %v423
    %455 = vmatprep.subr.bf16.mxu0 0
    %456 = vmatpush2.bf16.msra.mxu0 0
    %457 = vmatprep.subr.bf16.mxu0 0
    %458 = vmatpush2.bf16.msra.mxu0 0
    %459 = vmatprep.subr.bf16.mxu0 0
    %460 = vmatpush2.bf16.msra.mxu0 0
    %461 = vmatprep.subr.bf16.mxu0 0
    %462 = vmatpush2.bf16.msra.mxu0 0
    %463 = vmatprep.subr.bf16.mxu0 0
    %464 = vmatpush2.bf16.msra.mxu0 0
    %465 = vmatprep.subr.bf16.mxu0 0
    %466 = vmatpush2.bf16.msra.mxu0 0
    %467 = vmatprep.subr.bf16.mxu0 0
    %468 = vmatpush2.bf16.msra.mxu0 0
    %469 = vmatprep.subr.bf16.mxu0 0
    %470 = vmatpush2.bf16.msra.mxu0 0
    %471 = vmatprep.mubr.bf16.mxu0 0
    %472 = vmatmul.mubr.bf16.gmra.mxu0 %v389
    %v473 = vpop.f32.mrf.mxu0
    %v474 = vadd.f32 %v379, %v473
    %v475 = vpop.f32.mrf.mxu0
    %v476 = vpop.f32.mrf.mxu0
    %v477 = vadd.f32 %v382, %v476
    %v478 = vpop.f32.mrf.mxu0
    %479 = vdwg.mxu0
    %v480 = vld [vmem:[%s6] sm:$0xf]
    %vm481 = vcmask 64512
    %v483 = vsel %vm481, %v258, 0
    %vm485 = vcmask 1043456
    %v487 = vsel %vm485, %v480, 0
    %489 = vmatprep.subr.bf16.mxu0 0
    %490 = vmatpush1.bf16.msra.mxu0 0
    %491 = vmatprep.subr.bf16.mxu0 0
    %492 = vmatpush1.bf16.msra.mxu0 0
    %493 = vmatprep.subr.bf16.mxu0 0
    %494 = vmatpush1.bf16.msra.mxu0 0
    %495 = vmatprep.subr.bf16.mxu0 0
    %496 = vmatpush1.bf16.msra.mxu0 0
    %497 = vmatprep.subr.bf16.mxu0 0
    %498 = vmatpush1.bf16.msra.mxu0 0
    %499 = vmatprep.subr.bf16.mxu0 0
    %500 = vmatpush1.bf16.msra.mxu0 0
    %501 = vmatprep.subr.bf16.mxu0 0
    %502 = vmatpush1.bf16.msra.mxu0 0
    %503 = vmatprep.subr.bf16.mxu0 0
    %504 = vmatpush1.bf16.msra.mxu0 %v487
    %505 = vmatprep.subr.bf16.mxu0 0
    %506 = vmatpush2.bf16.msra.mxu0 0
    %507 = vmatprep.subr.bf16.mxu0 0
    %508 = vmatpush2.bf16.msra.mxu0 0
    %509 = vmatprep.subr.bf16.mxu0 0
    %510 = vmatpush2.bf16.msra.mxu0 0
    %511 = vmatprep.subr.bf16.mxu0 0
    %512 = vmatpush2.bf16.msra.mxu0 0
    %513 = vmatprep.subr.bf16.mxu0 0
    %514 = vmatpush2.bf16.msra.mxu0 0
    %515 = vmatprep.subr.bf16.mxu0 0
    %516 = vmatpush2.bf16.msra.mxu0 0
    %517 = vmatprep.subr.bf16.mxu0 0
    %518 = vmatpush2.bf16.msra.mxu0 0
    %519 = vmatprep.subr.bf16.mxu0 0
    %520 = vmatpush2.bf16.msra.mxu0 0
    %521 = vmatprep.mubr.bf16.mxu0 0
    %522 = vmatmul.mubr.bf16.gmra.mxu0 %v483
    %v523 = vpop.f32.mrf.mxu0
    %v524 = vadd.f32 0.0, %v523
    %v525 = vpop.f32.mrf.mxu0
    %v526 = vpop.f32.mrf.mxu0
    %v527 = vadd.f32 0.0, %v526
    %v528 = vpop.f32.mrf.mxu0
    %529 = vdwg.mxu0
    %v530 = vadd.f32 %v474, %v524
    %v531 = vadd.f32 %v477, %v527
    %v532 = vld [vmem:[%s9] sm:$0x1]
    %v534 = vlaneseq
    %v535 = vshrl.u32 %v534, 7
    %v536 = vsub.s32 0, %v535
    %v537 = vrot.slane %v532, %v536
    %v539 = vadd.f32 %v530, %v537
    %v540 = vadd.f32 %v531, %v537
    %v541 = vmax.f32 %v539, 0.0
    %v542 = vmax.f32 %v540, 0.0
    %v543 = vpack.c.bf16 %v542, %v541
    %v545 = vunpack.c.l.b16 %v543
    %v546 = vunpack.c.h.b16 %v543
    %v547 = vpack.c.b16 %v545, %v545
    %v548 = vpack.c.b16 %v546, %v546
    %551 = vst [vmem:[%s10] sm:$0xf] %v547
    %552 = vst [vmem:[%s10 + $0x4] sm:$0xf] %v548
    %553 = vxpose.xlu0.c.b16.start [1/8] %v258, 128
    %554 = vxpose.xlu0.c.b16.cont [2/8] 0, 128
    %555 = vxpose.xlu0.c.b16.cont [3/8] 0, 128
    %556 = vxpose.xlu0.c.b16.cont [4/8] 0, 128
    %557 = vxpose.xlu0.c.b16.cont [5/8] 0, 128
    %558 = vxpose.xlu0.c.b16.cont [6/8] 0, 128
    %559 = vxpose.xlu0.c.b16.cont [7/8] 0, 128
    %560 = vxpose.xlu0.c.b16.end [8/8] 0, 128
    %v561 = vpop.trf.xlu0
    %v562 = vpop.trf.xlu0
    %v563 = vpop.trf.xlu0
    %v564 = vpop.trf.xlu0
    %v565 = vpop.trf.xlu0
    %v566 = vpop.trf.xlu0
    %v567 = vpop.trf.xlu0
    %v568 = vpop.trf.xlu0
    %vm569 = vcmask 130048
    %v571 = vsel %vm569, %v561, 0
    %573 = vmatprep.subr.bf16.mxu0 0
    %574 = vmatpush1.bf16.msra.mxu0 0
    %575 = vmatprep.subr.bf16.mxu0 0
    %576 = vmatpush1.bf16.msra.mxu0 0
    %577 = vmatprep.subr.bf16.mxu0 0
    %578 = vmatpush1.bf16.msra.mxu0 0
    %579 = vmatprep.subr.bf16.mxu0 0
    %580 = vmatpush1.bf16.msra.mxu0 0
    %581 = vmatprep.subr.bf16.mxu0 0
    %582 = vmatpush1.bf16.msra.mxu0 0
    %583 = vmatprep.subr.bf16.mxu0 0
    %584 = vmatpush1.bf16.msra.mxu0 0
    %585 = vmatprep.subr.bf16.mxu0 0
    %586 = vmatpush1.bf16.msra.mxu0 0
    %587 = vmatprep.subr.bf16.mxu0 0
    %588 = vmatpush1.bf16.msra.mxu0 %v543
    %589 = vmatprep.subr.bf16.mxu0 0
    %590 = vmatpush2.bf16.msra.mxu0 0
    %591 = vmatprep.subr.bf16.mxu0 0
    %592 = vmatpush2.bf16.msra.mxu0 0
    %593 = vmatprep.subr.bf16.mxu0 0
    %594 = vmatpush2.bf16.msra.mxu0 0
    %595 = vmatprep.subr.bf16.mxu0 0
    %596 = vmatpush2.bf16.msra.mxu0 0
    %597 = vmatprep.subr.bf16.mxu0 0
    %598 = vmatpush2.bf16.msra.mxu0 0
    %599 = vmatprep.subr.bf16.mxu0 0
    %600 = vmatpush2.bf16.msra.mxu0 0
    %601 = vmatprep.subr.bf16.mxu0 0
    %602 = vmatpush2.bf16.msra.mxu0 0
    %603 = vmatprep.subr.bf16.mxu0 0
    %604 = vmatpush2.bf16.msra.mxu0 0
    %605 = vmatprep.mubr.bf16.mxu0 0
    %606 = vmatmul.mubr.bf16.gmra.mxu0 %v571
    %v607 = vpop.f32.mrf.mxu0
    %v608 = vadd.f32 0.0, %v607
    %v609 = vpop.f32.mrf.mxu0
    %v610 = vpop.f32.mrf.mxu0
    %v611 = vpop.f32.mrf.mxu0
    %612 = vdwg.mxu0
    %613 = vst [vmem:[%s11] sm:$0xff] %v608
  $region45: #{mpnn_forward.7} parent=0 // pred_fallthru
    _
  // Predicated region
  $region46: #{mpnn_forward.7} parent=0 // pred_check
    _
  $region47: #{mpnn_forward.7} parent=0 // pred_check_branch
    %615 = sbr.rel (0) target = $region49
  $region48: #{mpnn_forward.7} parent=0 // pred_region
    _
  $region49: #{mpnn_forward.7} parent=0 // pred_fallthru
    _
  // Predicated region
  $region50: #{mpnn_forward.7} parent=0 // pred_check
    _
  $region51: #{mpnn_forward.7} parent=0 // pred_check_branch
    %617 = sbr.rel (0) target = $region53
  $region52: #{mpnn_forward.7} parent=0 // pred_region
    _
  $region53: #{mpnn_forward.7} parent=0 // pred_fallthru
    _
  // Predicated region
  $region54: #{mpnn_forward.7} parent=0 // pred_check
    _
  $region55: #{mpnn_forward.7} parent=0 // pred_check_branch
    %619 = sbr.rel (0) target = $region57
  $region56: #{mpnn_forward.7} parent=0 // pred_region
    _
  $region57: #{mpnn_forward.7} parent=0 // pred_fallthru
    _
  // Predicated region
  $region58: #{mpnn_forward.7} parent=0 // pred_check
    _
  $region59: #{mpnn_forward.7} parent=0 // pred_check_branch
    %621 = sbr.rel (0) target = $region61
  $region60: #{mpnn_forward.7} parent=0 // pred_region
    _
  $region61: #{mpnn_forward.7} parent=0 // pred_fallthru
    _

// kernel: mpnn_forward.6
$region0: #{mpnn_forward.6}
  #allocation0 [shape = 'u32[]', space=smem, size = 0x4, offset = 0x4, fixed_abs, tag = 'smem constant byte address 0x4 - core index']
  #allocation1 [shape = 'u32[144,128]{1,0:T(1,128)}', space=vmem, size = 0x12000, scoped, tag = 'internal scratch']
  %s0 = inlined_call_operand.vmem [shape: bf16[24,128], index: 0, kind: input, shape index: {}]
  %s1 = inlined_call_operand.vmem [shape: bf16[24,128], index: 1, kind: input, shape index: {}]
  %s2 = inlined_call_operand.vmem [shape: bf16[24,128], index: 2, kind: input, shape index: {}]
  %s3 = inlined_call_operand.vmem [shape: s32[24,1], index: 3, kind: input, shape index: {}]
  %s4 = inlined_call_operand.vmem [shape: s32[24,1], index: 4, kind: input, shape index: {}]
  %s5 = inlined_call_operand.vmem [shape: bf16[8,128], index: 5, kind: input, shape index: {}]
  %s6 = inlined_call_operand.vmem [shape: bf16[8,128], index: 6, kind: input, shape index: {}]
  %s7 = inlined_call_operand.vmem [shape: bf16[128,128], index: 7, kind: input, shape index: {}]
  %s8 = inlined_call_operand.vmem [shape: bf16[128,128], index: 8, kind: input, shape index: {}]
  %s9 = inlined_call_operand.vmem [shape: bf16[128,128], index: 9, kind: input, shape index: {}]
  %s10 = inlined_call_operand.vmem [shape: f32[1,128], index: 10, kind: input, shape index: {}]
  %s11 = inlined_call_operand.vmem [shape: bf16[128,128], index: 11, kind: input, shape index: {}]
  %s12 = inlined_call_operand.vmem [shape: bf16[128,128], index: 12, kind: input, shape index: {}]
  %s13 = inlined_call_operand.vmem [shape: bf16[128,128], index: 13, kind: input, shape index: {}]
  %s14 = inlined_call_operand.vmem [shape: f32[1,128], index: 14, kind: input, shape index: {}]
  %s15 = inlined_call_operand.vmem [shape: bf16[24,128], index: 15, kind: output, shape index: {0}]
  %s16 = inlined_call_operand.vmem [shape: bf16[24,128], index: 16, kind: output, shape index: {1}]
  %s17 = inlined_call_operand.vmem [shape: f32[1,8,128], index: 17, kind: output, shape index: {2}]
  %18 = xla_tuple %s15, %s16, %s17
  %s19 = sld [smem:[#allocation0]]
  $region86: #{mpnn_forward.6} parent=0
    _
  %s21 = ssub.s32 1, %s19
  %s22 = scalar_select 0, %s21, %s19
  // Predicated region
  $region2: #{mpnn_forward.6} parent=0 // pred_check
    _
  $region3: #{mpnn_forward.6} parent=0 // pred_check_branch
    %24 = sbr.rel (0) target = $region5
  $region4: #{mpnn_forward.6} parent=0 // pred_region
    _
  $region5: #{mpnn_forward.6} parent=0 // pred_fallthru
    _
  // Predicated region
  $region6: #{mpnn_forward.6} parent=0 // pred_check
    _
  $region7: #{mpnn_forward.6} parent=0 // pred_check_branch
    %26 = sbr.rel (0) target = $region9
  $region8: #{mpnn_forward.6} parent=0 // pred_region
    _
  $region9: #{mpnn_forward.6} parent=0 // pred_fallthru
    _
  // Predicated region
  $region10: #{mpnn_forward.6} parent=0 // pred_check
    _
  $region11: #{mpnn_forward.6} parent=0 // pred_check_branch
    %28 = sbr.rel (0) target = $region13
  $region12: #{mpnn_forward.6} parent=0 // pred_region
    _
  $region13: #{mpnn_forward.6} parent=0 // pred_fallthru
    _
  // Predicated region
  $region14: #{mpnn_forward.6} parent=0 // pred_check
    _
  $region15: #{mpnn_forward.6} parent=0 // pred_check_branch
    %30 = sbr.rel (0) target = $region17
  $region16: #{mpnn_forward.6} parent=0 // pred_region
    _
  $region17: #{mpnn_forward.6} parent=0 // pred_fallthru
    _
  // Predicated region
  $region18: #{mpnn_forward.6} parent=0 // pred_check
    _
  $region19: #{mpnn_forward.6} parent=0 // pred_check_branch
    %32 = sbr.rel (0) target = $region21
  $region20: #{mpnn_forward.6} parent=0 // pred_region
    _
  $region21: #{mpnn_forward.6} parent=0 // pred_fallthru
    _
  // Predicated region
  $region22: #{mpnn_forward.6} parent=0 // pred_check
    _
  $region23: #{mpnn_forward.6} parent=0 // pred_check_branch
    %34 = sbr.rel (0) target = $region25
  $region24: #{mpnn_forward.6} parent=0 // pred_region
    _
  $region25: #{mpnn_forward.6} parent=0 // pred_fallthru
    _
  // Predicated region
  $region26: #{mpnn_forward.6} parent=0 // pred_check
    _
  $region27: #{mpnn_forward.6} parent=0 // pred_check_branch
    %36 = sbr.rel (0) target = $region29
  $region28: #{mpnn_forward.6} parent=0 // pred_region
    _
  $region29: #{mpnn_forward.6} parent=0 // pred_fallthru
    _
  // Predicated region
  $region30: #{mpnn_forward.6} parent=0 // pred_check
    _
  $region31: #{mpnn_forward.6} parent=0 // pred_check_branch
    %38 = sbr.rel (0) target = $region33
  $region32: #{mpnn_forward.6} parent=0 // pred_region
    _
  $region33: #{mpnn_forward.6} parent=0 // pred_fallthru
    _
  // Predicated region
  $region34: #{mpnn_forward.6} parent=0 // pred_check
    _
  $region35: #{mpnn_forward.6} parent=0 // pred_check_branch
    %40 = sbr.rel (0) target = $region37
  $region36: #{mpnn_forward.6} parent=0 // pred_region
    _
  $region37: #{mpnn_forward.6} parent=0 // pred_fallthru
    _
  // Predicated region
  $region38: #{mpnn_forward.6} parent=0 // pred_check
    _
  $region39: #{mpnn_forward.6} parent=0 // pred_check_branch
    %42 = sbr.rel (0) target = $region41
  $region40: #{mpnn_forward.6} parent=0 // pred_region
    _
  $region41: #{mpnn_forward.6} parent=0 // pred_fallthru
    _
  // Predicated region
  $region42: #{mpnn_forward.6} parent=0 // pred_check
    _
  $region43: #{mpnn_forward.6} parent=0 // pred_check_branch
    %44 = sbr.rel (0) target = $region45
  $region44: #{mpnn_forward.6} parent=0 // pred_region
    _
  $region45: #{mpnn_forward.6} parent=0 // pred_fallthru
    _
  // Predicated region
  $region46: #{mpnn_forward.6} parent=0 // pred_check
    _
  $region47: #{mpnn_forward.6} parent=0 // pred_check_branch
    %46 = sbr.rel (0) target = $region49
  $region48: #{mpnn_forward.6} parent=0 // pred_region
    _
  $region49: #{mpnn_forward.6} parent=0 // pred_fallthru
    _
  // Predicated region
  $region50: #{mpnn_forward.6} parent=0 // pred_check
    _
  $region51: #{mpnn_forward.6} parent=0 // pred_check_branch
    %48 = sbr.rel (0) target = $region53
  $region52: #{mpnn_forward.6} parent=0 // pred_region
    _
  $region53: #{mpnn_forward.6} parent=0 // pred_fallthru
    _
  // Predicated region
  $region54: #{mpnn_forward.6} parent=0 // pred_check
    _
  $region55: #{mpnn_forward.6} parent=0 // pred_check_branch
    %50 = sbr.rel (0) target = $region57
  $region56: #{mpnn_forward.6} parent=0 // pred_region
    _
  $region57: #{mpnn_forward.6} parent=0 // pred_fallthru
    _
  // Predicated region
  $region58: #{mpnn_forward.6} parent=0 // pred_check
    _
  $region59: #{mpnn_forward.6} parent=0 // pred_check_branch
    %52 = sbr.rel (0) target = $region61
  $region60: #{mpnn_forward.6} parent=0 // pred_region
    _
  $region61: #{mpnn_forward.6} parent=0 // pred_fallthru
    _
  %v54 = vld [vmem:[%s0] sm:$0xf]
  %v55 = vld [vmem:[%s0 + $0x4] sm:$0xf]
  %v56 = vld [vmem:[%s0 + $0x8] sm:$0xf]
  %v57 = vld [vmem:[%s1] sm:$0xf]
  %v58 = vld [vmem:[%s1 + $0x4] sm:$0xf]
  %v59 = vld [vmem:[%s1 + $0x8] sm:$0xf]
  %v60 = vlaneseq
  %v61 = vand.u32 %v60, 127
  %v62 = vld [vmem:[%s3] sm:$0xff]
  %v63 = vld [vmem:[%s3 + $0x8] sm:$0xff]
  %v64 = vld [vmem:[%s3 + $0x10] sm:$0xff]
  %65 = vset.pattern.permute.xlu0 0
  %66 = vperm.xlu0 %65, %v62
  %v67 = vpop.permute.xlu0 %66
  %68 = vset.pattern.permute.xlu0 0
  %69 = vperm.xlu0 %68, %v63
  %v70 = vpop.permute.xlu0 %69
  %71 = vset.pattern.permute.xlu0 0
  %72 = vperm.xlu0 %71, %v64
  %v73 = vpop.permute.xlu0 %72
  %vm74 = vcmp.eq.s32.totalorder %v67, %v61
  %vm75 = vcmp.eq.s32.totalorder %v70, %v61
  %vm76 = vcmp.eq.s32.totalorder %v73, %v61
  %v77 = vsel %vm74, 1, 0
  %v78 = vsel %vm75, 1, 0
  %v79 = vsel %vm76, 1, 0
  %v80 = vcvt.s32.f32 %v77
  %v81 = vcvt.s32.f32 %v78
  %v82 = vcvt.s32.f32 %v79
  %v83 = vpack.c.bf16 %v81, %v80
  %v84 = vpack.c.bf16 %v82, %v82
  %v85 = vld [vmem:[%s4] sm:$0xff]
  %v86 = vld [vmem:[%s4 + $0x8] sm:$0xff]
  %v87 = vld [vmem:[%s4 + $0x10] sm:$0xff]
  %88 = vset.pattern.permute.xlu0 0
  %89 = vperm.xlu0 %88, %v85
  %v90 = vpop.permute.xlu0 %89
  %91 = vset.pattern.permute.xlu0 0
  %92 = vperm.xlu0 %91, %v86
  %v93 = vpop.permute.xlu0 %92
  %94 = vset.pattern.permute.xlu0 0
  %95 = vperm.xlu0 %94, %v87
  %v96 = vpop.permute.xlu0 %95
  %vm97 = vcmp.eq.s32.totalorder %v90, %v61
  %vm98 = vcmp.eq.s32.totalorder %v93, %v61
  %vm99 = vcmp.eq.s32.totalorder %v96, %v61
  %v100 = vsel %vm97, 1, 0
  %v101 = vsel %vm98, 1, 0
  %v102 = vsel %vm99, 1, 0
  %v103 = vcvt.s32.f32 %v100
  %v104 = vcvt.s32.f32 %v101
  %v105 = vcvt.s32.f32 %v102
  %v106 = vpack.c.bf16 %v104, %v103
  %v107 = vpack.c.bf16 %v105, %v105
  %v108 = vld [vmem:[%s7] sm:$0xf]
  %v109 = vld [vmem:[%s7 + $0x4] sm:$0xf]
  %v110 = vld [vmem:[%s7 + $0x8] sm:$0xf]
  %v111 = vld [vmem:[%s7 + $0xc] sm:$0xf]
  %v112 = vld [vmem:[%s7 + $0x10] sm:$0xf]
  %v113 = vld [vmem:[%s7 + $0x14] sm:$0xf]
  %v114 = vld [vmem:[%s7 + $0x18] sm:$0xf]
  %v115 = vld [vmem:[%s7 + $0x1c] sm:$0xf]
  %v116 = vld [vmem:[%s7 + $0x20] sm:$0xf]
  %v117 = vld [vmem:[%s7 + $0x24] sm:$0xf]
  %v118 = vld [vmem:[%s7 + $0x28] sm:$0xf]
  %v119 = vld [vmem:[%s7 + $0x2c] sm:$0xf]
  %v120 = vld [vmem:[%s7 + $0x30] sm:$0xf]
  %v121 = vld [vmem:[%s7 + $0x34] sm:$0xf]
  %v122 = vld [vmem:[%s7 + $0x38] sm:$0xf]
  %v123 = vld [vmem:[%s7 + $0x3c] sm:$0xf]
  %v124 = vld [vmem:[%s8] sm:$0xf]
  %v125 = vld [vmem:[%s8 + $0x4] sm:$0xf]
  %v126 = vld [vmem:[%s8 + $0x8] sm:$0xf]
  %v127 = vld [vmem:[%s8 + $0xc] sm:$0xf]
  %v128 = vld [vmem:[%s8 + $0x10] sm:$0xf]
  %v129 = vld [vmem:[%s8 + $0x14] sm:$0xf]
  %v130 = vld [vmem:[%s8 + $0x18] sm:$0xf]
  %v131 = vld [vmem:[%s8 + $0x1c] sm:$0xf]
  %v132 = vld [vmem:[%s8 + $0x20] sm:$0xf]
  %v133 = vld [vmem:[%s8 + $0x24] sm:$0xf]
  %v134 = vld [vmem:[%s8 + $0x28] sm:$0xf]
  %v135 = vld [vmem:[%s8 + $0x2c] sm:$0xf]
  %v136 = vld [vmem:[%s8 + $0x30] sm:$0xf]
  %v137 = vld [vmem:[%s8 + $0x34] sm:$0xf]
  %v138 = vld [vmem:[%s8 + $0x38] sm:$0xf]
  %v139 = vld [vmem:[%s8 + $0x3c] sm:$0xf]
  %v143 = vunpack.c.l.b16 %v57
  %v144 = vunpack.c.l.b16 %v58
  %v145 = vunpack.c.l.b16 %v59
  %v146 = vpack.c.b16 %v144, %v143
  %v147 = vpack.c.b16 %v145, %v145
  %v166 = vunpack.c.l.b16 %v124
  %v167 = vunpack.c.l.b16 %v125
  %v168 = vunpack.c.l.b16 %v126
  %v169 = vunpack.c.l.b16 %v127
  %v170 = vunpack.c.l.b16 %v128
  %v171 = vunpack.c.l.b16 %v129
  %v172 = vunpack.c.l.b16 %v130
  %v173 = vunpack.c.l.b16 %v131
  %v174 = vunpack.c.l.b16 %v132
  %v175 = vunpack.c.l.b16 %v133
  %v176 = vunpack.c.l.b16 %v134
  %v177 = vunpack.c.l.b16 %v135
  %v178 = vunpack.c.l.b16 %v136
  %v179 = vunpack.c.l.b16 %v137
  %v180 = vunpack.c.l.b16 %v138
  %v181 = vunpack.c.l.b16 %v139
  %v182 = vpack.c.b16 %v167, %v166
  %v183 = vpack.c.b16 %v169, %v168
  %v184 = vpack.c.b16 %v171, %v170
  %v185 = vpack.c.b16 %v173, %v172
  %v186 = vpack.c.b16 %v175, %v174
  %v187 = vpack.c.b16 %v177, %v176
  %v188 = vpack.c.b16 %v179, %v178
  %v189 = vpack.c.b16 %v181, %v180
  %198 = vmatprep.subr.bf16.mxu0 0
  %199 = vmatpush1.bf16.msra.mxu0 %v189
  %200 = vmatprep.subr.bf16.mxu0 0
  %201 = vmatpush1.bf16.msra.mxu0 %v188
  %202 = vmatprep.subr.bf16.mxu0 0
  %203 = vmatpush1.bf16.msra.mxu0 %v187
  %204 = vmatprep.subr.bf16.mxu0 0
  %205 = vmatpush1.bf16.msra.mxu0 %v186
  %206 = vmatprep.subr.bf16.mxu0 0
  %207 = vmatpush1.bf16.msra.mxu0 %v185
  %208 = vmatprep.subr.bf16.mxu0 0
  %209 = vmatpush1.bf16.msra.mxu0 %v184
  %210 = vmatprep.subr.bf16.mxu0 0
  %211 = vmatpush1.bf16.msra.mxu0 %v183
  %212 = vmatprep.subr.bf16.mxu0 0
  %213 = vmatpush1.bf16.msra.mxu0 %v182
  %214 = vmatprep.subr.bf16.mxu0 0
  %215 = vmatpush2.bf16.msra.mxu0 0
  %216 = vmatprep.subr.bf16.mxu0 0
  %217 = vmatpush2.bf16.msra.mxu0 0
  %218 = vmatprep.subr.bf16.mxu0 0
  %219 = vmatpush2.bf16.msra.mxu0 0
  %220 = vmatprep.subr.bf16.mxu0 0
  %221 = vmatpush2.bf16.msra.mxu0 0
  %222 = vmatprep.subr.bf16.mxu0 0
  %223 = vmatpush2.bf16.msra.mxu0 0
  %224 = vmatprep.subr.bf16.mxu0 0
  %225 = vmatpush2.bf16.msra.mxu0 0
  %226 = vmatprep.subr.bf16.mxu0 0
  %227 = vmatpush2.bf16.msra.mxu0 0
  %228 = vmatprep.subr.bf16.mxu0 0
  %229 = vmatpush2.bf16.msra.mxu0 0
  %230 = vmatprep.mubr.bf16.mxu0 0
  %231 = vmatmul.mubr.bf16.gmra.mxu0 %v146
  %v232 = vpop.f32.mrf.mxu0
  %v233 = vadd.f32 0.0, %v232
  %v234 = vpop.f32.mrf.mxu0
  %v235 = vpop.f32.mrf.mxu0
  %v236 = vadd.f32 0.0, %v235
  %v237 = vpop.f32.mrf.mxu0
  %238 = vmatprep.mubr.bf16.mxu0 0
  %239 = vmatmul.mubr.bf16.gmra.mxu0 %v147
  %v240 = vpop.f32.mrf.mxu0
  %v241 = vadd.f32 0.0, %v240
  %v242 = vpop.f32.mrf.mxu0
  %v243 = vpop.f32.mrf.mxu0
  %v244 = vpop.f32.mrf.mxu0
  %245 = vdwg.mxu0
  %v249 = vunpack.c.l.b16 %v54
  %v250 = vunpack.c.l.b16 %v55
  %v251 = vunpack.c.l.b16 %v56
  %v252 = vpack.c.b16 %v250, %v249
  %v253 = vpack.c.b16 %v251, %v251
  %v272 = vunpack.c.l.b16 %v108
  %v273 = vunpack.c.l.b16 %v109
  %v274 = vunpack.c.l.b16 %v110
  %v275 = vunpack.c.l.b16 %v111
  %v276 = vunpack.c.l.b16 %v112
  %v277 = vunpack.c.l.b16 %v113
  %v278 = vunpack.c.l.b16 %v114
  %v279 = vunpack.c.l.b16 %v115
  %v280 = vunpack.c.l.b16 %v116
  %v281 = vunpack.c.l.b16 %v117
  %v282 = vunpack.c.l.b16 %v118
  %v283 = vunpack.c.l.b16 %v119
  %v284 = vunpack.c.l.b16 %v120
  %v285 = vunpack.c.l.b16 %v121
  %v286 = vunpack.c.l.b16 %v122
  %v287 = vunpack.c.l.b16 %v123
  %v288 = vpack.c.b16 %v273, %v272
  %v289 = vpack.c.b16 %v275, %v274
  %v290 = vpack.c.b16 %v277, %v276
  %v291 = vpack.c.b16 %v279, %v278
  %v292 = vpack.c.b16 %v281, %v280
  %v293 = vpack.c.b16 %v283, %v282
  %v294 = vpack.c.b16 %v285, %v284
  %v295 = vpack.c.b16 %v287, %v286
  %304 = vmatprep.subr.bf16.mxu0 0
  %305 = vmatpush1.bf16.msra.mxu0 %v295
  %306 = vmatprep.subr.bf16.mxu0 0
  %307 = vmatpush1.bf16.msra.mxu0 %v294
  %308 = vmatprep.subr.bf16.mxu0 0
  %309 = vmatpush1.bf16.msra.mxu0 %v293
  %310 = vmatprep.subr.bf16.mxu0 0
  %311 = vmatpush1.bf16.msra.mxu0 %v292
  %312 = vmatprep.subr.bf16.mxu0 0
  %313 = vmatpush1.bf16.msra.mxu0 %v291
  %314 = vmatprep.subr.bf16.mxu0 0
  %315 = vmatpush1.bf16.msra.mxu0 %v290
  %316 = vmatprep.subr.bf16.mxu0 0
  %317 = vmatpush1.bf16.msra.mxu0 %v289
  %318 = vmatprep.subr.bf16.mxu0 0
  %319 = vmatpush1.bf16.msra.mxu0 %v288
  %320 = vmatprep.subr.bf16.mxu0 0
  %321 = vmatpush2.bf16.msra.mxu0 0
  %322 = vmatprep.subr.bf16.mxu0 0
  %323 = vmatpush2.bf16.msra.mxu0 0
  %324 = vmatprep.subr.bf16.mxu0 0
  %325 = vmatpush2.bf16.msra.mxu0 0
  %326 = vmatprep.subr.bf16.mxu0 0
  %327 = vmatpush2.bf16.msra.mxu0 0
  %328 = vmatprep.subr.bf16.mxu0 0
  %329 = vmatpush2.bf16.msra.mxu0 0
  %330 = vmatprep.subr.bf16.mxu0 0
  %331 = vmatpush2.bf16.msra.mxu0 0
  %332 = vmatprep.subr.bf16.mxu0 0
  %333 = vmatpush2.bf16.msra.mxu0 0
  %334 = vmatprep.subr.bf16.mxu0 0
  %335 = vmatpush2.bf16.msra.mxu0 0
  %336 = vmatprep.mubr.bf16.mxu0 0
  %337 = vmatmul.mubr.bf16.gmra.mxu0 %v252
  %v338 = vpop.f32.mrf.mxu0
  %v339 = vadd.f32 %v233, %v338
  %v340 = vpop.f32.mrf.mxu0
  %v341 = vpop.f32.mrf.mxu0
  %v342 = vadd.f32 %v236, %v341
  %v343 = vpop.f32.mrf.mxu0
  %344 = vmatprep.mubr.bf16.mxu0 0
  %345 = vmatmul.mubr.bf16.gmra.mxu0 %v253
  %v346 = vpop.f32.mrf.mxu0
  %v347 = vadd.f32 %v241, %v346
  %v348 = vpop.f32.mrf.mxu0
  %v349 = vpop.f32.mrf.mxu0
  %v350 = vpop.f32.mrf.mxu0
  %351 = vdwg.mxu0
  %v352 = vld [vmem:[%s2] sm:$0xf]
  %v353 = vld [vmem:[%s2 + $0x4] sm:$0xf]
  %v354 = vld [vmem:[%s2 + $0x8] sm:$0xf]
  %v355 = vld [vmem:[%s9] sm:$0xf]
  %v356 = vld [vmem:[%s9 + $0x4] sm:$0xf]
  %v357 = vld [vmem:[%s9 + $0x8] sm:$0xf]
  %v358 = vld [vmem:[%s9 + $0xc] sm:$0xf]
  %v359 = vld [vmem:[%s9 + $0x10] sm:$0xf]
  %v360 = vld [vmem:[%s9 + $0x14] sm:$0xf]
  %v361 = vld [vmem:[%s9 + $0x18] sm:$0xf]
  %v362 = vld [vmem:[%s9 + $0x1c] sm:$0xf]
  %v363 = vld [vmem:[%s9 + $0x20] sm:$0xf]
  %v364 = vld [vmem:[%s9 + $0x24] sm:$0xf]
  %v365 = vld [vmem:[%s9 + $0x28] sm:$0xf]
  %v366 = vld [vmem:[%s9 + $0x2c] sm:$0xf]
  %v367 = vld [vmem:[%s9 + $0x30] sm:$0xf]
  %v368 = vld [vmem:[%s9 + $0x34] sm:$0xf]
  %v369 = vld [vmem:[%s9 + $0x38] sm:$0xf]
  %v370 = vld [vmem:[%s9 + $0x3c] sm:$0xf]
  %v374 = vunpack.c.l.b16 %v352
  %v375 = vunpack.c.l.b16 %v353
  %v376 = vunpack.c.l.b16 %v354
  %v377 = vpack.c.b16 %v375, %v374
  %v378 = vpack.c.b16 %v376, %v376
  %v397 = vunpack.c.l.b16 %v355
  %v398 = vunpack.c.l.b16 %v356
  %v399 = vunpack.c.l.b16 %v357
  %v400 = vunpack.c.l.b16 %v358
  %v401 = vunpack.c.l.b16 %v359
  %v402 = vunpack.c.l.b16 %v360
  %v403 = vunpack.c.l.b16 %v361
  %v404 = vunpack.c.l.b16 %v362
  %v405 = vunpack.c.l.b16 %v363
  %v406 = vunpack.c.l.b16 %v364
  %v407 = vunpack.c.l.b16 %v365
  %v408 = vunpack.c.l.b16 %v366
  %v409 = vunpack.c.l.b16 %v367
  %v410 = vunpack.c.l.b16 %v368
  %v411 = vunpack.c.l.b16 %v369
  %v412 = vunpack.c.l.b16 %v370
  %v413 = vpack.c.b16 %v398, %v397
  %v414 = vpack.c.b16 %v400, %v399
  %v415 = vpack.c.b16 %v402, %v401
  %v416 = vpack.c.b16 %v404, %v403
  %v417 = vpack.c.b16 %v406, %v405
  %v418 = vpack.c.b16 %v408, %v407
  %v419 = vpack.c.b16 %v410, %v409
  %v420 = vpack.c.b16 %v412, %v411
  %429 = vmatprep.subr.bf16.mxu0 0
  %430 = vmatpush1.bf16.msra.mxu0 %v420
  %431 = vmatprep.subr.bf16.mxu0 0
  %432 = vmatpush1.bf16.msra.mxu0 %v419
  %433 = vmatprep.subr.bf16.mxu0 0
  %434 = vmatpush1.bf16.msra.mxu0 %v418
  %435 = vmatprep.subr.bf16.mxu0 0
  %436 = vmatpush1.bf16.msra.mxu0 %v417
  %437 = vmatprep.subr.bf16.mxu0 0
  %438 = vmatpush1.bf16.msra.mxu0 %v416
  %439 = vmatprep.subr.bf16.mxu0 0
  %440 = vmatpush1.bf16.msra.mxu0 %v415
  %441 = vmatprep.subr.bf16.mxu0 0
  %442 = vmatpush1.bf16.msra.mxu0 %v414
  %443 = vmatprep.subr.bf16.mxu0 0
  %444 = vmatpush1.bf16.msra.mxu0 %v413
  %445 = vmatprep.subr.bf16.mxu0 0
  %446 = vmatpush2.bf16.msra.mxu0 0
  %447 = vmatprep.subr.bf16.mxu0 0
  %448 = vmatpush2.bf16.msra.mxu0 0
  %449 = vmatprep.subr.bf16.mxu0 0
  %450 = vmatpush2.bf16.msra.mxu0 0
  %451 = vmatprep.subr.bf16.mxu0 0
  %452 = vmatpush2.bf16.msra.mxu0 0
  %453 = vmatprep.subr.bf16.mxu0 0
  %454 = vmatpush2.bf16.msra.mxu0 0
  %455 = vmatprep.subr.bf16.mxu0 0
  %456 = vmatpush2.bf16.msra.mxu0 0
  %457 = vmatprep.subr.bf16.mxu0 0
  %458 = vmatpush2.bf16.msra.mxu0 0
  %459 = vmatprep.subr.bf16.mxu0 0
  %460 = vmatpush2.bf16.msra.mxu0 0
  %461 = vmatprep.mubr.bf16.mxu0 0
  %462 = vmatmul.mubr.bf16.gmra.mxu0 %v377
  %v463 = vpop.f32.mrf.mxu0
  %v464 = vadd.f32 0.0, %v463
  %v465 = vpop.f32.mrf.mxu0
  %v466 = vpop.f32.mrf.mxu0
  %v467 = vadd.f32 0.0, %v466
  %v468 = vpop.f32.mrf.mxu0
  %469 = vmatprep.mubr.bf16.mxu0 0
  %470 = vmatmul.mubr.bf16.gmra.mxu0 %v378
  %v471 = vpop.f32.mrf.mxu0
  %v472 = vadd.f32 0.0, %v471
  %v473 = vpop.f32.mrf.mxu0
  %v474 = vpop.f32.mrf.mxu0
  %v475 = vpop.f32.mrf.mxu0
  %476 = vdwg.mxu0
  %v477 = vadd.f32 %v339, %v464
  %v478 = vadd.f32 %v342, %v467
  %v479 = vadd.f32 %v347, %v472
  %v480 = vld [vmem:[%s5] sm:$0xf]
  %vm481 = vcmask 64512
  %v483 = vsel %vm481, %v83, 0
  %v486 = vsel %vm481, %v84, 0
  %vm488 = vcmask 1043456
  %v490 = vsel %vm488, %v480, 0
  %492 = vmatprep.subr.bf16.mxu0 0
  %493 = vmatpush1.bf16.msra.mxu0 0
  %494 = vmatprep.subr.bf16.mxu0 0
  %495 = vmatpush1.bf16.msra.mxu0 0
  %496 = vmatprep.subr.bf16.mxu0 0
  %497 = vmatpush1.bf16.msra.mxu0 0
  %498 = vmatprep.subr.bf16.mxu0 0
  %499 = vmatpush1.bf16.msra.mxu0 0
  %500 = vmatprep.subr.bf16.mxu0 0
  %501 = vmatpush1.bf16.msra.mxu0 0
  %502 = vmatprep.subr.bf16.mxu0 0
  %503 = vmatpush1.bf16.msra.mxu0 0
  %504 = vmatprep.subr.bf16.mxu0 0
  %505 = vmatpush1.bf16.msra.mxu0 0
  %506 = vmatprep.subr.bf16.mxu0 0
  %507 = vmatpush1.bf16.msra.mxu0 %v490
  %508 = vmatprep.subr.bf16.mxu0 0
  %509 = vmatpush2.bf16.msra.mxu0 0
  %510 = vmatprep.subr.bf16.mxu0 0
  %511 = vmatpush2.bf16.msra.mxu0 0
  %512 = vmatprep.subr.bf16.mxu0 0
  %513 = vmatpush2.bf16.msra.mxu0 0
  %514 = vmatprep.subr.bf16.mxu0 0
  %515 = vmatpush2.bf16.msra.mxu0 0
  %516 = vmatprep.subr.bf16.mxu0 0
  %517 = vmatpush2.bf16.msra.mxu0 0
  %518 = vmatprep.subr.bf16.mxu0 0
  %519 = vmatpush2.bf16.msra.mxu0 0
  %520 = vmatprep.subr.bf16.mxu0 0
  %521 = vmatpush2.bf16.msra.mxu0 0
  %522 = vmatprep.subr.bf16.mxu0 0
  %523 = vmatpush2.bf16.msra.mxu0 0
  %524 = vmatprep.mubr.bf16.mxu0 0
  %525 = vmatmul.mubr.bf16.gmra.mxu0 %v483
  %v526 = vpop.f32.mrf.mxu0
  %v527 = vadd.f32 0.0, %v526
  %v528 = vpop.f32.mrf.mxu0
  %v529 = vpop.f32.mrf.mxu0
  %v530 = vadd.f32 0.0, %v529
  %v531 = vpop.f32.mrf.mxu0
  %532 = vmatprep.mubr.bf16.mxu0 0
  %533 = vmatmul.mubr.bf16.gmra.mxu0 %v486
  %v534 = vpop.f32.mrf.mxu0
  %v535 = vadd.f32 0.0, %v534
  %v536 = vpop.f32.mrf.mxu0
  %v537 = vpop.f32.mrf.mxu0
  %v538 = vpop.f32.mrf.mxu0
  %539 = vdwg.mxu0
  %v540 = vadd.f32 %v477, %v527
  %v541 = vadd.f32 %v478, %v530
  %v542 = vadd.f32 %v479, %v535
  %v543 = vld [vmem:[%s10] sm:$0x1]
  %v545 = vlaneseq
  %v546 = vshrl.u32 %v545, 7
  %v547 = vsub.s32 0, %v546
  %v548 = vrot.slane %v543, %v547
  %v550 = vadd.f32 %v540, %v548
  %v551 = vadd.f32 %v541, %v548
  %v552 = vadd.f32 %v542, %v548
  %v553 = vmax.f32 %v550, 0.0
  %v554 = vmax.f32 %v551, 0.0
  %v555 = vmax.f32 %v552, 0.0
  %v556 = vpack.c.bf16 %v554, %v553
  %v557 = vpack.c.bf16 %v555, %v555
  %v560 = vunpack.c.l.b16 %v556
  %v561 = vunpack.c.h.b16 %v556
  %v562 = vunpack.c.l.b16 %v557
  %v563 = vpack.c.b16 %v560, %v560
  %v564 = vpack.c.b16 %v561, %v561
  %v565 = vpack.c.b16 %v562, %v562
  %569 = vst [vmem:[%s15] sm:$0xf] %v563
  %570 = vst [vmem:[%s15 + $0x4] sm:$0xf] %v564
  %571 = vst [vmem:[%s15 + $0x8] sm:$0xf] %v565
  %572 = vxpose.xlu0.c.b16.start [1/8] %v106, 128
  %573 = vxpose.xlu0.c.b16.cont [2/8] %v107, 128
  %574 = vxpose.xlu0.c.b16.cont [3/8] 0, 128
  %575 = vxpose.xlu0.c.b16.cont [4/8] 0, 128
  %576 = vxpose.xlu0.c.b16.cont [5/8] 0, 128
  %577 = vxpose.xlu0.c.b16.cont [6/8] 0, 128
  %578 = vxpose.xlu0.c.b16.cont [7/8] 0, 128
  %579 = vxpose.xlu0.c.b16.end [8/8] 0, 128
  %v580 = vpop.trf.xlu0
  %v581 = vpop.trf.xlu0
  %v582 = vpop.trf.xlu0
  %v583 = vpop.trf.xlu0
  %v584 = vpop.trf.xlu0
  %v585 = vpop.trf.xlu0
  %v586 = vpop.trf.xlu0
  %v587 = vpop.trf.xlu0
  %vm588 = vcmask 195584
  %v590 = vsel %vm588, %v580, 0
  %v593 = vsel %vm488, %v557, 0
  %595 = vmatprep.subr.bf16.mxu0 0
  %596 = vmatpush1.bf16.msra.mxu0 0
  %597 = vmatprep.subr.bf16.mxu0 0
  %598 = vmatpush1.bf16.msra.mxu0 0
  %599 = vmatprep.subr.bf16.mxu0 0
  %600 = vmatpush1.bf16.msra.mxu0 0
  %601 = vmatprep.subr.bf16.mxu0 0
  %602 = vmatpush1.bf16.msra.mxu0 0
  %603 = vmatprep.subr.bf16.mxu0 0
  %604 = vmatpush1.bf16.msra.mxu0 0
  %605 = vmatprep.subr.bf16.mxu0 0
  %606 = vmatpush1.bf16.msra.mxu0 0
  %607 = vmatprep.subr.bf16.mxu0 0
  %608 = vmatpush1.bf16.msra.mxu0 %v593
  %609 = vmatprep.subr.bf16.mxu0 0
  %610 = vmatpush1.bf16.msra.mxu0 %v556
  %611 = vmatprep.subr.bf16.mxu0 0
  %612 = vmatpush2.bf16.msra.mxu0 0
  %613 = vmatprep.subr.bf16.mxu0 0
  %614 = vmatpush2.bf16.msra.mxu0 0
  %615 = vmatprep.subr.bf16.mxu0 0
  %616 = vmatpush2.bf16.msra.mxu0 0
  %617 = vmatprep.subr.bf16.mxu0 0
  %618 = vmatpush2.bf16.msra.mxu0 0
  %619 = vmatprep.subr.bf16.mxu0 0
  %620 = vmatpush2.bf16.msra.mxu0 0
  %621 = vmatprep.subr.bf16.mxu0 0
  %622 = vmatpush2.bf16.msra.mxu0 0
  %623 = vmatprep.subr.bf16.mxu0 0
  %624 = vmatpush2.bf16.msra.mxu0 0
  %625 = vmatprep.subr.bf16.mxu0 0
  %626 = vmatpush2.bf16.msra.mxu0 0
  %627 = vmatprep.mubr.bf16.mxu0 0
  %628 = vmatmul.mubr.bf16.gmra.mxu0 %v590
  %v629 = vpop.f32.mrf.mxu0
  %v630 = vadd.f32 0.0, %v629
  %v631 = vpop.f32.mrf.mxu0
  %v632 = vpop.f32.mrf.mxu0
  %v633 = vpop.f32.mrf.mxu0
  %634 = vdwg.mxu0
  %635 = vst [vmem:[%s17] sm:$0xff] %v630
  %v636 = vld [vmem:[%s11] sm:$0xf]
  %v637 = vld [vmem:[%s11 + $0x4] sm:$0xf]
  %v638 = vld [vmem:[%s11 + $0x8] sm:$0xf]
  %v639 = vld [vmem:[%s11 + $0xc] sm:$0xf]
  %v640 = vld [vmem:[%s11 + $0x10] sm:$0xf]
  %v641 = vld [vmem:[%s11 + $0x14] sm:$0xf]
  %v642 = vld [vmem:[%s11 + $0x18] sm:$0xf]
  %v643 = vld [vmem:[%s11 + $0x1c] sm:$0xf]
  %v644 = vld [vmem:[%s11 + $0x20] sm:$0xf]
  %v645 = vld [vmem:[%s11 + $0x24] sm:$0xf]
  %v646 = vld [vmem:[%s11 + $0x28] sm:$0xf]
  %v647 = vld [vmem:[%s11 + $0x2c] sm:$0xf]
  %v648 = vld [vmem:[%s11 + $0x30] sm:$0xf]
  %v649 = vld [vmem:[%s11 + $0x34] sm:$0xf]
  %v650 = vld [vmem:[%s11 + $0x38] sm:$0xf]
  %v651 = vld [vmem:[%s11 + $0x3c] sm:$0xf]
  %v652 = vld [vmem:[%s12] sm:$0xf]
  %v653 = vld [vmem:[%s12 + $0x4] sm:$0xf]
  %v654 = vld [vmem:[%s12 + $0x8] sm:$0xf]
  %v655 = vld [vmem:[%s12 + $0xc] sm:$0xf]
  %v656 = vld [vmem:[%s12 + $0x10] sm:$0xf]
  %v657 = vld [vmem:[%s12 + $0x14] sm:$0xf]
  %v658 = vld [vmem:[%s12 + $0x18] sm:$0xf]
  %v659 = vld [vmem:[%s12 + $0x1c] sm:$0xf]
  %v660 = vld [vmem:[%s12 + $0x20] sm:$0xf]
  %v661 = vld [vmem:[%s12 + $0x24] sm:$0xf]
  %v662 = vld [vmem:[%s12 + $0x28] sm:$0xf]
  %v663 = vld [vmem:[%s12 + $0x2c] sm:$0xf]
  %v664 = vld [vmem:[%s12 + $0x30] sm:$0xf]
  %v665 = vld [vmem:[%s12 + $0x34] sm:$0xf]
  %v666 = vld [vmem:[%s12 + $0x38] sm:$0xf]
  %v667 = vld [vmem:[%s12 + $0x3c] sm:$0xf]
  %v684 = vunpack.c.l.b16 %v652
  %v685 = vunpack.c.l.b16 %v653
  %v686 = vunpack.c.l.b16 %v654
  %v687 = vunpack.c.l.b16 %v655
  %v688 = vunpack.c.l.b16 %v656
  %v689 = vunpack.c.l.b16 %v657
  %v690 = vunpack.c.l.b16 %v658
  %v691 = vunpack.c.l.b16 %v659
  %v692 = vunpack.c.l.b16 %v660
  %v693 = vunpack.c.l.b16 %v661
  %v694 = vunpack.c.l.b16 %v662
  %v695 = vunpack.c.l.b16 %v663
  %v696 = vunpack.c.l.b16 %v664
  %v697 = vunpack.c.l.b16 %v665
  %v698 = vunpack.c.l.b16 %v666
  %v699 = vunpack.c.l.b16 %v667
  %v700 = vpack.c.b16 %v685, %v684
  %v701 = vpack.c.b16 %v687, %v686
  %v702 = vpack.c.b16 %v689, %v688
  %v703 = vpack.c.b16 %v691, %v690
  %v704 = vpack.c.b16 %v693, %v692
  %v705 = vpack.c.b16 %v695, %v694
  %v706 = vpack.c.b16 %v697, %v696
  %v707 = vpack.c.b16 %v699, %v698
  %716 = vmatprep.subr.bf16.mxu0 0
  %717 = vmatpush1.bf16.msra.mxu0 %v707
  %718 = vmatprep.subr.bf16.mxu0 0
  %719 = vmatpush1.bf16.msra.mxu0 %v706
  %720 = vmatprep.subr.bf16.mxu0 0
  %721 = vmatpush1.bf16.msra.mxu0 %v705
  %722 = vmatprep.subr.bf16.mxu0 0
  %723 = vmatpush1.bf16.msra.mxu0 %v704
  %724 = vmatprep.subr.bf16.mxu0 0
  %725 = vmatpush1.bf16.msra.mxu0 %v703
  %726 = vmatprep.subr.bf16.mxu0 0
  %727 = vmatpush1.bf16.msra.mxu0 %v702
  %728 = vmatprep.subr.bf16.mxu0 0
  %729 = vmatpush1.bf16.msra.mxu0 %v701
  %730 = vmatprep.subr.bf16.mxu0 0
  %731 = vmatpush1.bf16.msra.mxu0 %v700
  %732 = vmatprep.subr.bf16.mxu0 0
  %733 = vmatpush2.bf16.msra.mxu0 0
  %734 = vmatprep.subr.bf16.mxu0 0
  %735 = vmatpush2.bf16.msra.mxu0 0
  %736 = vmatprep.subr.bf16.mxu0 0
  %737 = vmatpush2.bf16.msra.mxu0 0
  %738 = vmatprep.subr.bf16.mxu0 0
  %739 = vmatpush2.bf16.msra.mxu0 0
  %740 = vmatprep.subr.bf16.mxu0 0
  %741 = vmatpush2.bf16.msra.mxu0 0
  %742 = vmatprep.subr.bf16.mxu0 0
  %743 = vmatpush2.bf16.msra.mxu0 0
  %744 = vmatprep.subr.bf16.mxu0 0
  %745 = vmatpush2.bf16.msra.mxu0 0
  %746 = vmatprep.subr.bf16.mxu0 0
  %747 = vmatpush2.bf16.msra.mxu0 0
  %748 = vmatprep.mubr.bf16.mxu0 0
  %749 = vmatmul.mubr.bf16.gmra.mxu0 %v252
  %v750 = vpop.f32.mrf.mxu0
  %v751 = vadd.f32 0.0, %v750
  %v752 = vpop.f32.mrf.mxu0
  %v753 = vpop.f32.mrf.mxu0
  %v754 = vadd.f32 0.0, %v753
  %v755 = vpop.f32.mrf.mxu0
  %756 = vmatprep.mubr.bf16.mxu0 0
  %757 = vmatmul.mubr.bf16.gmra.mxu0 %v253
  %v758 = vpop.f32.mrf.mxu0
  %v759 = vadd.f32 0.0, %v758
  %v760 = vpop.f32.mrf.mxu0
  %v761 = vpop.f32.mrf.mxu0
  %v762 = vpop.f32.mrf.mxu0
  %763 = vdwg.mxu0
  %v780 = vunpack.c.l.b16 %v636
  %v781 = vunpack.c.l.b16 %v637
  %v782 = vunpack.c.l.b16 %v638
  %v783 = vunpack.c.l.b16 %v639
  %v784 = vunpack.c.l.b16 %v640
  %v785 = vunpack.c.l.b16 %v641
  %v786 = vunpack.c.l.b16 %v642
  %v787 = vunpack.c.l.b16 %v643
  %v788 = vunpack.c.l.b16 %v644
  %v789 = vunpack.c.l.b16 %v645
  %v790 = vunpack.c.l.b16 %v646
  %v791 = vunpack.c.l.b16 %v647
  %v792 = vunpack.c.l.b16 %v648
  %v793 = vunpack.c.l.b16 %v649
  %v794 = vunpack.c.l.b16 %v650
  %v795 = vunpack.c.l.b16 %v651
  %v796 = vpack.c.b16 %v781, %v780
  %v797 = vpack.c.b16 %v783, %v782
  %v798 = vpack.c.b16 %v785, %v784
  %v799 = vpack.c.b16 %v787, %v786
  %v800 = vpack.c.b16 %v789, %v788
  %v801 = vpack.c.b16 %v791, %v790
  %v802 = vpack.c.b16 %v793, %v792
  %v803 = vpack.c.b16 %v795, %v794
  %812 = vmatprep.subr.bf16.mxu0 0
  %813 = vmatpush1.bf16.msra.mxu0 %v803
  %814 = vmatprep.subr.bf16.mxu0 0
  %815 = vmatpush1.bf16.msra.mxu0 %v802
  %816 = vmatprep.subr.bf16.mxu0 0
  %817 = vmatpush1.bf16.msra.mxu0 %v801
  %818 = vmatprep.subr.bf16.mxu0 0
  %819 = vmatpush1.bf16.msra.mxu0 %v800
  %820 = vmatprep.subr.bf16.mxu0 0
  %821 = vmatpush1.bf16.msra.mxu0 %v799
  %822 = vmatprep.subr.bf16.mxu0 0
  %823 = vmatpush1.bf16.msra.mxu0 %v798
  %824 = vmatprep.subr.bf16.mxu0 0
  %825 = vmatpush1.bf16.msra.mxu0 %v797
  %826 = vmatprep.subr.bf16.mxu0 0
  %827 = vmatpush1.bf16.msra.mxu0 %v796
  %828 = vmatprep.subr.bf16.mxu0 0
  %829 = vmatpush2.bf16.msra.mxu0 0
  %830 = vmatprep.subr.bf16.mxu0 0
  %831 = vmatpush2.bf16.msra.mxu0 0
  %832 = vmatprep.subr.bf16.mxu0 0
  %833 = vmatpush2.bf16.msra.mxu0 0
  %834 = vmatprep.subr.bf16.mxu0 0
  %835 = vmatpush2.bf16.msra.mxu0 0
  %836 = vmatprep.subr.bf16.mxu0 0
  %837 = vmatpush2.bf16.msra.mxu0 0
  %838 = vmatprep.subr.bf16.mxu0 0
  %839 = vmatpush2.bf16.msra.mxu0 0
  %840 = vmatprep.subr.bf16.mxu0 0
  %841 = vmatpush2.bf16.msra.mxu0 0
  %842 = vmatprep.subr.bf16.mxu0 0
  %843 = vmatpush2.bf16.msra.mxu0 0
  %844 = vmatprep.mubr.bf16.mxu0 0
  %845 = vmatmul.mubr.bf16.gmra.mxu0 %v146
  %v846 = vpop.f32.mrf.mxu0
  %v847 = vadd.f32 %v751, %v846
  %v848 = vpop.f32.mrf.mxu0
  %v849 = vpop.f32.mrf.mxu0
  %v850 = vadd.f32 %v754, %v849
  %v851 = vpop.f32.mrf.mxu0
  %852 = vmatprep.mubr.bf16.mxu0 0
  %853 = vmatmul.mubr.bf16.gmra.mxu0 %v147
  %v854 = vpop.f32.mrf.mxu0
  %v855 = vadd.f32 %v759, %v854
  %v856 = vpop.f32.mrf.mxu0
  %v857 = vpop.f32.mrf.mxu0
  %v858 = vpop.f32.mrf.mxu0
  %859 = vdwg.mxu0
  %v860 = vld [vmem:[%s13] sm:$0xf]
  %v861 = vld [vmem:[%s13 + $0x4] sm:$0xf]
  %v862 = vld [vmem:[%s13 + $0x8] sm:$0xf]
  %v863 = vld [vmem:[%s13 + $0xc] sm:$0xf]
  %v864 = vld [vmem:[%s13 + $0x10] sm:$0xf]
  %v865 = vld [vmem:[%s13 + $0x14] sm:$0xf]
  %v866 = vld [vmem:[%s13 + $0x18] sm:$0xf]
  %v867 = vld [vmem:[%s13 + $0x1c] sm:$0xf]
  %v868 = vld [vmem:[%s13 + $0x20] sm:$0xf]
  %v869 = vld [vmem:[%s13 + $0x24] sm:$0xf]
  %v870 = vld [vmem:[%s13 + $0x28] sm:$0xf]
  %v871 = vld [vmem:[%s13 + $0x2c] sm:$0xf]
  %v872 = vld [vmem:[%s13 + $0x30] sm:$0xf]
  %v873 = vld [vmem:[%s13 + $0x34] sm:$0xf]
  %v874 = vld [vmem:[%s13 + $0x38] sm:$0xf]
  %v875 = vld [vmem:[%s13 + $0x3c] sm:$0xf]
  %v892 = vunpack.c.l.b16 %v860
  %v893 = vunpack.c.l.b16 %v861
  %v894 = vunpack.c.l.b16 %v862
  %v895 = vunpack.c.l.b16 %v863
  %v896 = vunpack.c.l.b16 %v864
  %v897 = vunpack.c.l.b16 %v865
  %v898 = vunpack.c.l.b16 %v866
  %v899 = vunpack.c.l.b16 %v867
  %v900 = vunpack.c.l.b16 %v868
  %v901 = vunpack.c.l.b16 %v869
  %v902 = vunpack.c.l.b16 %v870
  %v903 = vunpack.c.l.b16 %v871
  %v904 = vunpack.c.l.b16 %v872
  %v905 = vunpack.c.l.b16 %v873
  %v906 = vunpack.c.l.b16 %v874
  %v907 = vunpack.c.l.b16 %v875
  %v908 = vpack.c.b16 %v893, %v892
  %v909 = vpack.c.b16 %v895, %v894
  %v910 = vpack.c.b16 %v897, %v896
  %v911 = vpack.c.b16 %v899, %v898
  %v912 = vpack.c.b16 %v901, %v900
  %v913 = vpack.c.b16 %v903, %v902
  %v914 = vpack.c.b16 %v905, %v904
  %v915 = vpack.c.b16 %v907, %v906
  %924 = vmatprep.subr.bf16.mxu0 0
  %925 = vmatpush1.bf16.msra.mxu0 %v915
  %926 = vmatprep.subr.bf16.mxu0 0
  %927 = vmatpush1.bf16.msra.mxu0 %v914
  %928 = vmatprep.subr.bf16.mxu0 0
  %929 = vmatpush1.bf16.msra.mxu0 %v913
  %930 = vmatprep.subr.bf16.mxu0 0
  %931 = vmatpush1.bf16.msra.mxu0 %v912
  %932 = vmatprep.subr.bf16.mxu0 0
  %933 = vmatpush1.bf16.msra.mxu0 %v911
  %934 = vmatprep.subr.bf16.mxu0 0
  %935 = vmatpush1.bf16.msra.mxu0 %v910
  %936 = vmatprep.subr.bf16.mxu0 0
  %937 = vmatpush1.bf16.msra.mxu0 %v909
  %938 = vmatprep.subr.bf16.mxu0 0
  %939 = vmatpush1.bf16.msra.mxu0 %v908
  %940 = vmatprep.subr.bf16.mxu0 0
  %941 = vmatpush2.bf16.msra.mxu0 0
  %942 = vmatprep.subr.bf16.mxu0 0
  %943 = vmatpush2.bf16.msra.mxu0 0
  %944 = vmatprep.subr.bf16.mxu0 0
  %945 = vmatpush2.bf16.msra.mxu0 0
  %946 = vmatprep.subr.bf16.mxu0 0
  %947 = vmatpush2.bf16.msra.mxu0 0
  %948 = vmatprep.subr.bf16.mxu0 0
  %949 = vmatpush2.bf16.msra.mxu0 0
  %950 = vmatprep.subr.bf16.mxu0 0
  %951 = vmatpush2.bf16.msra.mxu0 0
  %952 = vmatprep.subr.bf16.mxu0 0
  %953 = vmatpush2.bf16.msra.mxu0 0
  %954 = vmatprep.subr.bf16.mxu0 0
  %955 = vmatpush2.bf16.msra.mxu0 0
  %956 = vmatprep.mubr.bf16.mxu0 0
  %957 = vmatmul.mubr.bf16.gmra.mxu0 %v556
  %v958 = vpop.f32.mrf.mxu0
  %v959 = vadd.f32 0.0, %v958
  %v960 = vpop.f32.mrf.mxu0
  %v961 = vpop.f32.mrf.mxu0
  %v962 = vadd.f32 0.0, %v961
  %v963 = vpop.f32.mrf.mxu0
  %964 = vmatprep.mubr.bf16.mxu0 0
  %965 = vmatmul.mubr.bf16.gmra.mxu0 %v557
  %v966 = vpop.f32.mrf.mxu0
  %v967 = vadd.f32 0.0, %v966
  %v968 = vpop.f32.mrf.mxu0
  %v969 = vpop.f32.mrf.mxu0
  %v970 = vpop.f32.mrf.mxu0
  %971 = vdwg.mxu0
  %v972 = vadd.f32 %v847, %v959
  %v973 = vadd.f32 %v850, %v962
  %v974 = vadd.f32 %v855, %v967
  %v975 = vld [vmem:[%s6] sm:$0xf]
  %v977 = vsel %vm481, %v106, 0
  %v980 = vsel %vm481, %v107, 0
  %v983 = vsel %vm488, %v975, 0
  %985 = vmatprep.subr.bf16.mxu0 0
  %986 = vmatpush1.bf16.msra.mxu0 0
  %987 = vmatprep.subr.bf16.mxu0 0
  %988 = vmatpush1.bf16.msra.mxu0 0
  %989 = vmatprep.subr.bf16.mxu0 0
  %990 = vmatpush1.bf16.msra.mxu0 0
  %991 = vmatprep.subr.bf16.mxu0 0
  %992 = vmatpush1.bf16.msra.mxu0 0
  %993 = vmatprep.subr.bf16.mxu0 0
  %994 = vmatpush1.bf16.msra.mxu0 0
  %995 = vmatprep.subr.bf16.mxu0 0
  %996 = vmatpush1.bf16.msra.mxu0 0
  %997 = vmatprep.subr.bf16.mxu0 0
  %998 = vmatpush1.bf16.msra.mxu0 0
  %999 = vmatprep.subr.bf16.mxu0 0
  %1000 = vmatpush1.bf16.msra.mxu0 %v983
  %1001 = vmatprep.subr.bf16.mxu0 0
  %1002 = vmatpush2.bf16.msra.mxu0 0
  %1003 = vmatprep.subr.bf16.mxu0 0
  %1004 = vmatpush2.bf16.msra.mxu0 0
  %1005 = vmatprep.subr.bf16.mxu0 0
  %1006 = vmatpush2.bf16.msra.mxu0 0
  %1007 = vmatprep.subr.bf16.mxu0 0
  %1008 = vmatpush2.bf16.msra.mxu0 0
  %1009 = vmatprep.subr.bf16.mxu0 0
  %1010 = vmatpush2.bf16.msra.mxu0 0
  %1011 = vmatprep.subr.bf16.mxu0 0
  %1012 = vmatpush2.bf16.msra.mxu0 0
  %1013 = vmatprep.subr.bf16.mxu0 0
  %1014 = vmatpush2.bf16.msra.mxu0 0
  %1015 = vmatprep.subr.bf16.mxu0 0
  %1016 = vmatpush2.bf16.msra.mxu0 0
  %1017 = vmatprep.mubr.bf16.mxu0 0
  %1018 = vmatmul.mubr.bf16.gmra.mxu0 %v977
  %v1019 = vpop.f32.mrf.mxu0
  %v1020 = vadd.f32 0.0, %v1019
  %v1021 = vpop.f32.mrf.mxu0
  %v1022 = vpop.f32.mrf.mxu0
  %v1023 = vadd.f32 0.0, %v1022
  %v1024 = vpop.f32.mrf.mxu0
  %1025 = vmatprep.mubr.bf16.mxu0 0
  %1026 = vmatmul.mubr.bf16.gmra.mxu0 %v980
  %v1027 = vpop.f32.mrf.mxu0
  %v1028 = vadd.f32 0.0, %v1027
  %v1029 = vpop.f32.mrf.mxu0
  %v1030 = vpop.f32.mrf.mxu0
  %v1031 = vpop.f32.mrf.mxu0
  %1032 = vdwg.mxu0
  %v1033 = vadd.f32 %v972, %v1020
  %v1034 = vadd.f32 %v973, %v1023
  %v1035 = vadd.f32 %v974, %v1028
  %v1036 = vld [vmem:[%s14] sm:$0x1]
  %v1038 = vlaneseq
  %v1039 = vshrl.u32 %v1038, 7
  %v1040 = vsub.s32 0, %v1039
  %v1041 = vrot.slane %v1036, %v1040
  %v1043 = vadd.f32 %v1033, %v1041
  %v1044 = vadd.f32 %v1034, %v1041
  %v1045 = vadd.f32 %v1035, %v1041
  %v1046 = vmax.f32 %v1043, 0.0
  %v1047 = vmax.f32 %v1044, 0.0
  %v1048 = vmax.f32 %v1045, 0.0
  %v1049 = vpack.c.bf16 %v1047, %v1046
  %v1050 = vpack.c.bf16 %v1048, %v1048
  %v1053 = vunpack.c.l.b16 %v1049
  %v1054 = vunpack.c.h.b16 %v1049
  %v1055 = vunpack.c.l.b16 %v1050
  %v1056 = vpack.c.b16 %v1053, %v1053
  %v1057 = vpack.c.b16 %v1054, %v1054
  %v1058 = vpack.c.b16 %v1055, %v1055
  %1062 = vst [vmem:[%s16] sm:$0xf] %v1056
  %1063 = vst [vmem:[%s16 + $0x4] sm:$0xf] %v1057
  %1064 = vst [vmem:[%s16 + $0x8] sm:$0xf] %v1058
  // Predicated region
  $region62: #{mpnn_forward.6} parent=0 // pred_check
    _
  $region63: #{mpnn_forward.6} parent=0 // pred_check_branch
    %1066 = sbr.rel (0) target = $region65
  $region64: #{mpnn_forward.6} parent=0 // pred_region
    _
  $region65: #{mpnn_forward.6} parent=0 // pred_fallthru
    _
  // Predicated region
  $region66: #{mpnn_forward.6} parent=0 // pred_check
    _
  $region67: #{mpnn_forward.6} parent=0 // pred_check_branch
    %1068 = sbr.rel (0) target = $region69
  $region68: #{mpnn_forward.6} parent=0 // pred_region
    _
  $region69: #{mpnn_forward.6} parent=0 // pred_fallthru
    _
  // Predicated region
  $region70: #{mpnn_forward.6} parent=0 // pred_check
    _
  $region71: #{mpnn_forward.6} parent=0 // pred_check_branch
    %1070 = sbr.rel (0) target = $region73
  $region72: #{mpnn_forward.6} parent=0 // pred_region
    _
  $region73: #{mpnn_forward.6} parent=0 // pred_fallthru
    _
  // Predicated region
  $region74: #{mpnn_forward.6} parent=0 // pred_check
    _
  $region75: #{mpnn_forward.6} parent=0 // pred_check_branch
    %1072 = sbr.rel (0) target = $region77
  $region76: #{mpnn_forward.6} parent=0 // pred_region
    _
  $region77: #{mpnn_forward.6} parent=0 // pred_fallthru
    _
  // Predicated region
  $region78: #{mpnn_forward.6} parent=0 // pred_check
    _
  $region79: #{mpnn_forward.6} parent=0 // pred_check_branch
    %1074 = sbr.rel (0) target = $region81
  $region80: #{mpnn_forward.6} parent=0 // pred_region
    _
  $region81: #{mpnn_forward.6} parent=0 // pred_fallthru
    _
  // Predicated region
  $region82: #{mpnn_forward.6} parent=0 // pred_check
    _
  $region83: #{mpnn_forward.6} parent=0 // pred_check_branch
    %1076 = sbr.rel (0) target = $region85
  $region84: #{mpnn_forward.6} parent=0 // pred_region
    _
  $region85: #{mpnn_forward.6} parent=0 // pred_fallthru
    _

// kernel: mpnn_forward.11
$region0: #{mpnn_forward.11}
  #allocation0 [shape = 'u32[]', space=smem, size = 0x4, offset = 0x4, fixed_abs, tag = 'smem constant byte address 0x4 - core index']
  #allocation1 [shape = 'u32[144,128]{1,0:T(1,128)}', space=vmem, size = 0x12000, scoped, tag = 'internal scratch']
  #allocation2 [shape = 'f32[16,128]{1,0:T(8,128)}', space=vmem, size = 0x2000, scoped, tag = 'scratch operand']
  #allocation3 [shape = 's32[1]{0}', space=sflag, size = 0x4, scoped, tag = 'scoped memory for mpnn_forward.11']
  #allocation4 [shape = 's32[1]{0:T(128)S(6)}', space=smem, size = 0x200, scoped, tag = 'prefetched SMEM operand 0']
  #allocation5 [shape = 's32[1]{0:T(128)S(6)}', space=smem, size = 0x200, scoped, tag = 'prefetched SMEM operand 1']
  %s0 = inlined_call_operand.<no memory space> [shape: s32[1], index: 0, kind: input, shape index: {}]
  %s1 = inlined_call_operand.<no memory space> [shape: s32[1], index: 1, kind: input, shape index: {}]
  %s2 = inlined_call_operand.vmem [shape: s32[1,24], index: 2, kind: input, shape index: {}]
  %s3 = inlined_call_operand.vmem [shape: bf16[24,128], index: 3, kind: input, shape index: {}]
  %s4 = inlined_call_operand.vmem [shape: bf16[16,128], index: 4, kind: input, shape index: {}]
  %s5 = inlined_call_operand.vmem [shape: s32[16,1], index: 5, kind: input, shape index: {}]
  %s6 = inlined_call_operand.vmem [shape: bf16[8,128], index: 6, kind: input, shape index: {}]
  %s7 = inlined_call_operand.vmem [shape: bf16[128,128], index: 7, kind: input, shape index: {}]
  %s8 = inlined_call_operand.vmem [shape: bf16[128,128], index: 8, kind: input, shape index: {}]
  %s9 = inlined_call_operand.vmem [shape: f32[1,128], index: 9, kind: input, shape index: {}]
  %s10 = inlined_call_operand.vmem [shape: bf16[16,128], index: 10, kind: output, shape index: {0}]
  %s11 = inlined_call_operand.vmem [shape: f32[1,8,128], index: 11, kind: output, shape index: {1}]
  %12 = xla_tuple %s10, %s11
  %s13 = sld [smem:[#allocation0]]
  $region62: #{mpnn_forward.11} parent=0
    _
  %s15 = ssub.s32 1, %s13
  %s16 = scalar_select 0, %s15, %s13
  %17 = sst [smem:[#allocation4]] %s0
  %18 = sst [smem:[#allocation5]] %s1
  // Predicated region
  $region2: #{mpnn_forward.11} parent=0 // pred_check
    _
  $region3: #{mpnn_forward.11} parent=0 // pred_check_branch
    %20 = sbr.rel (0) target = $region5
  $region4: #{mpnn_forward.11} parent=0 // pred_region
    %s21 = sld [smem:[#allocation4]]
    %s22 = sld [smem:[#allocation5]]
    %p23 = scmp.gt.s32.totalorder %s22, 1
    %s24 = scalar_select %p23, %s22, 1
    %s25 = ssub.s32 %s24, 1
    %p26 = scmp.lt.s32.totalorder 0, %s25
    %s27 = scalar_select %p26, 0, %s25
    %s28 = sadd.s32 %s21, %s27
    %p29 = scmp.lt.s32.totalorder %s28, 0
    %s30 = scalar_select %p29, %s28, 0
    %s31 = scalar_lea.vmem %s2, %s30
    %s32 = sld [smem:[#allocation4]]
    %s33 = sld [smem:[#allocation5]]
    %p34 = scmp.gt.s32.totalorder %s33, 1
    %s35 = scalar_select %p34, %s33, 1
    %s36 = ssub.s32 %s35, 1
    %p37 = scmp.lt.s32.totalorder 0, %s36
    %s38 = scalar_select %p37, 0, %s36
    %s39 = sadd.s32 %s32, %s38
  $region5: #{mpnn_forward.11} parent=0 // pred_fallthru
    _
  // Predicated region
  $region6: #{mpnn_forward.11} parent=0 // pred_check
    _
  $region7: #{mpnn_forward.11} parent=0 // pred_check_branch
    %41 = sbr.rel (0) target = $region9
  $region8: #{mpnn_forward.11} parent=0 // pred_region
    %s42 = sld [smem:[#allocation4]]
    %s43 = sld [smem:[#allocation5]]
    %p44 = scmp.gt.s32.totalorder %s43, 1
    %s45 = scalar_select %p44, %s43, 1
    %s46 = ssub.s32 %s45, 1
    %p47 = scmp.lt.s32.totalorder 0, %s46
    %s48 = scalar_select %p47, 0, %s46
    %s49 = sadd.s32 %s42, %s48
    %s50 = smul.u32 3, %s49
    %p51 = scmp.lt.s32.totalorder %s50, 2
    %s52 = scalar_select %p51, %s50, 2
    %s53 = smul.addr %s52, 4
    %s54 = scalar_lea.vmem %s3, %s53
    %s55 = sld [smem:[#allocation4]]
    %s56 = sld [smem:[#allocation5]]
    %p57 = scmp.gt.s32.totalorder %s56, 1
    %s58 = scalar_select %p57, %s56, 1
    %s59 = ssub.s32 %s58, 1
    %p60 = scmp.lt.s32.totalorder 0, %s59
    %s61 = scalar_select %p60, 0, %s59
    %s62 = sadd.s32 %s55, %s61
    %s63 = smul.u32 3, %s62
  $region9: #{mpnn_forward.11} parent=0 // pred_fallthru
    _
  // Predicated region
  $region10: #{mpnn_forward.11} parent=0 // pred_check
    _
  $region11: #{mpnn_forward.11} parent=0 // pred_check_branch
    %65 = sbr.rel (0) target = $region13
  $region12: #{mpnn_forward.11} parent=0 // pred_region
    _
  $region13: #{mpnn_forward.11} parent=0 // pred_fallthru
    _
  // Predicated region
  $region14: #{mpnn_forward.11} parent=0 // pred_check
    _
  $region15: #{mpnn_forward.11} parent=0 // pred_check_branch
    %67 = sbr.rel (0) target = $region17
  $region16: #{mpnn_forward.11} parent=0 // pred_region
    _
  $region17: #{mpnn_forward.11} parent=0 // pred_fallthru
    _
  // Predicated region
  $region18: #{mpnn_forward.11} parent=0 // pred_check
    _
  $region19: #{mpnn_forward.11} parent=0 // pred_check_branch
    %69 = sbr.rel (0) target = $region21
  $region20: #{mpnn_forward.11} parent=0 // pred_region
    _
  $region21: #{mpnn_forward.11} parent=0 // pred_fallthru
    _
  // Predicated region
  $region22: #{mpnn_forward.11} parent=0 // pred_check
    _
  $region23: #{mpnn_forward.11} parent=0 // pred_check_branch
    %71 = sbr.rel (0) target = $region25
  $region24: #{mpnn_forward.11} parent=0 // pred_region
    _
  $region25: #{mpnn_forward.11} parent=0 // pred_fallthru
    _
  // Predicated region
  $region26: #{mpnn_forward.11} parent=0 // pred_check
    _
  $region27: #{mpnn_forward.11} parent=0 // pred_check_branch
    %73 = sbr.rel (0) target = $region29
  $region28: #{mpnn_forward.11} parent=0 // pred_region
    _
  $region29: #{mpnn_forward.11} parent=0 // pred_fallthru
    _
  // Predicated region
  $region30: #{mpnn_forward.11} parent=0 // pred_check
    _
  $region31: #{mpnn_forward.11} parent=0 // pred_check_branch
    %75 = sbr.rel (0) target = $region33
  $region32: #{mpnn_forward.11} parent=0 // pred_region
    _
  $region33: #{mpnn_forward.11} parent=0 // pred_fallthru
    _
  %s76 = sld [smem:[#allocation4]]
  %s77 = sld [smem:[#allocation5]]
  %p78 = scmp.gt.s32.totalorder %s77, 1
  %s79 = scalar_select %p78, %s77, 1
  %s80 = ssub.s32 %s79, 1
  %p81 = scmp.lt.s32.totalorder 0, %s80
  %s82 = scalar_select %p81, 0, %s80
  %s83 = sadd.s32 %s76, %s82
  %p84 = scmp.lt.s32.totalorder %s83, 0
  %s85 = scalar_select %p84, %s83, 0
  %s86 = scalar_lea.vmem %s2, %s85
  %s87 = sld [smem:[#allocation4]]
  %s88 = sld [smem:[#allocation5]]
  %p89 = scmp.gt.s32.totalorder %s88, 1
  %s90 = scalar_select %p89, %s88, 1
  %s91 = ssub.s32 %s90, 1
  %p92 = scmp.lt.s32.totalorder 0, %s91
  %s93 = scalar_select %p92, 0, %s91
  %s94 = sadd.s32 %s87, %s93
  %s95 = smul.u32 3, %s94
  %p96 = scmp.lt.s32.totalorder %s95, 2
  %s97 = scalar_select %p96, %s95, 2
  %s98 = smul.addr %s97, 4
  %s99 = scalar_lea.vmem %s3, %s98
  %s100 = sld [smem:[#allocation4]]
  %s101 = sld [smem:[#allocation5]]
  %p102 = scmp.gt.s32.totalorder %s101, 1
  %s103 = scalar_select %p102, %s101, 1
  %s104 = ssub.s32 %s103, 1
  %p105 = scmp.lt.s32.totalorder 0, %s104
  %s106 = scalar_select %p105, 0, %s104
  %s107 = sadd.s32 %s100, %s106
  %p108 = scmp.lt.s32.totalorder %s107, 0
  %s109 = scalar_select %p108, %s107, 0
  %s110 = scalar_lea.vmem %s2, %s109
  %s111 = sld [smem:[#allocation4]]
  %s112 = sld [smem:[#allocation5]]
  %p113 = scmp.gt.s32.totalorder %s112, 1
  %s114 = scalar_select %p113, %s112, 1
  %s115 = ssub.s32 %s114, 1
  %p116 = scmp.lt.s32.totalorder 0, %s115
  %s117 = scalar_select %p116, 0, %s115
  %s118 = sadd.s32 %s111, %s117
  %s119 = sld [smem:[#allocation4]]
  %s120 = sld [smem:[#allocation5]]
  %p121 = scmp.gt.s32.totalorder %s120, 1
  %s122 = scalar_select %p121, %s120, 1
  %s123 = ssub.s32 %s122, 1
  %p124 = scmp.lt.s32.totalorder 0, %s123
  %s125 = scalar_select %p124, 0, %s123
  %s126 = sadd.s32 %s119, %s125
  %s127 = smul.u32 3, %s126
  %p128 = scmp.lt.s32.totalorder %s127, 2
  %s129 = scalar_select %p128, %s127, 2
  %s130 = smul.addr %s129, 4
  %s131 = scalar_lea.vmem %s3, %s130
  %s132 = sld [smem:[#allocation4]]
  %s133 = sld [smem:[#allocation5]]
  %p134 = scmp.gt.s32.totalorder %s133, 1
  %s135 = scalar_select %p134, %s133, 1
  %s136 = ssub.s32 %s135, 1
  %p137 = scmp.lt.s32.totalorder 0, %s136
  %s138 = scalar_select %p137, 0, %s136
  %s139 = sadd.s32 %s132, %s138
  %s140 = smul.u32 3, %s139
  %p142 = scmp.eq.s32.totalorder 0, 0
  // Predicated region
  $region34: #{mpnn_forward.11} parent=0 // pred_check
    %p143 = pneg %p142
  $region35: #{mpnn_forward.11} parent=0 // pred_check_branch
    %145 = sbr.rel (%p143) target = $region37
  $region36: #{mpnn_forward.11} parent=0 // pred_region
    %146 = vst [vmem:[#allocation2] sm:$0xff] 0.0
    %147 = vst [vmem:[#allocation2 + $0x8] sm:$0xff] 0.0
  $region37: #{mpnn_forward.11} parent=0 // pred_fallthru
    _
  %s148 = sld [smem:[#allocation5]]
  %p149 = scmp.lt.s32.totalorder 0, %s148
  // Predicated region
  $region38: #{mpnn_forward.11} parent=0 // pred_check
    %p150 = pneg %p149
  $region39: #{mpnn_forward.11} parent=0 // pred_check_branch
    %152 = sbr.rel (%p150) target = $region41
  $region40: #{mpnn_forward.11} parent=0 // pred_region
    %s153 = smul.u32 0, 16
    %v154 = vlaneseq
    %v155 = vshrl.u32 %v154, 7
    %v156 = vadd.s32 %v155, 8
    %v157 = vstv %s153
    %v158 = vadd.s32 %v157, %v155
    %v159 = vadd.s32 %v157, %v156
    %v160 = vld [vmem:[%s110] sm:$0x1]
    %v161 = vlaneseq
    %v162 = vshrl.u32 %v161, 7
    %v163 = vsub.s32 0, %v162
    %v164 = vrot.slane %v160, %v163
    %vm165 = vcmp.eq.s32.totalorder %v158, %v164
    %vm166 = vcmp.eq.s32.totalorder %v159, %v164
    %v167 = vsel %vm165, 1, 0
    %v168 = vsel %vm166, 1, 0
    %v169 = vcvt.s32.f32 %v167
    %v170 = vcvt.s32.f32 %v168
    %v171 = vpack.c.bf16 %v170, %v169
    %v172 = vld [vmem:[#allocation2] sm:$0xff]
    %v173 = vld [vmem:[#allocation2 + $0x8] sm:$0xff]
    %v174 = vld [vmem:[%s131] sm:$0xf]
    %v175 = vld [vmem:[%s131 + $0x4] sm:$0xf]
    %v176 = vld [vmem:[%s131 + $0x8] sm:$0xf]
    %v180 = vunpack.c.l.b16 %v174
    %v181 = vunpack.c.l.b16 %v175
    %v182 = vunpack.c.l.b16 %v176
    %v183 = vpack.c.b16 %v181, %v180
    %v184 = vpack.c.b16 %v182, %v182
    %vm186 = vcmask 195584
    %v188 = vsel %vm186, %v171, 0
    %vm190 = vcmask 1043456
    %v192 = vsel %vm190, %v184, 0
    %194 = vmatprep.subr.bf16.mxu0 0
    %195 = vmatpush1.bf16.msra.mxu0 0
    %196 = vmatprep.subr.bf16.mxu0 0
    %197 = vmatpush1.bf16.msra.mxu0 0
    %198 = vmatprep.subr.bf16.mxu0 0
    %199 = vmatpush1.bf16.msra.mxu0 0
    %200 = vmatprep.subr.bf16.mxu0 0
    %201 = vmatpush1.bf16.msra.mxu0 0
    %202 = vmatprep.subr.bf16.mxu0 0
    %203 = vmatpush1.bf16.msra.mxu0 0
    %204 = vmatprep.subr.bf16.mxu0 0
    %205 = vmatpush1.bf16.msra.mxu0 0
    %206 = vmatprep.subr.bf16.mxu0 0
    %207 = vmatpush1.bf16.msra.mxu0 %v192
    %208 = vmatprep.subr.bf16.mxu0 0
    %209 = vmatpush1.bf16.msra.mxu0 %v183
    %210 = vmatprep.subr.bf16.mxu0 0
    %211 = vmatpush2.bf16.msra.mxu0 0
    %212 = vmatprep.subr.bf16.mxu0 0
    %213 = vmatpush2.bf16.msra.mxu0 0
    %214 = vmatprep.subr.bf16.mxu0 0
    %215 = vmatpush2.bf16.msra.mxu0 0
    %216 = vmatprep.subr.bf16.mxu0 0
    %217 = vmatpush2.bf16.msra.mxu0 0
    %218 = vmatprep.subr.bf16.mxu0 0
    %219 = vmatpush2.bf16.msra.mxu0 0
    %220 = vmatprep.subr.bf16.mxu0 0
    %221 = vmatpush2.bf16.msra.mxu0 0
    %222 = vmatprep.subr.bf16.mxu0 0
    %223 = vmatpush2.bf16.msra.mxu0 0
    %224 = vmatprep.subr.bf16.mxu0 0
    %225 = vmatpush2.bf16.msra.mxu0 0
    %226 = vmatprep.mubr.bf16.mxu0 0
    %227 = vmatmul.mubr.bf16.gmra.mxu0 %v188
    %v228 = vpop.f32.mrf.mxu0
    %v229 = vadd.f32 0.0, %v228
    %v230 = vpop.f32.mrf.mxu0
    %v231 = vpop.f32.mrf.mxu0
    %v232 = vadd.f32 0.0, %v231
    %v233 = vpop.f32.mrf.mxu0
    %234 = vdwg.mxu0
    %v235 = vadd.f32 %v172, %v229
    %v236 = vadd.f32 %v173, %v232
    %237 = vst [vmem:[#allocation2] sm:$0xff] %v235
    %238 = vst [vmem:[#allocation2 + $0x8] sm:$0xff] %v236
  $region41: #{mpnn_forward.11} parent=0 // pred_fallthru
    _
  // Predicated region
  $region42: #{mpnn_forward.11} parent=0 // pred_check
    %p239 = pneg %p142
  $region43: #{mpnn_forward.11} parent=0 // pred_check_branch
    %241 = sbr.rel (%p239) target = $region45
  $region44: #{mpnn_forward.11} parent=0 // pred_region
    %v242 = vlaneseq
    %v243 = vand.u32 %v242, 127
    %v244 = vld [vmem:[%s5] sm:$0xff]
    %v245 = vld [vmem:[%s5 + $0x8] sm:$0xff]
    %246 = vset.pattern.permute.xlu0 0
    %247 = vperm.xlu0 %246, %v244
    %v248 = vpop.permute.xlu0 %247
    %249 = vset.pattern.permute.xlu0 0
    %250 = vperm.xlu0 %249, %v245
    %v251 = vpop.permute.xlu0 %250
    %vm252 = vcmp.eq.s32.totalorder %v248, %v243
    %vm253 = vcmp.eq.s32.totalorder %v251, %v243
    %v254 = vsel %vm252, 1, 0
    %v255 = vsel %vm253, 1, 0
    %v256 = vcvt.s32.f32 %v254
    %v257 = vcvt.s32.f32 %v255
    %v258 = vpack.c.bf16 %v257, %v256
    %v259 = vld [vmem:[%s4] sm:$0xf]
    %v260 = vld [vmem:[%s4 + $0x4] sm:$0xf]
    %v261 = vld [vmem:[%s7] sm:$0xf]
    %v262 = vld [vmem:[%s7 + $0x4] sm:$0xf]
    %v263 = vld [vmem:[%s7 + $0x8] sm:$0xf]
    %v264 = vld [vmem:[%s7 + $0xc] sm:$0xf]
    %v265 = vld [vmem:[%s7 + $0x10] sm:$0xf]
    %v266 = vld [vmem:[%s7 + $0x14] sm:$0xf]
    %v267 = vld [vmem:[%s7 + $0x18] sm:$0xf]
    %v268 = vld [vmem:[%s7 + $0x1c] sm:$0xf]
    %v269 = vld [vmem:[%s7 + $0x20] sm:$0xf]
    %v270 = vld [vmem:[%s7 + $0x24] sm:$0xf]
    %v271 = vld [vmem:[%s7 + $0x28] sm:$0xf]
    %v272 = vld [vmem:[%s7 + $0x2c] sm:$0xf]
    %v273 = vld [vmem:[%s7 + $0x30] sm:$0xf]
    %v274 = vld [vmem:[%s7 + $0x34] sm:$0xf]
    %v275 = vld [vmem:[%s7 + $0x38] sm:$0xf]
    %v276 = vld [vmem:[%s7 + $0x3c] sm:$0xf]
    %v277 = vld [vmem:[#allocation2] sm:$0xff]
    %v278 = vld [vmem:[#allocation2 + $0x8] sm:$0xff]
    %v279 = vpack.c.bf16 %v278, %v277
    %v280 = vld [vmem:[%s8] sm:$0xf]
    %v281 = vld [vmem:[%s8 + $0x4] sm:$0xf]
    %v282 = vld [vmem:[%s8 + $0x8] sm:$0xf]
    %v283 = vld [vmem:[%s8 + $0xc] sm:$0xf]
    %v284 = vld [vmem:[%s8 + $0x10] sm:$0xf]
    %v285 = vld [vmem:[%s8 + $0x14] sm:$0xf]
    %v286 = vld [vmem:[%s8 + $0x18] sm:$0xf]
    %v287 = vld [vmem:[%s8 + $0x1c] sm:$0xf]
    %v288 = vld [vmem:[%s8 + $0x20] sm:$0xf]
    %v289 = vld [vmem:[%s8 + $0x24] sm:$0xf]
    %v290 = vld [vmem:[%s8 + $0x28] sm:$0xf]
    %v291 = vld [vmem:[%s8 + $0x2c] sm:$0xf]
    %v292 = vld [vmem:[%s8 + $0x30] sm:$0xf]
    %v293 = vld [vmem:[%s8 + $0x34] sm:$0xf]
    %v294 = vld [vmem:[%s8 + $0x38] sm:$0xf]
    %v295 = vld [vmem:[%s8 + $0x3c] sm:$0xf]
    %v312 = vunpack.c.l.b16 %v280
    %v313 = vunpack.c.l.b16 %v281
    %v314 = vunpack.c.l.b16 %v282
    %v315 = vunpack.c.l.b16 %v283
    %v316 = vunpack.c.l.b16 %v284
    %v317 = vunpack.c.l.b16 %v285
    %v318 = vunpack.c.l.b16 %v286
    %v319 = vunpack.c.l.b16 %v287
    %v320 = vunpack.c.l.b16 %v288
    %v321 = vunpack.c.l.b16 %v289
    %v322 = vunpack.c.l.b16 %v290
    %v323 = vunpack.c.l.b16 %v291
    %v324 = vunpack.c.l.b16 %v292
    %v325 = vunpack.c.l.b16 %v293
    %v326 = vunpack.c.l.b16 %v294
    %v327 = vunpack.c.l.b16 %v295
    %v328 = vpack.c.b16 %v313, %v312
    %v329 = vpack.c.b16 %v315, %v314
    %v330 = vpack.c.b16 %v317, %v316
    %v331 = vpack.c.b16 %v319, %v318
    %v332 = vpack.c.b16 %v321, %v320
    %v333 = vpack.c.b16 %v323, %v322
    %v334 = vpack.c.b16 %v325, %v324
    %v335 = vpack.c.b16 %v327, %v326
    %344 = vmatprep.subr.bf16.mxu0 0
    %345 = vmatpush1.bf16.msra.mxu0 %v335
    %346 = vmatprep.subr.bf16.mxu0 0
    %347 = vmatpush1.bf16.msra.mxu0 %v334
    %348 = vmatprep.subr.bf16.mxu0 0
    %349 = vmatpush1.bf16.msra.mxu0 %v333
    %350 = vmatprep.subr.bf16.mxu0 0
    %351 = vmatpush1.bf16.msra.mxu0 %v332
    %352 = vmatprep.subr.bf16.mxu0 0
    %353 = vmatpush1.bf16.msra.mxu0 %v331
    %354 = vmatprep.subr.bf16.mxu0 0
    %355 = vmatpush1.bf16.msra.mxu0 %v330
    %356 = vmatprep.subr.bf16.mxu0 0
    %357 = vmatpush1.bf16.msra.mxu0 %v329
    %358 = vmatprep.subr.bf16.mxu0 0
    %359 = vmatpush1.bf16.msra.mxu0 %v328
    %360 = vmatprep.subr.bf16.mxu0 0
    %361 = vmatpush2.bf16.msra.mxu0 0
    %362 = vmatprep.subr.bf16.mxu0 0
    %363 = vmatpush2.bf16.msra.mxu0 0
    %364 = vmatprep.subr.bf16.mxu0 0
    %365 = vmatpush2.bf16.msra.mxu0 0
    %366 = vmatprep.subr.bf16.mxu0 0
    %367 = vmatpush2.bf16.msra.mxu0 0
    %368 = vmatprep.subr.bf16.mxu0 0
    %369 = vmatpush2.bf16.msra.mxu0 0
    %370 = vmatprep.subr.bf16.mxu0 0
    %371 = vmatpush2.bf16.msra.mxu0 0
    %372 = vmatprep.subr.bf16.mxu0 0
    %373 = vmatpush2.bf16.msra.mxu0 0
    %374 = vmatprep.subr.bf16.mxu0 0
    %375 = vmatpush2.bf16.msra.mxu0 0
    %376 = vmatprep.mubr.bf16.mxu0 0
    %377 = vmatmul.mubr.bf16.gmra.mxu0 %v279
    %v378 = vpop.f32.mrf.mxu0
    %v379 = vadd.f32 0.0, %v378
    %v380 = vpop.f32.mrf.mxu0
    %v381 = vpop.f32.mrf.mxu0
    %v382 = vadd.f32 0.0, %v381
    %v383 = vpop.f32.mrf.mxu0
    %384 = vdwg.mxu0
    %v387 = vunpack.c.l.b16 %v259
    %v388 = vunpack.c.l.b16 %v260
    %v389 = vpack.c.b16 %v388, %v387
    %v407 = vunpack.c.l.b16 %v261
    %v408 = vunpack.c.l.b16 %v262
    %v409 = vunpack.c.l.b16 %v263
    %v410 = vunpack.c.l.b16 %v264
    %v411 = vunpack.c.l.b16 %v265
    %v412 = vunpack.c.l.b16 %v266
    %v413 = vunpack.c.l.b16 %v267
    %v414 = vunpack.c.l.b16 %v268
    %v415 = vunpack.c.l.b16 %v269
    %v416 = vunpack.c.l.b16 %v270
    %v417 = vunpack.c.l.b16 %v271
    %v418 = vunpack.c.l.b16 %v272
    %v419 = vunpack.c.l.b16 %v273
    %v420 = vunpack.c.l.b16 %v274
    %v421 = vunpack.c.l.b16 %v275
    %v422 = vunpack.c.l.b16 %v276
    %v423 = vpack.c.b16 %v408, %v407
    %v424 = vpack.c.b16 %v410, %v409
    %v425 = vpack.c.b16 %v412, %v411
    %v426 = vpack.c.b16 %v414, %v413
    %v427 = vpack.c.b16 %v416, %v415
    %v428 = vpack.c.b16 %v418, %v417
    %v429 = vpack.c.b16 %v420, %v419
    %v430 = vpack.c.b16 %v422, %v421
    %439 = vmatprep.subr.bf16.mxu0 0
    %440 = vmatpush1.bf16.msra.mxu0 %v430
    %441 = vmatprep.subr.bf16.mxu0 0
    %442 = vmatpush1.bf16.msra.mxu0 %v429
    %443 = vmatprep.subr.bf16.mxu0 0
    %444 = vmatpush1.bf16.msra.mxu0 %v428
    %445 = vmatprep.subr.bf16.mxu0 0
    %446 = vmatpush1.bf16.msra.mxu0 %v427
    %447 = vmatprep.subr.bf16.mxu0 0
    %448 = vmatpush1.bf16.msra.mxu0 %v426
    %449 = vmatprep.subr.bf16.mxu0 0
    %450 = vmatpush1.bf16.msra.mxu0 %v425
    %451 = vmatprep.subr.bf16.mxu0 0
    %452 = vmatpush1.bf16.msra.mxu0 %v424
    %453 = vmatprep.subr.bf16.mxu0 0
    %454 = vmatpush1.bf16.msra.mxu0 %v423
    %455 = vmatprep.subr.bf16.mxu0 0
    %456 = vmatpush2.bf16.msra.mxu0 0
    %457 = vmatprep.subr.bf16.mxu0 0
    %458 = vmatpush2.bf16.msra.mxu0 0
    %459 = vmatprep.subr.bf16.mxu0 0
    %460 = vmatpush2.bf16.msra.mxu0 0
    %461 = vmatprep.subr.bf16.mxu0 0
    %462 = vmatpush2.bf16.msra.mxu0 0
    %463 = vmatprep.subr.bf16.mxu0 0
    %464 = vmatpush2.bf16.msra.mxu0 0
    %465 = vmatprep.subr.bf16.mxu0 0
    %466 = vmatpush2.bf16.msra.mxu0 0
    %467 = vmatprep.subr.bf16.mxu0 0
    %468 = vmatpush2.bf16.msra.mxu0 0
    %469 = vmatprep.subr.bf16.mxu0 0
    %470 = vmatpush2.bf16.msra.mxu0 0
    %471 = vmatprep.mubr.bf16.mxu0 0
    %472 = vmatmul.mubr.bf16.gmra.mxu0 %v389
    %v473 = vpop.f32.mrf.mxu0
    %v474 = vadd.f32 %v379, %v473
    %v475 = vpop.f32.mrf.mxu0
    %v476 = vpop.f32.mrf.mxu0
    %v477 = vadd.f32 %v382, %v476
    %v478 = vpop.f32.mrf.mxu0
    %479 = vdwg.mxu0
    %v480 = vld [vmem:[%s6] sm:$0xf]
    %vm481 = vcmask 64512
    %v483 = vsel %vm481, %v258, 0
    %vm485 = vcmask 1043456
    %v487 = vsel %vm485, %v480, 0
    %489 = vmatprep.subr.bf16.mxu0 0
    %490 = vmatpush1.bf16.msra.mxu0 0
    %491 = vmatprep.subr.bf16.mxu0 0
    %492 = vmatpush1.bf16.msra.mxu0 0
    %493 = vmatprep.subr.bf16.mxu0 0
    %494 = vmatpush1.bf16.msra.mxu0 0
    %495 = vmatprep.subr.bf16.mxu0 0
    %496 = vmatpush1.bf16.msra.mxu0 0
    %497 = vmatprep.subr.bf16.mxu0 0
    %498 = vmatpush1.bf16.msra.mxu0 0
    %499 = vmatprep.subr.bf16.mxu0 0
    %500 = vmatpush1.bf16.msra.mxu0 0
    %501 = vmatprep.subr.bf16.mxu0 0
    %502 = vmatpush1.bf16.msra.mxu0 0
    %503 = vmatprep.subr.bf16.mxu0 0
    %504 = vmatpush1.bf16.msra.mxu0 %v487
    %505 = vmatprep.subr.bf16.mxu0 0
    %506 = vmatpush2.bf16.msra.mxu0 0
    %507 = vmatprep.subr.bf16.mxu0 0
    %508 = vmatpush2.bf16.msra.mxu0 0
    %509 = vmatprep.subr.bf16.mxu0 0
    %510 = vmatpush2.bf16.msra.mxu0 0
    %511 = vmatprep.subr.bf16.mxu0 0
    %512 = vmatpush2.bf16.msra.mxu0 0
    %513 = vmatprep.subr.bf16.mxu0 0
    %514 = vmatpush2.bf16.msra.mxu0 0
    %515 = vmatprep.subr.bf16.mxu0 0
    %516 = vmatpush2.bf16.msra.mxu0 0
    %517 = vmatprep.subr.bf16.mxu0 0
    %518 = vmatpush2.bf16.msra.mxu0 0
    %519 = vmatprep.subr.bf16.mxu0 0
    %520 = vmatpush2.bf16.msra.mxu0 0
    %521 = vmatprep.mubr.bf16.mxu0 0
    %522 = vmatmul.mubr.bf16.gmra.mxu0 %v483
    %v523 = vpop.f32.mrf.mxu0
    %v524 = vadd.f32 0.0, %v523
    %v525 = vpop.f32.mrf.mxu0
    %v526 = vpop.f32.mrf.mxu0
    %v527 = vadd.f32 0.0, %v526
    %v528 = vpop.f32.mrf.mxu0
    %529 = vdwg.mxu0
    %v530 = vadd.f32 %v474, %v524
    %v531 = vadd.f32 %v477, %v527
    %v532 = vld [vmem:[%s9] sm:$0x1]
    %v534 = vlaneseq
    %v535 = vshrl.u32 %v534, 7
    %v536 = vsub.s32 0, %v535
    %v537 = vrot.slane %v532, %v536
    %v539 = vadd.f32 %v530, %v537
    %v540 = vadd.f32 %v531, %v537
    %v541 = vpack.c.bf16 %v540, %v539
    %v543 = vunpack.c.l.b16 %v541
    %v544 = vunpack.c.h.b16 %v541
    %v545 = vpack.c.b16 %v543, %v543
    %v546 = vpack.c.b16 %v544, %v544
    %549 = vst [vmem:[%s10] sm:$0xf] %v545
    %550 = vst [vmem:[%s10 + $0x4] sm:$0xf] %v546
    %551 = vxpose.xlu0.c.b16.start [1/8] %v258, 128
    %552 = vxpose.xlu0.c.b16.cont [2/8] 0, 128
    %553 = vxpose.xlu0.c.b16.cont [3/8] 0, 128
    %554 = vxpose.xlu0.c.b16.cont [4/8] 0, 128
    %555 = vxpose.xlu0.c.b16.cont [5/8] 0, 128
    %556 = vxpose.xlu0.c.b16.cont [6/8] 0, 128
    %557 = vxpose.xlu0.c.b16.cont [7/8] 0, 128
    %558 = vxpose.xlu0.c.b16.end [8/8] 0, 128
    %v559 = vpop.trf.xlu0
    %v560 = vpop.trf.xlu0
    %v561 = vpop.trf.xlu0
    %v562 = vpop.trf.xlu0
    %v563 = vpop.trf.xlu0
    %v564 = vpop.trf.xlu0
    %v565 = vpop.trf.xlu0
    %v566 = vpop.trf.xlu0
    %vm567 = vcmask 130048
    %v569 = vsel %vm567, %v559, 0
    %571 = vmatprep.subr.bf16.mxu0 0
    %572 = vmatpush1.bf16.msra.mxu0 0
    %573 = vmatprep.subr.bf16.mxu0 0
    %574 = vmatpush1.bf16.msra.mxu0 0
    %575 = vmatprep.subr.bf16.mxu0 0
    %576 = vmatpush1.bf16.msra.mxu0 0
    %577 = vmatprep.subr.bf16.mxu0 0
    %578 = vmatpush1.bf16.msra.mxu0 0
    %579 = vmatprep.subr.bf16.mxu0 0
    %580 = vmatpush1.bf16.msra.mxu0 0
    %581 = vmatprep.subr.bf16.mxu0 0
    %582 = vmatpush1.bf16.msra.mxu0 0
    %583 = vmatprep.subr.bf16.mxu0 0
    %584 = vmatpush1.bf16.msra.mxu0 0
    %585 = vmatprep.subr.bf16.mxu0 0
    %586 = vmatpush1.bf16.msra.mxu0 %v541
    %587 = vmatprep.subr.bf16.mxu0 0
    %588 = vmatpush2.bf16.msra.mxu0 0
    %589 = vmatprep.subr.bf16.mxu0 0
    %590 = vmatpush2.bf16.msra.mxu0 0
    %591 = vmatprep.subr.bf16.mxu0 0
    %592 = vmatpush2.bf16.msra.mxu0 0
    %593 = vmatprep.subr.bf16.mxu0 0
    %594 = vmatpush2.bf16.msra.mxu0 0
    %595 = vmatprep.subr.bf16.mxu0 0
    %596 = vmatpush2.bf16.msra.mxu0 0
    %597 = vmatprep.subr.bf16.mxu0 0
    %598 = vmatpush2.bf16.msra.mxu0 0
    %599 = vmatprep.subr.bf16.mxu0 0
    %600 = vmatpush2.bf16.msra.mxu0 0
    %601 = vmatprep.subr.bf16.mxu0 0
    %602 = vmatpush2.bf16.msra.mxu0 0
    %603 = vmatprep.mubr.bf16.mxu0 0
    %604 = vmatmul.mubr.bf16.gmra.mxu0 %v569
    %v605 = vpop.f32.mrf.mxu0
    %v606 = vadd.f32 0.0, %v605
    %v607 = vpop.f32.mrf.mxu0
    %v608 = vpop.f32.mrf.mxu0
    %v609 = vpop.f32.mrf.mxu0
    %610 = vdwg.mxu0
    %611 = vst [vmem:[%s11] sm:$0xff] %v606
  $region45: #{mpnn_forward.11} parent=0 // pred_fallthru
    _
  // Predicated region
  $region46: #{mpnn_forward.11} parent=0 // pred_check
    _
  $region47: #{mpnn_forward.11} parent=0 // pred_check_branch
    %613 = sbr.rel (0) target = $region49
  $region48: #{mpnn_forward.11} parent=0 // pred_region
    _
  $region49: #{mpnn_forward.11} parent=0 // pred_fallthru
    _
  // Predicated region
  $region50: #{mpnn_forward.11} parent=0 // pred_check
    _
  $region51: #{mpnn_forward.11} parent=0 // pred_check_branch
    %615 = sbr.rel (0) target = $region53
  $region52: #{mpnn_forward.11} parent=0 // pred_region
    _
  $region53: #{mpnn_forward.11} parent=0 // pred_fallthru
    _
  // Predicated region
  $region54: #{mpnn_forward.11} parent=0 // pred_check
    _
  $region55: #{mpnn_forward.11} parent=0 // pred_check_branch
    %617 = sbr.rel (0) target = $region57
  $region56: #{mpnn_forward.11} parent=0 // pred_region
    _
  $region57: #{mpnn_forward.11} parent=0 // pred_fallthru
    _
  // Predicated region
  $region58: #{mpnn_forward.11} parent=0 // pred_check
    _
  $region59: #{mpnn_forward.11} parent=0 // pred_check_branch
    %619 = sbr.rel (0) target = $region61
  $region60: #{mpnn_forward.11} parent=0 // pred_region
    _
  $region61: #{mpnn_forward.11} parent=0 // pred_fallthru
    _

// kernel: mpnn_forward.10
$region0: #{mpnn_forward.10}
  #allocation0 [shape = 'u32[]', space=smem, size = 0x4, offset = 0x4, fixed_abs, tag = 'smem constant byte address 0x4 - core index']
  #allocation1 [shape = 'u32[144,128]{1,0:T(1,128)}', space=vmem, size = 0x12000, scoped, tag = 'internal scratch']
  %s0 = inlined_call_operand.vmem [shape: bf16[24,128], index: 0, kind: input, shape index: {}]
  %s1 = inlined_call_operand.vmem [shape: bf16[24,128], index: 1, kind: input, shape index: {}]
  %s2 = inlined_call_operand.vmem [shape: bf16[24,128], index: 2, kind: input, shape index: {}]
  %s3 = inlined_call_operand.vmem [shape: s32[24,1], index: 3, kind: input, shape index: {}]
  %s4 = inlined_call_operand.vmem [shape: s32[24,1], index: 4, kind: input, shape index: {}]
  %s5 = inlined_call_operand.vmem [shape: bf16[8,128], index: 5, kind: input, shape index: {}]
  %s6 = inlined_call_operand.vmem [shape: bf16[8,128], index: 6, kind: input, shape index: {}]
  %s7 = inlined_call_operand.vmem [shape: bf16[128,128], index: 7, kind: input, shape index: {}]
  %s8 = inlined_call_operand.vmem [shape: bf16[128,128], index: 8, kind: input, shape index: {}]
  %s9 = inlined_call_operand.vmem [shape: bf16[128,128], index: 9, kind: input, shape index: {}]
  %s10 = inlined_call_operand.vmem [shape: f32[1,128], index: 10, kind: input, shape index: {}]
  %s11 = inlined_call_operand.vmem [shape: bf16[128,128], index: 11, kind: input, shape index: {}]
  %s12 = inlined_call_operand.vmem [shape: bf16[128,128], index: 12, kind: input, shape index: {}]
  %s13 = inlined_call_operand.vmem [shape: bf16[128,128], index: 13, kind: input, shape index: {}]
  %s14 = inlined_call_operand.vmem [shape: f32[1,128], index: 14, kind: input, shape index: {}]
  %s15 = inlined_call_operand.vmem [shape: bf16[24,128], index: 15, kind: output, shape index: {0}]
  %s16 = inlined_call_operand.vmem [shape: bf16[24,128], index: 16, kind: output, shape index: {1}]
  %s17 = inlined_call_operand.vmem [shape: f32[1,8,128], index: 17, kind: output, shape index: {2}]
  %18 = xla_tuple %s15, %s16, %s17
  %s19 = sld [smem:[#allocation0]]
  $region86: #{mpnn_forward.10} parent=0
    _
  %s21 = ssub.s32 1, %s19
  %s22 = scalar_select 0, %s21, %s19
  // Predicated region
  $region2: #{mpnn_forward.10} parent=0 // pred_check
    _
  $region3: #{mpnn_forward.10} parent=0 // pred_check_branch
    %24 = sbr.rel (0) target = $region5
  $region4: #{mpnn_forward.10} parent=0 // pred_region
    _
  $region5: #{mpnn_forward.10} parent=0 // pred_fallthru
    _
  // Predicated region
  $region6: #{mpnn_forward.10} parent=0 // pred_check
    _
  $region7: #{mpnn_forward.10} parent=0 // pred_check_branch
    %26 = sbr.rel (0) target = $region9
  $region8: #{mpnn_forward.10} parent=0 // pred_region
    _
  $region9: #{mpnn_forward.10} parent=0 // pred_fallthru
    _
  // Predicated region
  $region10: #{mpnn_forward.10} parent=0 // pred_check
    _
  $region11: #{mpnn_forward.10} parent=0 // pred_check_branch
    %28 = sbr.rel (0) target = $region13
  $region12: #{mpnn_forward.10} parent=0 // pred_region
    _
  $region13: #{mpnn_forward.10} parent=0 // pred_fallthru
    _
  // Predicated region
  $region14: #{mpnn_forward.10} parent=0 // pred_check
    _
  $region15: #{mpnn_forward.10} parent=0 // pred_check_branch
    %30 = sbr.rel (0) target = $region17
  $region16: #{mpnn_forward.10} parent=0 // pred_region
    _
  $region17: #{mpnn_forward.10} parent=0 // pred_fallthru
    _
  // Predicated region
  $region18: #{mpnn_forward.10} parent=0 // pred_check
    _
  $region19: #{mpnn_forward.10} parent=0 // pred_check_branch
    %32 = sbr.rel (0) target = $region21
  $region20: #{mpnn_forward.10} parent=0 // pred_region
    _
  $region21: #{mpnn_forward.10} parent=0 // pred_fallthru
    _
  // Predicated region
  $region22: #{mpnn_forward.10} parent=0 // pred_check
    _
  $region23: #{mpnn_forward.10} parent=0 // pred_check_branch
    %34 = sbr.rel (0) target = $region25
  $region24: #{mpnn_forward.10} parent=0 // pred_region
    _
  $region25: #{mpnn_forward.10} parent=0 // pred_fallthru
    _
  // Predicated region
  $region26: #{mpnn_forward.10} parent=0 // pred_check
    _
  $region27: #{mpnn_forward.10} parent=0 // pred_check_branch
    %36 = sbr.rel (0) target = $region29
  $region28: #{mpnn_forward.10} parent=0 // pred_region
    _
  $region29: #{mpnn_forward.10} parent=0 // pred_fallthru
    _
  // Predicated region
  $region30: #{mpnn_forward.10} parent=0 // pred_check
    _
  $region31: #{mpnn_forward.10} parent=0 // pred_check_branch
    %38 = sbr.rel (0) target = $region33
  $region32: #{mpnn_forward.10} parent=0 // pred_region
    _
  $region33: #{mpnn_forward.10} parent=0 // pred_fallthru
    _
  // Predicated region
  $region34: #{mpnn_forward.10} parent=0 // pred_check
    _
  $region35: #{mpnn_forward.10} parent=0 // pred_check_branch
    %40 = sbr.rel (0) target = $region37
  $region36: #{mpnn_forward.10} parent=0 // pred_region
    _
  $region37: #{mpnn_forward.10} parent=0 // pred_fallthru
    _
  // Predicated region
  $region38: #{mpnn_forward.10} parent=0 // pred_check
    _
  $region39: #{mpnn_forward.10} parent=0 // pred_check_branch
    %42 = sbr.rel (0) target = $region41
  $region40: #{mpnn_forward.10} parent=0 // pred_region
    _
  $region41: #{mpnn_forward.10} parent=0 // pred_fallthru
    _
  // Predicated region
  $region42: #{mpnn_forward.10} parent=0 // pred_check
    _
  $region43: #{mpnn_forward.10} parent=0 // pred_check_branch
    %44 = sbr.rel (0) target = $region45
  $region44: #{mpnn_forward.10} parent=0 // pred_region
    _
  $region45: #{mpnn_forward.10} parent=0 // pred_fallthru
    _
  // Predicated region
  $region46: #{mpnn_forward.10} parent=0 // pred_check
    _
  $region47: #{mpnn_forward.10} parent=0 // pred_check_branch
    %46 = sbr.rel (0) target = $region49
  $region48: #{mpnn_forward.10} parent=0 // pred_region
    _
  $region49: #{mpnn_forward.10} parent=0 // pred_fallthru
    _
  // Predicated region
  $region50: #{mpnn_forward.10} parent=0 // pred_check
    _
  $region51: #{mpnn_forward.10} parent=0 // pred_check_branch
    %48 = sbr.rel (0) target = $region53
  $region52: #{mpnn_forward.10} parent=0 // pred_region
    _
  $region53: #{mpnn_forward.10} parent=0 // pred_fallthru
    _
  // Predicated region
  $region54: #{mpnn_forward.10} parent=0 // pred_check
    _
  $region55: #{mpnn_forward.10} parent=0 // pred_check_branch
    %50 = sbr.rel (0) target = $region57
  $region56: #{mpnn_forward.10} parent=0 // pred_region
    _
  $region57: #{mpnn_forward.10} parent=0 // pred_fallthru
    _
  // Predicated region
  $region58: #{mpnn_forward.10} parent=0 // pred_check
    _
  $region59: #{mpnn_forward.10} parent=0 // pred_check_branch
    %52 = sbr.rel (0) target = $region61
  $region60: #{mpnn_forward.10} parent=0 // pred_region
    _
  $region61: #{mpnn_forward.10} parent=0 // pred_fallthru
    _
  %v54 = vld [vmem:[%s0] sm:$0xf]
  %v55 = vld [vmem:[%s0 + $0x4] sm:$0xf]
  %v56 = vld [vmem:[%s0 + $0x8] sm:$0xf]
  %v57 = vld [vmem:[%s1] sm:$0xf]
  %v58 = vld [vmem:[%s1 + $0x4] sm:$0xf]
  %v59 = vld [vmem:[%s1 + $0x8] sm:$0xf]
  %v60 = vlaneseq
  %v61 = vand.u32 %v60, 127
  %v62 = vld [vmem:[%s3] sm:$0xff]
  %v63 = vld [vmem:[%s3 + $0x8] sm:$0xff]
  %v64 = vld [vmem:[%s3 + $0x10] sm:$0xff]
  %65 = vset.pattern.permute.xlu0 0
  %66 = vperm.xlu0 %65, %v62
  %v67 = vpop.permute.xlu0 %66
  %68 = vset.pattern.permute.xlu0 0
  %69 = vperm.xlu0 %68, %v63
  %v70 = vpop.permute.xlu0 %69
  %71 = vset.pattern.permute.xlu0 0
  %72 = vperm.xlu0 %71, %v64
  %v73 = vpop.permute.xlu0 %72
  %vm74 = vcmp.eq.s32.totalorder %v67, %v61
  %vm75 = vcmp.eq.s32.totalorder %v70, %v61
  %vm76 = vcmp.eq.s32.totalorder %v73, %v61
  %v77 = vsel %vm74, 1, 0
  %v78 = vsel %vm75, 1, 0
  %v79 = vsel %vm76, 1, 0
  %v80 = vcvt.s32.f32 %v77
  %v81 = vcvt.s32.f32 %v78
  %v82 = vcvt.s32.f32 %v79
  %v83 = vpack.c.bf16 %v81, %v80
  %v84 = vpack.c.bf16 %v82, %v82
  %v85 = vld [vmem:[%s4] sm:$0xff]
  %v86 = vld [vmem:[%s4 + $0x8] sm:$0xff]
  %v87 = vld [vmem:[%s4 + $0x10] sm:$0xff]
  %88 = vset.pattern.permute.xlu0 0
  %89 = vperm.xlu0 %88, %v85
  %v90 = vpop.permute.xlu0 %89
  %91 = vset.pattern.permute.xlu0 0
  %92 = vperm.xlu0 %91, %v86
  %v93 = vpop.permute.xlu0 %92
  %94 = vset.pattern.permute.xlu0 0
  %95 = vperm.xlu0 %94, %v87
  %v96 = vpop.permute.xlu0 %95
  %vm97 = vcmp.eq.s32.totalorder %v90, %v61
  %vm98 = vcmp.eq.s32.totalorder %v93, %v61
  %vm99 = vcmp.eq.s32.totalorder %v96, %v61
  %v100 = vsel %vm97, 1, 0
  %v101 = vsel %vm98, 1, 0
  %v102 = vsel %vm99, 1, 0
  %v103 = vcvt.s32.f32 %v100
  %v104 = vcvt.s32.f32 %v101
  %v105 = vcvt.s32.f32 %v102
  %v106 = vpack.c.bf16 %v104, %v103
  %v107 = vpack.c.bf16 %v105, %v105
  %v108 = vld [vmem:[%s7] sm:$0xf]
  %v109 = vld [vmem:[%s7 + $0x4] sm:$0xf]
  %v110 = vld [vmem:[%s7 + $0x8] sm:$0xf]
  %v111 = vld [vmem:[%s7 + $0xc] sm:$0xf]
  %v112 = vld [vmem:[%s7 + $0x10] sm:$0xf]
  %v113 = vld [vmem:[%s7 + $0x14] sm:$0xf]
  %v114 = vld [vmem:[%s7 + $0x18] sm:$0xf]
  %v115 = vld [vmem:[%s7 + $0x1c] sm:$0xf]
  %v116 = vld [vmem:[%s7 + $0x20] sm:$0xf]
  %v117 = vld [vmem:[%s7 + $0x24] sm:$0xf]
  %v118 = vld [vmem:[%s7 + $0x28] sm:$0xf]
  %v119 = vld [vmem:[%s7 + $0x2c] sm:$0xf]
  %v120 = vld [vmem:[%s7 + $0x30] sm:$0xf]
  %v121 = vld [vmem:[%s7 + $0x34] sm:$0xf]
  %v122 = vld [vmem:[%s7 + $0x38] sm:$0xf]
  %v123 = vld [vmem:[%s7 + $0x3c] sm:$0xf]
  %v124 = vld [vmem:[%s8] sm:$0xf]
  %v125 = vld [vmem:[%s8 + $0x4] sm:$0xf]
  %v126 = vld [vmem:[%s8 + $0x8] sm:$0xf]
  %v127 = vld [vmem:[%s8 + $0xc] sm:$0xf]
  %v128 = vld [vmem:[%s8 + $0x10] sm:$0xf]
  %v129 = vld [vmem:[%s8 + $0x14] sm:$0xf]
  %v130 = vld [vmem:[%s8 + $0x18] sm:$0xf]
  %v131 = vld [vmem:[%s8 + $0x1c] sm:$0xf]
  %v132 = vld [vmem:[%s8 + $0x20] sm:$0xf]
  %v133 = vld [vmem:[%s8 + $0x24] sm:$0xf]
  %v134 = vld [vmem:[%s8 + $0x28] sm:$0xf]
  %v135 = vld [vmem:[%s8 + $0x2c] sm:$0xf]
  %v136 = vld [vmem:[%s8 + $0x30] sm:$0xf]
  %v137 = vld [vmem:[%s8 + $0x34] sm:$0xf]
  %v138 = vld [vmem:[%s8 + $0x38] sm:$0xf]
  %v139 = vld [vmem:[%s8 + $0x3c] sm:$0xf]
  %v143 = vunpack.c.l.b16 %v57
  %v144 = vunpack.c.l.b16 %v58
  %v145 = vunpack.c.l.b16 %v59
  %v146 = vpack.c.b16 %v144, %v143
  %v147 = vpack.c.b16 %v145, %v145
  %v166 = vunpack.c.l.b16 %v124
  %v167 = vunpack.c.l.b16 %v125
  %v168 = vunpack.c.l.b16 %v126
  %v169 = vunpack.c.l.b16 %v127
  %v170 = vunpack.c.l.b16 %v128
  %v171 = vunpack.c.l.b16 %v129
  %v172 = vunpack.c.l.b16 %v130
  %v173 = vunpack.c.l.b16 %v131
  %v174 = vunpack.c.l.b16 %v132
  %v175 = vunpack.c.l.b16 %v133
  %v176 = vunpack.c.l.b16 %v134
  %v177 = vunpack.c.l.b16 %v135
  %v178 = vunpack.c.l.b16 %v136
  %v179 = vunpack.c.l.b16 %v137
  %v180 = vunpack.c.l.b16 %v138
  %v181 = vunpack.c.l.b16 %v139
  %v182 = vpack.c.b16 %v167, %v166
  %v183 = vpack.c.b16 %v169, %v168
  %v184 = vpack.c.b16 %v171, %v170
  %v185 = vpack.c.b16 %v173, %v172
  %v186 = vpack.c.b16 %v175, %v174
  %v187 = vpack.c.b16 %v177, %v176
  %v188 = vpack.c.b16 %v179, %v178
  %v189 = vpack.c.b16 %v181, %v180
  %198 = vmatprep.subr.bf16.mxu0 0
  %199 = vmatpush1.bf16.msra.mxu0 %v189
  %200 = vmatprep.subr.bf16.mxu0 0
  %201 = vmatpush1.bf16.msra.mxu0 %v188
  %202 = vmatprep.subr.bf16.mxu0 0
  %203 = vmatpush1.bf16.msra.mxu0 %v187
  %204 = vmatprep.subr.bf16.mxu0 0
  %205 = vmatpush1.bf16.msra.mxu0 %v186
  %206 = vmatprep.subr.bf16.mxu0 0
  %207 = vmatpush1.bf16.msra.mxu0 %v185
  %208 = vmatprep.subr.bf16.mxu0 0
  %209 = vmatpush1.bf16.msra.mxu0 %v184
  %210 = vmatprep.subr.bf16.mxu0 0
  %211 = vmatpush1.bf16.msra.mxu0 %v183
  %212 = vmatprep.subr.bf16.mxu0 0
  %213 = vmatpush1.bf16.msra.mxu0 %v182
  %214 = vmatprep.subr.bf16.mxu0 0
  %215 = vmatpush2.bf16.msra.mxu0 0
  %216 = vmatprep.subr.bf16.mxu0 0
  %217 = vmatpush2.bf16.msra.mxu0 0
  %218 = vmatprep.subr.bf16.mxu0 0
  %219 = vmatpush2.bf16.msra.mxu0 0
  %220 = vmatprep.subr.bf16.mxu0 0
  %221 = vmatpush2.bf16.msra.mxu0 0
  %222 = vmatprep.subr.bf16.mxu0 0
  %223 = vmatpush2.bf16.msra.mxu0 0
  %224 = vmatprep.subr.bf16.mxu0 0
  %225 = vmatpush2.bf16.msra.mxu0 0
  %226 = vmatprep.subr.bf16.mxu0 0
  %227 = vmatpush2.bf16.msra.mxu0 0
  %228 = vmatprep.subr.bf16.mxu0 0
  %229 = vmatpush2.bf16.msra.mxu0 0
  %230 = vmatprep.mubr.bf16.mxu0 0
  %231 = vmatmul.mubr.bf16.gmra.mxu0 %v146
  %v232 = vpop.f32.mrf.mxu0
  %v233 = vadd.f32 0.0, %v232
  %v234 = vpop.f32.mrf.mxu0
  %v235 = vpop.f32.mrf.mxu0
  %v236 = vadd.f32 0.0, %v235
  %v237 = vpop.f32.mrf.mxu0
  %238 = vmatprep.mubr.bf16.mxu0 0
  %239 = vmatmul.mubr.bf16.gmra.mxu0 %v147
  %v240 = vpop.f32.mrf.mxu0
  %v241 = vadd.f32 0.0, %v240
  %v242 = vpop.f32.mrf.mxu0
  %v243 = vpop.f32.mrf.mxu0
  %v244 = vpop.f32.mrf.mxu0
  %245 = vdwg.mxu0
  %v249 = vunpack.c.l.b16 %v54
  %v250 = vunpack.c.l.b16 %v55
  %v251 = vunpack.c.l.b16 %v56
  %v252 = vpack.c.b16 %v250, %v249
  %v253 = vpack.c.b16 %v251, %v251
  %v272 = vunpack.c.l.b16 %v108
  %v273 = vunpack.c.l.b16 %v109
  %v274 = vunpack.c.l.b16 %v110
  %v275 = vunpack.c.l.b16 %v111
  %v276 = vunpack.c.l.b16 %v112
  %v277 = vunpack.c.l.b16 %v113
  %v278 = vunpack.c.l.b16 %v114
  %v279 = vunpack.c.l.b16 %v115
  %v280 = vunpack.c.l.b16 %v116
  %v281 = vunpack.c.l.b16 %v117
  %v282 = vunpack.c.l.b16 %v118
  %v283 = vunpack.c.l.b16 %v119
  %v284 = vunpack.c.l.b16 %v120
  %v285 = vunpack.c.l.b16 %v121
  %v286 = vunpack.c.l.b16 %v122
  %v287 = vunpack.c.l.b16 %v123
  %v288 = vpack.c.b16 %v273, %v272
  %v289 = vpack.c.b16 %v275, %v274
  %v290 = vpack.c.b16 %v277, %v276
  %v291 = vpack.c.b16 %v279, %v278
  %v292 = vpack.c.b16 %v281, %v280
  %v293 = vpack.c.b16 %v283, %v282
  %v294 = vpack.c.b16 %v285, %v284
  %v295 = vpack.c.b16 %v287, %v286
  %304 = vmatprep.subr.bf16.mxu0 0
  %305 = vmatpush1.bf16.msra.mxu0 %v295
  %306 = vmatprep.subr.bf16.mxu0 0
  %307 = vmatpush1.bf16.msra.mxu0 %v294
  %308 = vmatprep.subr.bf16.mxu0 0
  %309 = vmatpush1.bf16.msra.mxu0 %v293
  %310 = vmatprep.subr.bf16.mxu0 0
  %311 = vmatpush1.bf16.msra.mxu0 %v292
  %312 = vmatprep.subr.bf16.mxu0 0
  %313 = vmatpush1.bf16.msra.mxu0 %v291
  %314 = vmatprep.subr.bf16.mxu0 0
  %315 = vmatpush1.bf16.msra.mxu0 %v290
  %316 = vmatprep.subr.bf16.mxu0 0
  %317 = vmatpush1.bf16.msra.mxu0 %v289
  %318 = vmatprep.subr.bf16.mxu0 0
  %319 = vmatpush1.bf16.msra.mxu0 %v288
  %320 = vmatprep.subr.bf16.mxu0 0
  %321 = vmatpush2.bf16.msra.mxu0 0
  %322 = vmatprep.subr.bf16.mxu0 0
  %323 = vmatpush2.bf16.msra.mxu0 0
  %324 = vmatprep.subr.bf16.mxu0 0
  %325 = vmatpush2.bf16.msra.mxu0 0
  %326 = vmatprep.subr.bf16.mxu0 0
  %327 = vmatpush2.bf16.msra.mxu0 0
  %328 = vmatprep.subr.bf16.mxu0 0
  %329 = vmatpush2.bf16.msra.mxu0 0
  %330 = vmatprep.subr.bf16.mxu0 0
  %331 = vmatpush2.bf16.msra.mxu0 0
  %332 = vmatprep.subr.bf16.mxu0 0
  %333 = vmatpush2.bf16.msra.mxu0 0
  %334 = vmatprep.subr.bf16.mxu0 0
  %335 = vmatpush2.bf16.msra.mxu0 0
  %336 = vmatprep.mubr.bf16.mxu0 0
  %337 = vmatmul.mubr.bf16.gmra.mxu0 %v252
  %v338 = vpop.f32.mrf.mxu0
  %v339 = vadd.f32 %v233, %v338
  %v340 = vpop.f32.mrf.mxu0
  %v341 = vpop.f32.mrf.mxu0
  %v342 = vadd.f32 %v236, %v341
  %v343 = vpop.f32.mrf.mxu0
  %344 = vmatprep.mubr.bf16.mxu0 0
  %345 = vmatmul.mubr.bf16.gmra.mxu0 %v253
  %v346 = vpop.f32.mrf.mxu0
  %v347 = vadd.f32 %v241, %v346
  %v348 = vpop.f32.mrf.mxu0
  %v349 = vpop.f32.mrf.mxu0
  %v350 = vpop.f32.mrf.mxu0
  %351 = vdwg.mxu0
  %v352 = vld [vmem:[%s2] sm:$0xf]
  %v353 = vld [vmem:[%s2 + $0x4] sm:$0xf]
  %v354 = vld [vmem:[%s2 + $0x8] sm:$0xf]
  %v355 = vld [vmem:[%s9] sm:$0xf]
  %v356 = vld [vmem:[%s9 + $0x4] sm:$0xf]
  %v357 = vld [vmem:[%s9 + $0x8] sm:$0xf]
  %v358 = vld [vmem:[%s9 + $0xc] sm:$0xf]
  %v359 = vld [vmem:[%s9 + $0x10] sm:$0xf]
  %v360 = vld [vmem:[%s9 + $0x14] sm:$0xf]
  %v361 = vld [vmem:[%s9 + $0x18] sm:$0xf]
  %v362 = vld [vmem:[%s9 + $0x1c] sm:$0xf]
  %v363 = vld [vmem:[%s9 + $0x20] sm:$0xf]
  %v364 = vld [vmem:[%s9 + $0x24] sm:$0xf]
  %v365 = vld [vmem:[%s9 + $0x28] sm:$0xf]
  %v366 = vld [vmem:[%s9 + $0x2c] sm:$0xf]
  %v367 = vld [vmem:[%s9 + $0x30] sm:$0xf]
  %v368 = vld [vmem:[%s9 + $0x34] sm:$0xf]
  %v369 = vld [vmem:[%s9 + $0x38] sm:$0xf]
  %v370 = vld [vmem:[%s9 + $0x3c] sm:$0xf]
  %v374 = vunpack.c.l.b16 %v352
  %v375 = vunpack.c.l.b16 %v353
  %v376 = vunpack.c.l.b16 %v354
  %v377 = vpack.c.b16 %v375, %v374
  %v378 = vpack.c.b16 %v376, %v376
  %v397 = vunpack.c.l.b16 %v355
  %v398 = vunpack.c.l.b16 %v356
  %v399 = vunpack.c.l.b16 %v357
  %v400 = vunpack.c.l.b16 %v358
  %v401 = vunpack.c.l.b16 %v359
  %v402 = vunpack.c.l.b16 %v360
  %v403 = vunpack.c.l.b16 %v361
  %v404 = vunpack.c.l.b16 %v362
  %v405 = vunpack.c.l.b16 %v363
  %v406 = vunpack.c.l.b16 %v364
  %v407 = vunpack.c.l.b16 %v365
  %v408 = vunpack.c.l.b16 %v366
  %v409 = vunpack.c.l.b16 %v367
  %v410 = vunpack.c.l.b16 %v368
  %v411 = vunpack.c.l.b16 %v369
  %v412 = vunpack.c.l.b16 %v370
  %v413 = vpack.c.b16 %v398, %v397
  %v414 = vpack.c.b16 %v400, %v399
  %v415 = vpack.c.b16 %v402, %v401
  %v416 = vpack.c.b16 %v404, %v403
  %v417 = vpack.c.b16 %v406, %v405
  %v418 = vpack.c.b16 %v408, %v407
  %v419 = vpack.c.b16 %v410, %v409
  %v420 = vpack.c.b16 %v412, %v411
  %429 = vmatprep.subr.bf16.mxu0 0
  %430 = vmatpush1.bf16.msra.mxu0 %v420
  %431 = vmatprep.subr.bf16.mxu0 0
  %432 = vmatpush1.bf16.msra.mxu0 %v419
  %433 = vmatprep.subr.bf16.mxu0 0
  %434 = vmatpush1.bf16.msra.mxu0 %v418
  %435 = vmatprep.subr.bf16.mxu0 0
  %436 = vmatpush1.bf16.msra.mxu0 %v417
  %437 = vmatprep.subr.bf16.mxu0 0
  %438 = vmatpush1.bf16.msra.mxu0 %v416
  %439 = vmatprep.subr.bf16.mxu0 0
  %440 = vmatpush1.bf16.msra.mxu0 %v415
  %441 = vmatprep.subr.bf16.mxu0 0
  %442 = vmatpush1.bf16.msra.mxu0 %v414
  %443 = vmatprep.subr.bf16.mxu0 0
  %444 = vmatpush1.bf16.msra.mxu0 %v413
  %445 = vmatprep.subr.bf16.mxu0 0
  %446 = vmatpush2.bf16.msra.mxu0 0
  %447 = vmatprep.subr.bf16.mxu0 0
  %448 = vmatpush2.bf16.msra.mxu0 0
  %449 = vmatprep.subr.bf16.mxu0 0
  %450 = vmatpush2.bf16.msra.mxu0 0
  %451 = vmatprep.subr.bf16.mxu0 0
  %452 = vmatpush2.bf16.msra.mxu0 0
  %453 = vmatprep.subr.bf16.mxu0 0
  %454 = vmatpush2.bf16.msra.mxu0 0
  %455 = vmatprep.subr.bf16.mxu0 0
  %456 = vmatpush2.bf16.msra.mxu0 0
  %457 = vmatprep.subr.bf16.mxu0 0
  %458 = vmatpush2.bf16.msra.mxu0 0
  %459 = vmatprep.subr.bf16.mxu0 0
  %460 = vmatpush2.bf16.msra.mxu0 0
  %461 = vmatprep.mubr.bf16.mxu0 0
  %462 = vmatmul.mubr.bf16.gmra.mxu0 %v377
  %v463 = vpop.f32.mrf.mxu0
  %v464 = vadd.f32 0.0, %v463
  %v465 = vpop.f32.mrf.mxu0
  %v466 = vpop.f32.mrf.mxu0
  %v467 = vadd.f32 0.0, %v466
  %v468 = vpop.f32.mrf.mxu0
  %469 = vmatprep.mubr.bf16.mxu0 0
  %470 = vmatmul.mubr.bf16.gmra.mxu0 %v378
  %v471 = vpop.f32.mrf.mxu0
  %v472 = vadd.f32 0.0, %v471
  %v473 = vpop.f32.mrf.mxu0
  %v474 = vpop.f32.mrf.mxu0
  %v475 = vpop.f32.mrf.mxu0
  %476 = vdwg.mxu0
  %v477 = vadd.f32 %v339, %v464
  %v478 = vadd.f32 %v342, %v467
  %v479 = vadd.f32 %v347, %v472
  %v480 = vld [vmem:[%s5] sm:$0xf]
  %vm481 = vcmask 64512
  %v483 = vsel %vm481, %v83, 0
  %v486 = vsel %vm481, %v84, 0
  %vm488 = vcmask 1043456
  %v490 = vsel %vm488, %v480, 0
  %492 = vmatprep.subr.bf16.mxu0 0
  %493 = vmatpush1.bf16.msra.mxu0 0
  %494 = vmatprep.subr.bf16.mxu0 0
  %495 = vmatpush1.bf16.msra.mxu0 0
  %496 = vmatprep.subr.bf16.mxu0 0
  %497 = vmatpush1.bf16.msra.mxu0 0
  %498 = vmatprep.subr.bf16.mxu0 0
  %499 = vmatpush1.bf16.msra.mxu0 0
  %500 = vmatprep.subr.bf16.mxu0 0
  %501 = vmatpush1.bf16.msra.mxu0 0
  %502 = vmatprep.subr.bf16.mxu0 0
  %503 = vmatpush1.bf16.msra.mxu0 0
  %504 = vmatprep.subr.bf16.mxu0 0
  %505 = vmatpush1.bf16.msra.mxu0 0
  %506 = vmatprep.subr.bf16.mxu0 0
  %507 = vmatpush1.bf16.msra.mxu0 %v490
  %508 = vmatprep.subr.bf16.mxu0 0
  %509 = vmatpush2.bf16.msra.mxu0 0
  %510 = vmatprep.subr.bf16.mxu0 0
  %511 = vmatpush2.bf16.msra.mxu0 0
  %512 = vmatprep.subr.bf16.mxu0 0
  %513 = vmatpush2.bf16.msra.mxu0 0
  %514 = vmatprep.subr.bf16.mxu0 0
  %515 = vmatpush2.bf16.msra.mxu0 0
  %516 = vmatprep.subr.bf16.mxu0 0
  %517 = vmatpush2.bf16.msra.mxu0 0
  %518 = vmatprep.subr.bf16.mxu0 0
  %519 = vmatpush2.bf16.msra.mxu0 0
  %520 = vmatprep.subr.bf16.mxu0 0
  %521 = vmatpush2.bf16.msra.mxu0 0
  %522 = vmatprep.subr.bf16.mxu0 0
  %523 = vmatpush2.bf16.msra.mxu0 0
  %524 = vmatprep.mubr.bf16.mxu0 0
  %525 = vmatmul.mubr.bf16.gmra.mxu0 %v483
  %v526 = vpop.f32.mrf.mxu0
  %v527 = vadd.f32 0.0, %v526
  %v528 = vpop.f32.mrf.mxu0
  %v529 = vpop.f32.mrf.mxu0
  %v530 = vadd.f32 0.0, %v529
  %v531 = vpop.f32.mrf.mxu0
  %532 = vmatprep.mubr.bf16.mxu0 0
  %533 = vmatmul.mubr.bf16.gmra.mxu0 %v486
  %v534 = vpop.f32.mrf.mxu0
  %v535 = vadd.f32 0.0, %v534
  %v536 = vpop.f32.mrf.mxu0
  %v537 = vpop.f32.mrf.mxu0
  %v538 = vpop.f32.mrf.mxu0
  %539 = vdwg.mxu0
  %v540 = vadd.f32 %v477, %v527
  %v541 = vadd.f32 %v478, %v530
  %v542 = vadd.f32 %v479, %v535
  %v543 = vld [vmem:[%s10] sm:$0x1]
  %v545 = vlaneseq
  %v546 = vshrl.u32 %v545, 7
  %v547 = vsub.s32 0, %v546
  %v548 = vrot.slane %v543, %v547
  %v550 = vadd.f32 %v540, %v548
  %v551 = vadd.f32 %v541, %v548
  %v552 = vadd.f32 %v542, %v548
  %v553 = vpack.c.bf16 %v551, %v550
  %v554 = vpack.c.bf16 %v552, %v552
  %v557 = vunpack.c.l.b16 %v553
  %v558 = vunpack.c.h.b16 %v553
  %v559 = vunpack.c.l.b16 %v554
  %v560 = vpack.c.b16 %v557, %v557
  %v561 = vpack.c.b16 %v558, %v558
  %v562 = vpack.c.b16 %v559, %v559
  %566 = vst [vmem:[%s15] sm:$0xf] %v560
  %567 = vst [vmem:[%s15 + $0x4] sm:$0xf] %v561
  %568 = vst [vmem:[%s15 + $0x8] sm:$0xf] %v562
  %569 = vxpose.xlu0.c.b16.start [1/8] %v106, 128
  %570 = vxpose.xlu0.c.b16.cont [2/8] %v107, 128
  %571 = vxpose.xlu0.c.b16.cont [3/8] 0, 128
  %572 = vxpose.xlu0.c.b16.cont [4/8] 0, 128
  %573 = vxpose.xlu0.c.b16.cont [5/8] 0, 128
  %574 = vxpose.xlu0.c.b16.cont [6/8] 0, 128
  %575 = vxpose.xlu0.c.b16.cont [7/8] 0, 128
  %576 = vxpose.xlu0.c.b16.end [8/8] 0, 128
  %v577 = vpop.trf.xlu0
  %v578 = vpop.trf.xlu0
  %v579 = vpop.trf.xlu0
  %v580 = vpop.trf.xlu0
  %v581 = vpop.trf.xlu0
  %v582 = vpop.trf.xlu0
  %v583 = vpop.trf.xlu0
  %v584 = vpop.trf.xlu0
  %vm585 = vcmask 195584
  %v587 = vsel %vm585, %v577, 0
  %v590 = vsel %vm488, %v554, 0
  %592 = vmatprep.subr.bf16.mxu0 0
  %593 = vmatpush1.bf16.msra.mxu0 0
  %594 = vmatprep.subr.bf16.mxu0 0
  %595 = vmatpush1.bf16.msra.mxu0 0
  %596 = vmatprep.subr.bf16.mxu0 0
  %597 = vmatpush1.bf16.msra.mxu0 0
  %598 = vmatprep.subr.bf16.mxu0 0
  %599 = vmatpush1.bf16.msra.mxu0 0
  %600 = vmatprep.subr.bf16.mxu0 0
  %601 = vmatpush1.bf16.msra.mxu0 0
  %602 = vmatprep.subr.bf16.mxu0 0
  %603 = vmatpush1.bf16.msra.mxu0 0
  %604 = vmatprep.subr.bf16.mxu0 0
  %605 = vmatpush1.bf16.msra.mxu0 %v590
  %606 = vmatprep.subr.bf16.mxu0 0
  %607 = vmatpush1.bf16.msra.mxu0 %v553
  %608 = vmatprep.subr.bf16.mxu0 0
  %609 = vmatpush2.bf16.msra.mxu0 0
  %610 = vmatprep.subr.bf16.mxu0 0
  %611 = vmatpush2.bf16.msra.mxu0 0
  %612 = vmatprep.subr.bf16.mxu0 0
  %613 = vmatpush2.bf16.msra.mxu0 0
  %614 = vmatprep.subr.bf16.mxu0 0
  %615 = vmatpush2.bf16.msra.mxu0 0
  %616 = vmatprep.subr.bf16.mxu0 0
  %617 = vmatpush2.bf16.msra.mxu0 0
  %618 = vmatprep.subr.bf16.mxu0 0
  %619 = vmatpush2.bf16.msra.mxu0 0
  %620 = vmatprep.subr.bf16.mxu0 0
  %621 = vmatpush2.bf16.msra.mxu0 0
  %622 = vmatprep.subr.bf16.mxu0 0
  %623 = vmatpush2.bf16.msra.mxu0 0
  %624 = vmatprep.mubr.bf16.mxu0 0
  %625 = vmatmul.mubr.bf16.gmra.mxu0 %v587
  %v626 = vpop.f32.mrf.mxu0
  %v627 = vadd.f32 0.0, %v626
  %v628 = vpop.f32.mrf.mxu0
  %v629 = vpop.f32.mrf.mxu0
  %v630 = vpop.f32.mrf.mxu0
  %631 = vdwg.mxu0
  %632 = vst [vmem:[%s17] sm:$0xff] %v627
  %v633 = vld [vmem:[%s11] sm:$0xf]
  %v634 = vld [vmem:[%s11 + $0x4] sm:$0xf]
  %v635 = vld [vmem:[%s11 + $0x8] sm:$0xf]
  %v636 = vld [vmem:[%s11 + $0xc] sm:$0xf]
  %v637 = vld [vmem:[%s11 + $0x10] sm:$0xf]
  %v638 = vld [vmem:[%s11 + $0x14] sm:$0xf]
  %v639 = vld [vmem:[%s11 + $0x18] sm:$0xf]
  %v640 = vld [vmem:[%s11 + $0x1c] sm:$0xf]
  %v641 = vld [vmem:[%s11 + $0x20] sm:$0xf]
  %v642 = vld [vmem:[%s11 + $0x24] sm:$0xf]
  %v643 = vld [vmem:[%s11 + $0x28] sm:$0xf]
  %v644 = vld [vmem:[%s11 + $0x2c] sm:$0xf]
  %v645 = vld [vmem:[%s11 + $0x30] sm:$0xf]
  %v646 = vld [vmem:[%s11 + $0x34] sm:$0xf]
  %v647 = vld [vmem:[%s11 + $0x38] sm:$0xf]
  %v648 = vld [vmem:[%s11 + $0x3c] sm:$0xf]
  %v649 = vld [vmem:[%s12] sm:$0xf]
  %v650 = vld [vmem:[%s12 + $0x4] sm:$0xf]
  %v651 = vld [vmem:[%s12 + $0x8] sm:$0xf]
  %v652 = vld [vmem:[%s12 + $0xc] sm:$0xf]
  %v653 = vld [vmem:[%s12 + $0x10] sm:$0xf]
  %v654 = vld [vmem:[%s12 + $0x14] sm:$0xf]
  %v655 = vld [vmem:[%s12 + $0x18] sm:$0xf]
  %v656 = vld [vmem:[%s12 + $0x1c] sm:$0xf]
  %v657 = vld [vmem:[%s12 + $0x20] sm:$0xf]
  %v658 = vld [vmem:[%s12 + $0x24] sm:$0xf]
  %v659 = vld [vmem:[%s12 + $0x28] sm:$0xf]
  %v660 = vld [vmem:[%s12 + $0x2c] sm:$0xf]
  %v661 = vld [vmem:[%s12 + $0x30] sm:$0xf]
  %v662 = vld [vmem:[%s12 + $0x34] sm:$0xf]
  %v663 = vld [vmem:[%s12 + $0x38] sm:$0xf]
  %v664 = vld [vmem:[%s12 + $0x3c] sm:$0xf]
  %v681 = vunpack.c.l.b16 %v649
  %v682 = vunpack.c.l.b16 %v650
  %v683 = vunpack.c.l.b16 %v651
  %v684 = vunpack.c.l.b16 %v652
  %v685 = vunpack.c.l.b16 %v653
  %v686 = vunpack.c.l.b16 %v654
  %v687 = vunpack.c.l.b16 %v655
  %v688 = vunpack.c.l.b16 %v656
  %v689 = vunpack.c.l.b16 %v657
  %v690 = vunpack.c.l.b16 %v658
  %v691 = vunpack.c.l.b16 %v659
  %v692 = vunpack.c.l.b16 %v660
  %v693 = vunpack.c.l.b16 %v661
  %v694 = vunpack.c.l.b16 %v662
  %v695 = vunpack.c.l.b16 %v663
  %v696 = vunpack.c.l.b16 %v664
  %v697 = vpack.c.b16 %v682, %v681
  %v698 = vpack.c.b16 %v684, %v683
  %v699 = vpack.c.b16 %v686, %v685
  %v700 = vpack.c.b16 %v688, %v687
  %v701 = vpack.c.b16 %v690, %v689
  %v702 = vpack.c.b16 %v692, %v691
  %v703 = vpack.c.b16 %v694, %v693
  %v704 = vpack.c.b16 %v696, %v695
  %713 = vmatprep.subr.bf16.mxu0 0
  %714 = vmatpush1.bf16.msra.mxu0 %v704
  %715 = vmatprep.subr.bf16.mxu0 0
  %716 = vmatpush1.bf16.msra.mxu0 %v703
  %717 = vmatprep.subr.bf16.mxu0 0
  %718 = vmatpush1.bf16.msra.mxu0 %v702
  %719 = vmatprep.subr.bf16.mxu0 0
  %720 = vmatpush1.bf16.msra.mxu0 %v701
  %721 = vmatprep.subr.bf16.mxu0 0
  %722 = vmatpush1.bf16.msra.mxu0 %v700
  %723 = vmatprep.subr.bf16.mxu0 0
  %724 = vmatpush1.bf16.msra.mxu0 %v699
  %725 = vmatprep.subr.bf16.mxu0 0
  %726 = vmatpush1.bf16.msra.mxu0 %v698
  %727 = vmatprep.subr.bf16.mxu0 0
  %728 = vmatpush1.bf16.msra.mxu0 %v697
  %729 = vmatprep.subr.bf16.mxu0 0
  %730 = vmatpush2.bf16.msra.mxu0 0
  %731 = vmatprep.subr.bf16.mxu0 0
  %732 = vmatpush2.bf16.msra.mxu0 0
  %733 = vmatprep.subr.bf16.mxu0 0
  %734 = vmatpush2.bf16.msra.mxu0 0
  %735 = vmatprep.subr.bf16.mxu0 0
  %736 = vmatpush2.bf16.msra.mxu0 0
  %737 = vmatprep.subr.bf16.mxu0 0
  %738 = vmatpush2.bf16.msra.mxu0 0
  %739 = vmatprep.subr.bf16.mxu0 0
  %740 = vmatpush2.bf16.msra.mxu0 0
  %741 = vmatprep.subr.bf16.mxu0 0
  %742 = vmatpush2.bf16.msra.mxu0 0
  %743 = vmatprep.subr.bf16.mxu0 0
  %744 = vmatpush2.bf16.msra.mxu0 0
  %745 = vmatprep.mubr.bf16.mxu0 0
  %746 = vmatmul.mubr.bf16.gmra.mxu0 %v252
  %v747 = vpop.f32.mrf.mxu0
  %v748 = vadd.f32 0.0, %v747
  %v749 = vpop.f32.mrf.mxu0
  %v750 = vpop.f32.mrf.mxu0
  %v751 = vadd.f32 0.0, %v750
  %v752 = vpop.f32.mrf.mxu0
  %753 = vmatprep.mubr.bf16.mxu0 0
  %754 = vmatmul.mubr.bf16.gmra.mxu0 %v253
  %v755 = vpop.f32.mrf.mxu0
  %v756 = vadd.f32 0.0, %v755
  %v757 = vpop.f32.mrf.mxu0
  %v758 = vpop.f32.mrf.mxu0
  %v759 = vpop.f32.mrf.mxu0
  %760 = vdwg.mxu0
  %v777 = vunpack.c.l.b16 %v633
  %v778 = vunpack.c.l.b16 %v634
  %v779 = vunpack.c.l.b16 %v635
  %v780 = vunpack.c.l.b16 %v636
  %v781 = vunpack.c.l.b16 %v637
  %v782 = vunpack.c.l.b16 %v638
  %v783 = vunpack.c.l.b16 %v639
  %v784 = vunpack.c.l.b16 %v640
  %v785 = vunpack.c.l.b16 %v641
  %v786 = vunpack.c.l.b16 %v642
  %v787 = vunpack.c.l.b16 %v643
  %v788 = vunpack.c.l.b16 %v644
  %v789 = vunpack.c.l.b16 %v645
  %v790 = vunpack.c.l.b16 %v646
  %v791 = vunpack.c.l.b16 %v647
  %v792 = vunpack.c.l.b16 %v648
  %v793 = vpack.c.b16 %v778, %v777
  %v794 = vpack.c.b16 %v780, %v779
  %v795 = vpack.c.b16 %v782, %v781
  %v796 = vpack.c.b16 %v784, %v783
  %v797 = vpack.c.b16 %v786, %v785
  %v798 = vpack.c.b16 %v788, %v787
  %v799 = vpack.c.b16 %v790, %v789
  %v800 = vpack.c.b16 %v792, %v791
  %809 = vmatprep.subr.bf16.mxu0 0
  %810 = vmatpush1.bf16.msra.mxu0 %v800
  %811 = vmatprep.subr.bf16.mxu0 0
  %812 = vmatpush1.bf16.msra.mxu0 %v799
  %813 = vmatprep.subr.bf16.mxu0 0
  %814 = vmatpush1.bf16.msra.mxu0 %v798
  %815 = vmatprep.subr.bf16.mxu0 0
  %816 = vmatpush1.bf16.msra.mxu0 %v797
  %817 = vmatprep.subr.bf16.mxu0 0
  %818 = vmatpush1.bf16.msra.mxu0 %v796
  %819 = vmatprep.subr.bf16.mxu0 0
  %820 = vmatpush1.bf16.msra.mxu0 %v795
  %821 = vmatprep.subr.bf16.mxu0 0
  %822 = vmatpush1.bf16.msra.mxu0 %v794
  %823 = vmatprep.subr.bf16.mxu0 0
  %824 = vmatpush1.bf16.msra.mxu0 %v793
  %825 = vmatprep.subr.bf16.mxu0 0
  %826 = vmatpush2.bf16.msra.mxu0 0
  %827 = vmatprep.subr.bf16.mxu0 0
  %828 = vmatpush2.bf16.msra.mxu0 0
  %829 = vmatprep.subr.bf16.mxu0 0
  %830 = vmatpush2.bf16.msra.mxu0 0
  %831 = vmatprep.subr.bf16.mxu0 0
  %832 = vmatpush2.bf16.msra.mxu0 0
  %833 = vmatprep.subr.bf16.mxu0 0
  %834 = vmatpush2.bf16.msra.mxu0 0
  %835 = vmatprep.subr.bf16.mxu0 0
  %836 = vmatpush2.bf16.msra.mxu0 0
  %837 = vmatprep.subr.bf16.mxu0 0
  %838 = vmatpush2.bf16.msra.mxu0 0
  %839 = vmatprep.subr.bf16.mxu0 0
  %840 = vmatpush2.bf16.msra.mxu0 0
  %841 = vmatprep.mubr.bf16.mxu0 0
  %842 = vmatmul.mubr.bf16.gmra.mxu0 %v146
  %v843 = vpop.f32.mrf.mxu0
  %v844 = vadd.f32 %v748, %v843
  %v845 = vpop.f32.mrf.mxu0
  %v846 = vpop.f32.mrf.mxu0
  %v847 = vadd.f32 %v751, %v846
  %v848 = vpop.f32.mrf.mxu0
  %849 = vmatprep.mubr.bf16.mxu0 0
  %850 = vmatmul.mubr.bf16.gmra.mxu0 %v147
  %v851 = vpop.f32.mrf.mxu0
  %v852 = vadd.f32 %v756, %v851
  %v853 = vpop.f32.mrf.mxu0
  %v854 = vpop.f32.mrf.mxu0
  %v855 = vpop.f32.mrf.mxu0
  %856 = vdwg.mxu0
  %v857 = vld [vmem:[%s13] sm:$0xf]
  %v858 = vld [vmem:[%s13 + $0x4] sm:$0xf]
  %v859 = vld [vmem:[%s13 + $0x8] sm:$0xf]
  %v860 = vld [vmem:[%s13 + $0xc] sm:$0xf]
  %v861 = vld [vmem:[%s13 + $0x10] sm:$0xf]
  %v862 = vld [vmem:[%s13 + $0x14] sm:$0xf]
  %v863 = vld [vmem:[%s13 + $0x18] sm:$0xf]
  %v864 = vld [vmem:[%s13 + $0x1c] sm:$0xf]
  %v865 = vld [vmem:[%s13 + $0x20] sm:$0xf]
  %v866 = vld [vmem:[%s13 + $0x24] sm:$0xf]
  %v867 = vld [vmem:[%s13 + $0x28] sm:$0xf]
  %v868 = vld [vmem:[%s13 + $0x2c] sm:$0xf]
  %v869 = vld [vmem:[%s13 + $0x30] sm:$0xf]
  %v870 = vld [vmem:[%s13 + $0x34] sm:$0xf]
  %v871 = vld [vmem:[%s13 + $0x38] sm:$0xf]
  %v872 = vld [vmem:[%s13 + $0x3c] sm:$0xf]
  %v889 = vunpack.c.l.b16 %v857
  %v890 = vunpack.c.l.b16 %v858
  %v891 = vunpack.c.l.b16 %v859
  %v892 = vunpack.c.l.b16 %v860
  %v893 = vunpack.c.l.b16 %v861
  %v894 = vunpack.c.l.b16 %v862
  %v895 = vunpack.c.l.b16 %v863
  %v896 = vunpack.c.l.b16 %v864
  %v897 = vunpack.c.l.b16 %v865
  %v898 = vunpack.c.l.b16 %v866
  %v899 = vunpack.c.l.b16 %v867
  %v900 = vunpack.c.l.b16 %v868
  %v901 = vunpack.c.l.b16 %v869
  %v902 = vunpack.c.l.b16 %v870
  %v903 = vunpack.c.l.b16 %v871
  %v904 = vunpack.c.l.b16 %v872
  %v905 = vpack.c.b16 %v890, %v889
  %v906 = vpack.c.b16 %v892, %v891
  %v907 = vpack.c.b16 %v894, %v893
  %v908 = vpack.c.b16 %v896, %v895
  %v909 = vpack.c.b16 %v898, %v897
  %v910 = vpack.c.b16 %v900, %v899
  %v911 = vpack.c.b16 %v902, %v901
  %v912 = vpack.c.b16 %v904, %v903
  %921 = vmatprep.subr.bf16.mxu0 0
  %922 = vmatpush1.bf16.msra.mxu0 %v912
  %923 = vmatprep.subr.bf16.mxu0 0
  %924 = vmatpush1.bf16.msra.mxu0 %v911
  %925 = vmatprep.subr.bf16.mxu0 0
  %926 = vmatpush1.bf16.msra.mxu0 %v910
  %927 = vmatprep.subr.bf16.mxu0 0
  %928 = vmatpush1.bf16.msra.mxu0 %v909
  %929 = vmatprep.subr.bf16.mxu0 0
  %930 = vmatpush1.bf16.msra.mxu0 %v908
  %931 = vmatprep.subr.bf16.mxu0 0
  %932 = vmatpush1.bf16.msra.mxu0 %v907
  %933 = vmatprep.subr.bf16.mxu0 0
  %934 = vmatpush1.bf16.msra.mxu0 %v906
  %935 = vmatprep.subr.bf16.mxu0 0
  %936 = vmatpush1.bf16.msra.mxu0 %v905
  %937 = vmatprep.subr.bf16.mxu0 0
  %938 = vmatpush2.bf16.msra.mxu0 0
  %939 = vmatprep.subr.bf16.mxu0 0
  %940 = vmatpush2.bf16.msra.mxu0 0
  %941 = vmatprep.subr.bf16.mxu0 0
  %942 = vmatpush2.bf16.msra.mxu0 0
  %943 = vmatprep.subr.bf16.mxu0 0
  %944 = vmatpush2.bf16.msra.mxu0 0
  %945 = vmatprep.subr.bf16.mxu0 0
  %946 = vmatpush2.bf16.msra.mxu0 0
  %947 = vmatprep.subr.bf16.mxu0 0
  %948 = vmatpush2.bf16.msra.mxu0 0
  %949 = vmatprep.subr.bf16.mxu0 0
  %950 = vmatpush2.bf16.msra.mxu0 0
  %951 = vmatprep.subr.bf16.mxu0 0
  %952 = vmatpush2.bf16.msra.mxu0 0
  %953 = vmatprep.mubr.bf16.mxu0 0
  %954 = vmatmul.mubr.bf16.gmra.mxu0 %v553
  %v955 = vpop.f32.mrf.mxu0
  %v956 = vadd.f32 0.0, %v955
  %v957 = vpop.f32.mrf.mxu0
  %v958 = vpop.f32.mrf.mxu0
  %v959 = vadd.f32 0.0, %v958
  %v960 = vpop.f32.mrf.mxu0
  %961 = vmatprep.mubr.bf16.mxu0 0
  %962 = vmatmul.mubr.bf16.gmra.mxu0 %v554
  %v963 = vpop.f32.mrf.mxu0
  %v964 = vadd.f32 0.0, %v963
  %v965 = vpop.f32.mrf.mxu0
  %v966 = vpop.f32.mrf.mxu0
  %v967 = vpop.f32.mrf.mxu0
  %968 = vdwg.mxu0
  %v969 = vadd.f32 %v844, %v956
  %v970 = vadd.f32 %v847, %v959
  %v971 = vadd.f32 %v852, %v964
  %v972 = vld [vmem:[%s6] sm:$0xf]
  %v974 = vsel %vm481, %v106, 0
  %v977 = vsel %vm481, %v107, 0
  %v980 = vsel %vm488, %v972, 0
  %982 = vmatprep.subr.bf16.mxu0 0
  %983 = vmatpush1.bf16.msra.mxu0 0
  %984 = vmatprep.subr.bf16.mxu0 0
  %985 = vmatpush1.bf16.msra.mxu0 0
  %986 = vmatprep.subr.bf16.mxu0 0
  %987 = vmatpush1.bf16.msra.mxu0 0
  %988 = vmatprep.subr.bf16.mxu0 0
  %989 = vmatpush1.bf16.msra.mxu0 0
  %990 = vmatprep.subr.bf16.mxu0 0
  %991 = vmatpush1.bf16.msra.mxu0 0
  %992 = vmatprep.subr.bf16.mxu0 0
  %993 = vmatpush1.bf16.msra.mxu0 0
  %994 = vmatprep.subr.bf16.mxu0 0
  %995 = vmatpush1.bf16.msra.mxu0 0
  %996 = vmatprep.subr.bf16.mxu0 0
  %997 = vmatpush1.bf16.msra.mxu0 %v980
  %998 = vmatprep.subr.bf16.mxu0 0
  %999 = vmatpush2.bf16.msra.mxu0 0
  %1000 = vmatprep.subr.bf16.mxu0 0
  %1001 = vmatpush2.bf16.msra.mxu0 0
  %1002 = vmatprep.subr.bf16.mxu0 0
  %1003 = vmatpush2.bf16.msra.mxu0 0
  %1004 = vmatprep.subr.bf16.mxu0 0
  %1005 = vmatpush2.bf16.msra.mxu0 0
  %1006 = vmatprep.subr.bf16.mxu0 0
  %1007 = vmatpush2.bf16.msra.mxu0 0
  %1008 = vmatprep.subr.bf16.mxu0 0
  %1009 = vmatpush2.bf16.msra.mxu0 0
  %1010 = vmatprep.subr.bf16.mxu0 0
  %1011 = vmatpush2.bf16.msra.mxu0 0
  %1012 = vmatprep.subr.bf16.mxu0 0
  %1013 = vmatpush2.bf16.msra.mxu0 0
  %1014 = vmatprep.mubr.bf16.mxu0 0
  %1015 = vmatmul.mubr.bf16.gmra.mxu0 %v974
  %v1016 = vpop.f32.mrf.mxu0
  %v1017 = vadd.f32 0.0, %v1016
  %v1018 = vpop.f32.mrf.mxu0
  %v1019 = vpop.f32.mrf.mxu0
  %v1020 = vadd.f32 0.0, %v1019
  %v1021 = vpop.f32.mrf.mxu0
  %1022 = vmatprep.mubr.bf16.mxu0 0
  %1023 = vmatmul.mubr.bf16.gmra.mxu0 %v977
  %v1024 = vpop.f32.mrf.mxu0
  %v1025 = vadd.f32 0.0, %v1024
  %v1026 = vpop.f32.mrf.mxu0
  %v1027 = vpop.f32.mrf.mxu0
  %v1028 = vpop.f32.mrf.mxu0
  %1029 = vdwg.mxu0
  %v1030 = vadd.f32 %v969, %v1017
  %v1031 = vadd.f32 %v970, %v1020
  %v1032 = vadd.f32 %v971, %v1025
  %v1033 = vld [vmem:[%s14] sm:$0x1]
  %v1035 = vlaneseq
  %v1036 = vshrl.u32 %v1035, 7
  %v1037 = vsub.s32 0, %v1036
  %v1038 = vrot.slane %v1033, %v1037
  %v1040 = vadd.f32 %v1030, %v1038
  %v1041 = vadd.f32 %v1031, %v1038
  %v1042 = vadd.f32 %v1032, %v1038
  %v1043 = vpack.c.bf16 %v1041, %v1040
  %v1044 = vpack.c.bf16 %v1042, %v1042
  %v1047 = vunpack.c.l.b16 %v1043
  %v1048 = vunpack.c.h.b16 %v1043
  %v1049 = vunpack.c.l.b16 %v1044
  %v1050 = vpack.c.b16 %v1047, %v1047
  %v1051 = vpack.c.b16 %v1048, %v1048
  %v1052 = vpack.c.b16 %v1049, %v1049
  %1056 = vst [vmem:[%s16] sm:$0xf] %v1050
  %1057 = vst [vmem:[%s16 + $0x4] sm:$0xf] %v1051
  %1058 = vst [vmem:[%s16 + $0x8] sm:$0xf] %v1052
  // Predicated region
  $region62: #{mpnn_forward.10} parent=0 // pred_check
    _
  $region63: #{mpnn_forward.10} parent=0 // pred_check_branch
    %1060 = sbr.rel (0) target = $region65
  $region64: #{mpnn_forward.10} parent=0 // pred_region
    _
  $region65: #{mpnn_forward.10} parent=0 // pred_fallthru
    _
  // Predicated region
  $region66: #{mpnn_forward.10} parent=0 // pred_check
    _
  $region67: #{mpnn_forward.10} parent=0 // pred_check_branch
    %1062 = sbr.rel (0) target = $region69
  $region68: #{mpnn_forward.10} parent=0 // pred_region
    _
  $region69: #{mpnn_forward.10} parent=0 // pred_fallthru
    _
  // Predicated region
  $region70: #{mpnn_forward.10} parent=0 // pred_check
    _
  $region71: #{mpnn_forward.10} parent=0 // pred_check_branch
    %1064 = sbr.rel (0) target = $region73
  $region72: #{mpnn_forward.10} parent=0 // pred_region
    _
  $region73: #{mpnn_forward.10} parent=0 // pred_fallthru
    _
  // Predicated region
  $region74: #{mpnn_forward.10} parent=0 // pred_check
    _
  $region75: #{mpnn_forward.10} parent=0 // pred_check_branch
    %1066 = sbr.rel (0) target = $region77
  $region76: #{mpnn_forward.10} parent=0 // pred_region
    _
  $region77: #{mpnn_forward.10} parent=0 // pred_fallthru
    _
  // Predicated region
  $region78: #{mpnn_forward.10} parent=0 // pred_check
    _
  $region79: #{mpnn_forward.10} parent=0 // pred_check_branch
    %1068 = sbr.rel (0) target = $region81
  $region80: #{mpnn_forward.10} parent=0 // pred_region
    _
  $region81: #{mpnn_forward.10} parent=0 // pred_fallthru
    _
  // Predicated region
  $region82: #{mpnn_forward.10} parent=0 // pred_check
    _
  $region83: #{mpnn_forward.10} parent=0 // pred_check_branch
    %1070 = sbr.rel (0) target = $region85
  $region84: #{mpnn_forward.10} parent=0 // pred_region
    _
  $region85: #{mpnn_forward.10} parent=0 // pred_fallthru
    _

</llo_original>
